<compile_context>
chip_gen: v7x
topology: tpu7x:2x2x1
jax: 0.10.0
libtpu: 0.0.40
codegen_flags: <defaults>
</compile_context>

<pallas_src>
import functools

import numpy as np
import jax
import jax.numpy as jnp
from jax import lax
from jax.experimental import pallas as pl
from jax.experimental.pallas import tpu as pltpu


# Tap index -> (input-row parity, start offset inside the 1-padded parity plane)
# for a k=4, stride=2, pad=1 conv:  input row 2i-1+kh  ==  plane[parity][i + off].
_DOWN_TAP = ((1, 0), (0, 1), (1, 1), (0, 2))

# Transposed conv (k=4, s=2, p=1) decomposed by output parity a:
#   y[2i+a] = sum over 3x3-window row positions pos of  h_pad[i + pos] @ Wt[..., kh, ...]
# with kh = _UP_KH[a][pos] (positions not listed contribute nothing).
_UP_KH = ({0: 3, 1: 1}, {1: 2, 2: 0})


# --------------------------------------------------------------------------
# Kernel A: fused LeakyReLU + down-conv + ReLU + conv-transpose + BN partials
# --------------------------------------------------------------------------
def _fused_block_kernel(xp_ref, bd_ref, bu_ref,            # inputs
                        y_ref, s_ref, m2_ref,              # outputs
                        dpatch_ref, hp_ref, upatch_ref,    # VMEM scratch
                        *, Ho, Wo, Cin, Cf, Cout, neg_slope):
    # ---- down path: LeakyReLU fused into in-VMEM im2col (bf16 staging),
    #      one K=16*Cin matmul ----
    for kh in range(4):
        rp, ro = _DOWN_TAP[kh]
        for kw in range(4):
            cp, co = _DOWN_TAP[kw]
            base = (2 * rp + cp) * (Ho + 2)
            w = xp_ref[0, base + ro:base + ro + Ho, co:co + Wo, :]
            w = jnp.where(w > 0, w, neg_slope * w)     # LeakyReLU (LReLU(0)=0 == pad)
            t = kh * 4 + kw
            dpatch_ref[:, :, t * Cin:(t + 1) * Cin] = w.astype(jnp.bfloat16)
    a = dpatch_ref[...].reshape(Ho * Wo, 16 * Cin)                      # bf16
    h = jnp.dot(a, bd_ref[...], preferred_element_type=jnp.float32)     # [Ho*Wo, Cf]
    h = jnp.maximum(h, 0.0)                                             # ReLU (up path)

    # ---- zero-padded h, VMEM-resident only (f32) ----
    hp_ref[...] = jnp.zeros_like(hp_ref)
    hp_ref[1:Ho + 1, 1:Wo + 1, :] = h.reshape(Ho, Wo, Cf)

    # ---- up path: ConvTranspose as a 3x3 conv over hp; 4 output parity classes
    #      packed along the matmul N (lane) dimension; bf16 staging ----
    for ph in range(3):
        for pw in range(3):
            t = ph * 3 + pw
            upatch_ref[:, :, t * Cf:(t + 1) * Cf] = (
                hp_ref[ph:ph + Ho, pw:pw + Wo, :].astype(jnp.bfloat16))
    au = upatch_ref[...].reshape(Ho * Wo, 9 * Cf)                       # bf16
    y = jnp.dot(au, bu_ref[...], preferred_element_type=jnp.float32)    # [Ho*Wo, 4*Cout]
    y_ref[...] = y

    # ---- BatchNorm partial statistics (per image & parity class, mean-shifted) ----
    s = jnp.sum(y, axis=0, keepdims=True)                               # [1, 4*Cout]
    d = y - s * (1.0 / (Ho * Wo))
    s_ref[...] = s.reshape(1, 1, 4 * Cout)
    m2_ref[...] = jnp.sum(d * d, axis=0, keepdims=True).reshape(1, 1, 4 * Cout)


def _fused_block(planes, b_down, b_up, *, N, Ho, Wo, Cin, Cf, Cout):
    kernel = functools.partial(_fused_block_kernel, Ho=Ho, Wo=Wo, Cin=Cin,
                               Cf=Cf, Cout=Cout, neg_slope=0.2)
    Rp, Wp = 4 * (Ho + 2), Wo + 2
    return pl.pallas_call(
        kernel,
        out_shape=(
            jax.ShapeDtypeStruct((N * Ho * Wo, 4 * Cout), jnp.float32),  # y (parity-packed)
            jax.ShapeDtypeStruct((N, 1, 4 * Cout), jnp.float32),         # per-chunk sums
            jax.ShapeDtypeStruct((N, 1, 4 * Cout), jnp.float32),         # per-chunk centered M2
        ),
        grid=(N,),
        in_specs=[
            pl.BlockSpec((1, Rp, Wp, Cin), lambda n: (n, 0, 0, 0)),
            pl.BlockSpec((16 * Cin, Cf), lambda n: (0, 0)),
            pl.BlockSpec((9 * Cf, 4 * Cout), lambda n: (0, 0)),
        ],
        out_specs=(
            pl.BlockSpec((Ho * Wo, 4 * Cout), lambda n: (n, 0)),
            pl.BlockSpec((1, 1, 4 * Cout), lambda n: (n, 0, 0)),
            pl.BlockSpec((1, 1, 4 * Cout), lambda n: (n, 0, 0)),
        ),
        scratch_shapes=[
            pltpu.VMEM((Ho, Wo, 16 * Cin), jnp.bfloat16),   # down-conv im2col patches (MXU dtype)
            pltpu.VMEM((Ho + 2, Wo + 2, Cf), jnp.float32),  # zero-padded h
            pltpu.VMEM((Ho, Wo, 9 * Cf), jnp.bfloat16),     # up-conv im2col patches (MXU dtype)
        ],
        compiler_params=pltpu.CompilerParams(dimension_semantics=("parallel",)),
    )(planes, b_down, b_up)


# --------------------------------------------------------------------------
# Kernel B: BatchNorm affine, lane-dense layout
# --------------------------------------------------------------------------
def _bn_apply_kernel(y_ref, scale_ref, bias_ref, o_ref):
    o_ref[...] = y_ref[...] * scale_ref[...] + bias_ref[...]


def _bn_apply(y2d, scale_row, bias_row, *, max_tm=1024):
    M, L = y2d.shape
    tm = M if M <= max_tm else max_tm
    return pl.pallas_call(
        _bn_apply_kernel,
        out_shape=jax.ShapeDtypeStruct((M, L), jnp.float32),
        grid=(pl.cdiv(M, tm),),
        in_specs=[
            pl.BlockSpec((tm, L), lambda i: (i, 0)),
            pl.BlockSpec((1, L), lambda i: (0, 0)),
            pl.BlockSpec((1, L), lambda i: (0, 0)),
        ],
        out_specs=pl.BlockSpec((tm, L), lambda i: (i, 0)),
        compiler_params=pltpu.CompilerParams(dimension_semantics=("parallel",)),
    )(y2d, scale_row, bias_row)


# --------------------------------------------------------------------------
# UNetBlock (innermost) forward
# --------------------------------------------------------------------------
def unet_block_forward(x_nchw, params):
    """Forward of UNetBlock(innermost=True): cat([x, model(x)], dim=1)."""
    w_down = params["w_down"]   # [in_filters, input_channels, 4, 4]   (Conv2d OIHW)
    w_up = params["w_up"]       # [in_filters, out_filters, 4, 4]      (ConvTranspose IOHW)
    gamma = params["gamma"]     # [out_filters]
    beta = params["beta"]       # [out_filters]

    N, Cin, H, W = x_nchw.shape
    Cf = w_down.shape[0]                       # in_filters
    Cout = w_up.shape[1]                       # out_filters
    assert H % 2 == 0 and W % 2 == 0
    Ho, Wo = H // 2, W // 2
    assert (Ho * Wo) % 8 == 0, "per-image output tile must have a multiple-of-8 rows"
    # TODO(synk): for very large feature maps add a spatial row-tile grid axis (2-row
    # halo); the innermost pix2pix block is spatially tiny so one image per grid step
    # is the right granularity here (and keeps the grid megacore-shardable).

    x = jnp.transpose(x_nchw, (0, 2, 3, 1)).astype(jnp.float32)          # NHWC

    # ---- input parity planes (space-to-depth), zero-padded by 1.  Plane p=2*ph+pw
    #      holds x[:, ph::2, pw::2, :]; every tap of the stride-2 conv becomes a
    #      contiguous window of one plane.  Planes are stacked along rows so the
    #      kernel sees a plain 4-D ref. ----
    planes = x.reshape(N, Ho, 2, Wo, 2, Cin).transpose(0, 2, 4, 1, 3, 5)  # [N,2,2,Ho,Wo,C]
    planes = planes.reshape(N, 4, Ho, Wo, Cin)
    planes = jnp.pad(planes, ((0, 0), (0, 0), (1, 1), (1, 1), (0, 0)))
    planes = planes.reshape(N, 4 * (Ho + 2), Wo + 2, Cin)

    # ---- weight repacking (tiny, host/XLA side), bf16 for the MXU ----
    b_down = jnp.transpose(w_down, (2, 3, 1, 0)).reshape(16 * Cin, Cf).astype(jnp.bfloat16)

    sel = np.zeros((9, 4, 4, 4), np.float32)   # [3x3 window pos, output parity, kh, kw]
    for a in (0, 1):
        for b in (0, 1):
            for ph, kh in _UP_KH[a].items():
                for pw, kw in _UP_KH[b].items():
                    sel[ph * 3 + pw, 2 * a + b, kh, kw] = 1.0
    b_up = jnp.einsum("tgkl,fokl->tfgo", jnp.asarray(sel), w_up.astype(jnp.float32))
    b_up = b_up.reshape(9 * Cf, 4 * Cout).astype(jnp.bfloat16)

    # ---- fused LeakyReLU + conv + ReLU + conv-transpose + BN partial stats ----
    y_pre, s_part, m2_part = _fused_block(planes, b_down, b_up,
                                          N=N, Ho=Ho, Wo=Wo, Cin=Cin, Cf=Cf, Cout=Cout)

    # ---- combine per-(image, parity) stats -> batch mean / biased var (Chan) ----
    cnt = Ho * Wo
    total = N * 4 * cnt                        # == N * H * W
    sums = s_part.reshape(N * 4, Cout)
    m2s = m2_part.reshape(N * 4, Cout)
    mean = jnp.sum(sums, axis=0) / total
    chunk_mean = sums / cnt
    var = (jnp.sum(m2s, axis=0) + cnt * jnp.sum((chunk_mean - mean) ** 2, axis=0)) / total
    inv_std = lax.rsqrt(var + 1e-5)
    scale = gamma * inv_std
    bias = beta - mean * scale

    # ---- BN affine on a lane-dense [N*Ho, Wo*4*Cout] view of y ----
    L = Wo * 4 * Cout
    y_slab = y_pre.reshape(N * Ho, L)
    scale_row = jnp.tile(scale, Wo * 4).reshape(1, L)
    bias_row = jnp.tile(bias, Wo * 4).reshape(1, L)
    y_bn = _bn_apply(y_slab, scale_row, bias_row)

    # ---- de-parity -> NHWC -> NCHW, concat with the block input ----
    y_nhwc = (y_bn.reshape(N, Ho, Wo, 2, 2, Cout)
                  .transpose(0, 1, 3, 2, 4, 5)
                  .reshape(N, H, W, Cout))
    y_nchw = jnp.transpose(y_nhwc, (0, 3, 1, 2))
    return jnp.concatenate([x_nchw, y_nchw], axis=1)


# --------------------------------------------------------------------------
# Pure-JAX reference for verification
# --------------------------------------------------------------------------
def reference_forward(x, params):
    w_down, w_up = params["w_down"], params["w_up"]
    gamma, beta = params["gamma"], params["beta"]
    a = jnp.where(x > 0, x, 0.2 * x)
    h = lax.conv_general_dilated(a, w_down, (2, 2), ((1, 1), (1, 1)),
                                 dimension_numbers=("NCHW", "OIHW", "NCHW"))
    h = jnp.maximum(h, 0.0)
    w_conv = jnp.transpose(w_up, (1, 0, 2, 3))[:, :, ::-1, ::-1]
    y = lax.conv_general_dilated(h, w_conv, (1, 1), ((2, 2), (2, 2)),
                                 lhs_dilation=(2, 2),
                                 dimension_numbers=("NCHW", "OIHW", "NCHW"))
    mean = y.mean(axis=(0, 2, 3), keepdims=True)
    var = ((y - mean) ** 2).mean(axis=(0, 2, 3), keepdims=True)
    y = (y - mean) / jnp.sqrt(var + 1e-5) * gamma.reshape(1, -1, 1, 1) \
        + beta.reshape(1, -1, 1, 1)
    return jnp.concatenate([x, y], axis=1)


# --------------------------------------------------------------------------
if __name__ == "__main__":
    # UNetBlock(out_filters=8, in_filters=16, innermost=True)
    out_filters, in_filters = 8, 16
    N, H, W = 2, 16, 16
    input_channels = out_filters                      # default when None

    key = jax.random.PRNGKey(0)
    k_x, k_d, k_u, k_g, k_b = jax.random.split(key, 5)

    x = jax.random.normal(k_x, (N, input_channels, H, W), jnp.float32)
    params = {
        # Conv2d weight: [out_ch=in_filters, in_ch=input_channels, 4, 4]
        "w_down": 0.1 * jax.random.normal(k_d, (in_filters, input_channels, 4, 4), jnp.float32),
        # ConvTranspose2d weight: [in_ch=in_filters, out_ch=out_filters, 4, 4]
        "w_up": 0.1 * jax.random.normal(k_u, (in_filters, out_filters, 4, 4), jnp.float32),
        "gamma": 1.0 + 0.1 * jax.random.normal(k_g, (out_filters,), jnp.float32),
        "beta": 0.1 * jax.random.normal(k_b, (out_filters,), jnp.float32),
    }

    fwd = jax.jit(unet_block_forward)
    out = jax.block_until_ready(fwd(x, params))
    ref = jax.block_until_ready(reference_forward(x, params))

    assert out.shape == (N, input_channels + out_filters, H, W), out.shape
    max_err = float(jnp.max(jnp.abs(out - ref)))
    assert jnp.allclose(out, ref, atol=5e-2, rtol=5e-2), max_err
    print("KERNEL_OK")
</pallas_src>

<mosaic_0001>
module attributes {stable_mosaic.version = 11 : i64} {
  func.func @_fused_block_kernel(%arg0: i32, %arg1: memref<1x40x10x8xf32, #tpu.memory_space<vmem>>, %arg2: memref<128x16xbf16, #tpu.memory_space<vmem>>, %arg3: memref<144x32xbf16, #tpu.memory_space<vmem>>, %arg4: memref<64x32xf32, #tpu.memory_space<vmem>>, %arg5: memref<1x1x32xf32, #tpu.memory_space<vmem>>, %arg6: memref<1x1x32xf32, #tpu.memory_space<vmem>>, %arg7: memref<8x8x128xbf16, #tpu.memory_space<vmem>>, %arg8: memref<10x10x16xf32, #tpu.memory_space<vmem>>, %arg9: memref<8x8x144xbf16, #tpu.memory_space<vmem>>) attributes {dimension_semantics = [#tpu.dimension_semantics<parallel>], iteration_bounds = array<i64: 2>, scalar_prefetch = 0 : i64, scratch_operands = 3 : i64, tpu.core_type = #tpu.core_type<tc>, window_params = [{transform_indices = @transform_0, window_bounds = array<i64: 1, 40, 10, 8>}, {pipeline_mode = #tpu.pipeline_mode<synchronous>, transform_indices = @transform_1, window_bounds = array<i64: 128, 16>}, {pipeline_mode = #tpu.pipeline_mode<synchronous>, transform_indices = @transform_2, window_bounds = array<i64: 144, 32>}, {transform_indices = @transform_3, window_bounds = array<i64: 64, 32>}, {transform_indices = @transform_4, window_bounds = array<i64: 1, 1, 32>}, {transform_indices = @transform_5, window_bounds = array<i64: 1, 1, 32>}]} {
    %c0 = arith.constant 0 : index
    %c30 = arith.constant 30 : index
    %c0_0 = arith.constant 0 : index
    %c0_1 = arith.constant 0 : index
    %0 = vector.load %arg1[%c0, %c30, %c0_0, %c0_1] : memref<1x40x10x8xf32, #tpu.memory_space<vmem>>, vector<1x8x8x8xf32>
    %1 = vector.shape_cast %0 : vector<1x8x8x8xf32> to vector<8x8x8xf32>
    %cst = arith.constant 0.000000e+00 : f32
    %2 = vector.broadcast %cst : f32 to vector<8x8x8xf32>
    %3 = arith.cmpf ogt, %1, %2 : vector<8x8x8xf32>
    %cst_2 = arith.constant 2.000000e-01 : f32
    %4 = vector.broadcast %cst_2 : f32 to vector<8x8x8xf32>
    %5 = arith.mulf %4, %1 : vector<8x8x8xf32>
    %6 = arith.select %3, %1, %5 : vector<8x8x8xi1>, vector<8x8x8xf32>
    %7 = arith.truncf %6 : vector<8x8x8xf32> to vector<8x8x8xbf16>
    %c0_3 = arith.constant 0 : index
    %c0_4 = arith.constant 0 : index
    %c0_5 = arith.constant 0 : index
    %8 = vector.load %arg7[%c0_3, %c0_4, %c0_5] : memref<8x8x128xbf16, #tpu.memory_space<vmem>>, vector<8x8x8xbf16>
    tpu.vector_store %arg7[%c0_3, %c0_4, %c0_5], %7 {strides = array<i32>} : memref<8x8x128xbf16, #tpu.memory_space<vmem>>, vector<8x8x8xbf16>,
    %c0_6 = arith.constant 0 : index
    %c20 = arith.constant 20 : index
    %c1 = arith.constant 1 : index
    %c0_7 = arith.constant 0 : index
    %9 = vector.load %arg1[%c0_6, %c20, %c1, %c0_7] : memref<1x40x10x8xf32, #tpu.memory_space<vmem>>, vector<1x8x8x8xf32>
    %10 = vector.shape_cast %9 : vector<1x8x8x8xf32> to vector<8x8x8xf32>
    %cst_8 = arith.constant 0.000000e+00 : f32
    %11 = vector.broadcast %cst_8 : f32 to vector<8x8x8xf32>
    %12 = arith.cmpf ogt, %10, %11 : vector<8x8x8xf32>
    %cst_9 = arith.constant 2.000000e-01 : f32
    %13 = vector.broadcast %cst_9 : f32 to vector<8x8x8xf32>
    %14 = arith.mulf %13, %10 : vector<8x8x8xf32>
    %15 = arith.select %12, %10, %14 : vector<8x8x8xi1>, vector<8x8x8xf32>
    %16 = arith.truncf %15 : vector<8x8x8xf32> to vector<8x8x8xbf16>
    %c0_10 = arith.constant 0 : index
    %c0_11 = arith.constant 0 : index
    %c8 = arith.constant 8 : index
    %17 = vector.load %arg7[%c0_10, %c0_11, %c8] : memref<8x8x128xbf16, #tpu.memory_space<vmem>>, vector<8x8x8xbf16>
    tpu.vector_store %arg7[%c0_10, %c0_11, %c8], %16 {strides = array<i32>} : memref<8x8x128xbf16, #tpu.memory_space<vmem>>, vector<8x8x8xbf16>,
    %c0_12 = arith.constant 0 : index
    %c30_13 = arith.constant 30 : index
    %c1_14 = arith.constant 1 : index
    %c0_15 = arith.constant 0 : index
    %18 = vector.load %arg1[%c0_12, %c30_13, %c1_14, %c0_15] : memref<1x40x10x8xf32, #tpu.memory_space<vmem>>, vector<1x8x8x8xf32>
    %19 = vector.shape_cast %18 : vector<1x8x8x8xf32> to vector<8x8x8xf32>
    %cst_16 = arith.constant 0.000000e+00 : f32
    %20 = vector.broadcast %cst_16 : f32 to vector<8x8x8xf32>
    %21 = arith.cmpf ogt, %19, %20 : vector<8x8x8xf32>
    %cst_17 = arith.constant 2.000000e-01 : f32
    %22 = vector.broadcast %cst_17 : f32 to vector<8x8x8xf32>
    %23 = arith.mulf %22, %19 : vector<8x8x8xf32>
    %24 = arith.select %21, %19, %23 : vector<8x8x8xi1>, vector<8x8x8xf32>
    %25 = arith.truncf %24 : vector<8x8x8xf32> to vector<8x8x8xbf16>
    %c0_18 = arith.constant 0 : index
    %c0_19 = arith.constant 0 : index
    %c16 = arith.constant 16 : index
    %26 = vector.load %arg7[%c0_18, %c0_19, %c16] : memref<8x8x128xbf16, #tpu.memory_space<vmem>>, vector<8x8x8xbf16>
    tpu.vector_store %arg7[%c0_18, %c0_19, %c16], %25 {strides = array<i32>} : memref<8x8x128xbf16, #tpu.memory_space<vmem>>, vector<8x8x8xbf16>,
    %c0_20 = arith.constant 0 : index
    %c20_21 = arith.constant 20 : index
    %c2 = arith.constant 2 : index
    %c0_22 = arith.constant 0 : index
    %27 = vector.load %arg1[%c0_20, %c20_21, %c2, %c0_22] : memref<1x40x10x8xf32, #tpu.memory_space<vmem>>, vector<1x8x8x8xf32>
    %28 = vector.shape_cast %27 : vector<1x8x8x8xf32> to vector<8x8x8xf32>
    %cst_23 = arith.constant 0.000000e+00 : f32
    %29 = vector.broadcast %cst_23 : f32 to vector<8x8x8xf32>
    %30 = arith.cmpf ogt, %28, %29 : vector<8x8x8xf32>
    %cst_24 = arith.constant 2.000000e-01 : f32
    %31 = vector.broadcast %cst_24 : f32 to vector<8x8x8xf32>
    %32 = arith.mulf %31, %28 : vector<8x8x8xf32>
    %33 = arith.select %30, %28, %32 : vector<8x8x8xi1>, vector<8x8x8xf32>
    %34 = arith.truncf %33 : vector<8x8x8xf32> to vector<8x8x8xbf16>
    %c0_25 = arith.constant 0 : index
    %c0_26 = arith.constant 0 : index
    %c24 = arith.constant 24 : index
    %35 = vector.load %arg7[%c0_25, %c0_26, %c24] : memref<8x8x128xbf16, #tpu.memory_space<vmem>>, vector<8x8x8xbf16>
    tpu.vector_store %arg7[%c0_25, %c0_26, %c24], %34 {strides = array<i32>} : memref<8x8x128xbf16, #tpu.memory_space<vmem>>, vector<8x8x8xbf16>,
    %c0_27 = arith.constant 0 : index
    %c11 = arith.constant 11 : index
    %c0_28 = arith.constant 0 : index
    %c0_29 = arith.constant 0 : index
    %36 = vector.load %arg1[%c0_27, %c11, %c0_28, %c0_29] : memref<1x40x10x8xf32, #tpu.memory_space<vmem>>, vector<1x8x8x8xf32>
    %37 = vector.shape_cast %36 : vector<1x8x8x8xf32> to vector<8x8x8xf32>
    %cst_30 = arith.constant 0.000000e+00 : f32
    %38 = vector.broadcast %cst_30 : f32 to vector<8x8x8xf32>
    %39 = arith.cmpf ogt, %37, %38 : vector<8x8x8xf32>
    %cst_31 = arith.constant 2.000000e-01 : f32
    %40 = vector.broadcast %cst_31 : f32 to vector<8x8x8xf32>
    %41 = arith.mulf %40, %37 : vector<8x8x8xf32>
    %42 = arith.select %39, %37, %41 : vector<8x8x8xi1>, vector<8x8x8xf32>
    %43 = arith.truncf %42 : vector<8x8x8xf32> to vector<8x8x8xbf16>
    %c0_32 = arith.constant 0 : index
    %c0_33 = arith.constant 0 : index
    %c32 = arith.constant 32 : index
    %44 = vector.load %arg7[%c0_32, %c0_33, %c32] : memref<8x8x128xbf16, #tpu.memory_space<vmem>>, vector<8x8x8xbf16>
    tpu.vector_store %arg7[%c0_32, %c0_33, %c32], %43 {strides = array<i32>} : memref<8x8x128xbf16, #tpu.memory_space<vmem>>, vector<8x8x8xbf16>,
    %c0_34 = arith.constant 0 : index
    %c1_35 = arith.constant 1 : index
    %c1_36 = arith.constant 1 : index
    %c0_37 = arith.constant 0 : index
    %45 = vector.load %arg1[%c0_34, %c1_35, %c1_36, %c0_37] : memref<1x40x10x8xf32, #tpu.memory_space<vmem>>, vector<1x8x8x8xf32>
    %46 = vector.shape_cast %45 : vector<1x8x8x8xf32> to vector<8x8x8xf32>
    %cst_38 = arith.constant 0.000000e+00 : f32
    %47 = vector.broadcast %cst_38 : f32 to vector<8x8x8xf32>
    %48 = arith.cmpf ogt, %46, %47 : vector<8x8x8xf32>
    %cst_39 = arith.constant 2.000000e-01 : f32
    %49 = vector.broadcast %cst_39 : f32 to vector<8x8x8xf32>
    %50 = arith.mulf %49, %46 : vector<8x8x8xf32>
    %51 = arith.select %48, %46, %50 : vector<8x8x8xi1>, vector<8x8x8xf32>
    %52 = arith.truncf %51 : vector<8x8x8xf32> to vector<8x8x8xbf16>
    %c0_40 = arith.constant 0 : index
    %c0_41 = arith.constant 0 : index
    %c40 = arith.constant 40 : index
    %53 = vector.load %arg7[%c0_40, %c0_41, %c40] : memref<8x8x128xbf16, #tpu.memory_space<vmem>>, vector<8x8x8xbf16>
    tpu.vector_store %arg7[%c0_40, %c0_41, %c40], %52 {strides = array<i32>} : memref<8x8x128xbf16, #tpu.memory_space<vmem>>, vector<8x8x8xbf16>,
    %c0_42 = arith.constant 0 : index
    %c11_43 = arith.constant 11 : index
    %c1_44 = arith.constant 1 : index
    %c0_45 = arith.constant 0 : index
    %54 = vector.load %arg1[%c0_42, %c11_43, %c1_44, %c0_45] : memref<1x40x10x8xf32, #tpu.memory_space<vmem>>, vector<1x8x8x8xf32>
    %55 = vector.shape_cast %54 : vector<1x8x8x8xf32> to vector<8x8x8xf32>
    %cst_46 = arith.constant 0.000000e+00 : f32
    %56 = vector.broadcast %cst_46 : f32 to vector<8x8x8xf32>
    %57 = arith.cmpf ogt, %55, %56 : vector<8x8x8xf32>
    %cst_47 = arith.constant 2.000000e-01 : f32
    %58 = vector.broadcast %cst_47 : f32 to vector<8x8x8xf32>
    %59 = arith.mulf %58, %55 : vector<8x8x8xf32>
    %60 = arith.select %57, %55, %59 : vector<8x8x8xi1>, vector<8x8x8xf32>
    %61 = arith.truncf %60 : vector<8x8x8xf32> to vector<8x8x8xbf16>
    %c0_48 = arith.constant 0 : index
    %c0_49 = arith.constant 0 : index
    %c48 = arith.constant 48 : index
    %62 = vector.load %arg7[%c0_48, %c0_49, %c48] : memref<8x8x128xbf16, #tpu.memory_space<vmem>>, vector<8x8x8xbf16>
    tpu.vector_store %arg7[%c0_48, %c0_49, %c48], %61 {strides = array<i32>} : memref<8x8x128xbf16, #tpu.memory_space<vmem>>, vector<8x8x8xbf16>,
    %c0_50 = arith.constant 0 : index
    %c1_51 = arith.constant 1 : index
    %c2_52 = arith.constant 2 : index
    %c0_53 = arith.constant 0 : index
    %63 = vector.load %arg1[%c0_50, %c1_51, %c2_52, %c0_53] : memref<1x40x10x8xf32, #tpu.memory_space<vmem>>, vector<1x8x8x8xf32>
    %64 = vector.shape_cast %63 : vector<1x8x8x8xf32> to vector<8x8x8xf32>
    %cst_54 = arith.constant 0.000000e+00 : f32
    %65 = vector.broadcast %cst_54 : f32 to vector<8x8x8xf32>
    %66 = arith.cmpf ogt, %64, %65 : vector<8x8x8xf32>
    %cst_55 = arith.constant 2.000000e-01 : f32
    %67 = vector.broadcast %cst_55 : f32 to vector<8x8x8xf32>
    %68 = arith.mulf %67, %64 : vector<8x8x8xf32>
    %69 = arith.select %66, %64, %68 : vector<8x8x8xi1>, vector<8x8x8xf32>
    %70 = arith.truncf %69 : vector<8x8x8xf32> to vector<8x8x8xbf16>
    %c0_56 = arith.constant 0 : index
    %c0_57 = arith.constant 0 : index
    %c56 = arith.constant 56 : index
    %71 = vector.load %arg7[%c0_56, %c0_57, %c56] : memref<8x8x128xbf16, #tpu.memory_space<vmem>>, vector<8x8x8xbf16>
    tpu.vector_store %arg7[%c0_56, %c0_57, %c56], %70 {strides = array<i32>} : memref<8x8x128xbf16, #tpu.memory_space<vmem>>, vector<8x8x8xbf16>,
    %c0_58 = arith.constant 0 : index
    %c31 = arith.constant 31 : index
    %c0_59 = arith.constant 0 : index
    %c0_60 = arith.constant 0 : index
    %72 = vector.load %arg1[%c0_58, %c31, %c0_59, %c0_60] : memref<1x40x10x8xf32, #tpu.memory_space<vmem>>, vector<1x8x8x8xf32>
    %73 = vector.shape_cast %72 : vector<1x8x8x8xf32> to vector<8x8x8xf32>
    %cst_61 = arith.constant 0.000000e+00 : f32
    %74 = vector.broadcast %cst_61 : f32 to vector<8x8x8xf32>
    %75 = arith.cmpf ogt, %73, %74 : vector<8x8x8xf32>
    %cst_62 = arith.constant 2.000000e-01 : f32
    %76 = vector.broadcast %cst_62 : f32 to vector<8x8x8xf32>
    %77 = arith.mulf %76, %73 : vector<8x8x8xf32>
    %78 = arith.select %75, %73, %77 : vector<8x8x8xi1>, vector<8x8x8xf32>
    %79 = arith.truncf %78 : vector<8x8x8xf32> to vector<8x8x8xbf16>
    %c0_63 = arith.constant 0 : index
    %c0_64 = arith.constant 0 : index
    %c64 = arith.constant 64 : index
    %80 = vector.load %arg7[%c0_63, %c0_64, %c64] : memref<8x8x128xbf16, #tpu.memory_space<vmem>>, vector<8x8x8xbf16>
    tpu.vector_store %arg7[%c0_63, %c0_64, %c64], %79 {strides = array<i32>} : memref<8x8x128xbf16, #tpu.memory_space<vmem>>, vector<8x8x8xbf16>,
    %c0_65 = arith.constant 0 : index
    %c21 = arith.constant 21 : index
    %c1_66 = arith.constant 1 : index
    %c0_67 = arith.constant 0 : index
    %81 = vector.load %arg1[%c0_65, %c21, %c1_66, %c0_67] : memref<1x40x10x8xf32, #tpu.memory_space<vmem>>, vector<1x8x8x8xf32>
    %82 = vector.shape_cast %81 : vector<1x8x8x8xf32> to vector<8x8x8xf32>
    %cst_68 = arith.constant 0.000000e+00 : f32
    %83 = vector.broadcast %cst_68 : f32 to vector<8x8x8xf32>
    %84 = arith.cmpf ogt, %82, %83 : vector<8x8x8xf32>
    %cst_69 = arith.constant 2.000000e-01 : f32
    %85 = vector.broadcast %cst_69 : f32 to vector<8x8x8xf32>
    %86 = arith.mulf %85, %82 : vector<8x8x8xf32>
    %87 = arith.select %84, %82, %86 : vector<8x8x8xi1>, vector<8x8x8xf32>
    %88 = arith.truncf %87 : vector<8x8x8xf32> to vector<8x8x8xbf16>
    %c0_70 = arith.constant 0 : index
    %c0_71 = arith.constant 0 : index
    %c72 = arith.constant 72 : index
    %89 = vector.load %arg7[%c0_70, %c0_71, %c72] : memref<8x8x128xbf16, #tpu.memory_space<vmem>>, vector<8x8x8xbf16>
    tpu.vector_store %arg7[%c0_70, %c0_71, %c72], %88 {strides = array<i32>} : memref<8x8x128xbf16, #tpu.memory_space<vmem>>, vector<8x8x8xbf16>,
    %c0_72 = arith.constant 0 : index
    %c31_73 = arith.constant 31 : index
    %c1_74 = arith.constant 1 : index
    %c0_75 = arith.constant 0 : index
    %90 = vector.load %arg1[%c0_72, %c31_73, %c1_74, %c0_75] : memref<1x40x10x8xf32, #tpu.memory_space<vmem>>, vector<1x8x8x8xf32>
    %91 = vector.shape_cast %90 : vector<1x8x8x8xf32> to vector<8x8x8xf32>
    %cst_76 = arith.constant 0.000000e+00 : f32
    %92 = vector.broadcast %cst_76 : f32 to vector<8x8x8xf32>
    %93 = arith.cmpf ogt, %91, %92 : vector<8x8x8xf32>
    %cst_77 = arith.constant 2.000000e-01 : f32
    %94 = vector.broadcast %cst_77 : f32 to vector<8x8x8xf32>
    %95 = arith.mulf %94, %91 : vector<8x8x8xf32>
    %96 = arith.select %93, %91, %95 : vector<8x8x8xi1>, vector<8x8x8xf32>
    %97 = arith.truncf %96 : vector<8x8x8xf32> to vector<8x8x8xbf16>
    %c0_78 = arith.constant 0 : index
    %c0_79 = arith.constant 0 : index
    %c80 = arith.constant 80 : index
    %98 = vector.load %arg7[%c0_78, %c0_79, %c80] : memref<8x8x128xbf16, #tpu.memory_space<vmem>>, vector<8x8x8xbf16>
    tpu.vector_store %arg7[%c0_78, %c0_79, %c80], %97 {strides = array<i32>} : memref<8x8x128xbf16, #tpu.memory_space<vmem>>, vector<8x8x8xbf16>,
    %c0_80 = arith.constant 0 : index
    %c21_81 = arith.constant 21 : index
    %c2_82 = arith.constant 2 : index
    %c0_83 = arith.constant 0 : index
    %99 = vector.load %arg1[%c0_80, %c21_81, %c2_82, %c0_83] : memref<1x40x10x8xf32, #tpu.memory_space<vmem>>, vector<1x8x8x8xf32>
    %100 = vector.shape_cast %99 : vector<1x8x8x8xf32> to vector<8x8x8xf32>
    %cst_84 = arith.constant 0.000000e+00 : f32
    %101 = vector.broadcast %cst_84 : f32 to vector<8x8x8xf32>
    %102 = arith.cmpf ogt, %100, %101 : vector<8x8x8xf32>
    %cst_85 = arith.constant 2.000000e-01 : f32
    %103 = vector.broadcast %cst_85 : f32 to vector<8x8x8xf32>
    %104 = arith.mulf %103, %100 : vector<8x8x8xf32>
    %105 = arith.select %102, %100, %104 : vector<8x8x8xi1>, vector<8x8x8xf32>
    %106 = arith.truncf %105 : vector<8x8x8xf32> to vector<8x8x8xbf16>
    %c0_86 = arith.constant 0 : index
    %c0_87 = arith.constant 0 : index
    %c88 = arith.constant 88 : index
    %107 = vector.load %arg7[%c0_86, %c0_87, %c88] : memref<8x8x128xbf16, #tpu.memory_space<vmem>>, vector<8x8x8xbf16>
    tpu.vector_store %arg7[%c0_86, %c0_87, %c88], %106 {strides = array<i32>} : memref<8x8x128xbf16, #tpu.memory_space<vmem>>, vector<8x8x8xbf16>,
    %c0_88 = arith.constant 0 : index
    %c12 = arith.constant 12 : index
    %c0_89 = arith.constant 0 : index
    %c0_90 = arith.constant 0 : index
    %108 = vector.load %arg1[%c0_88, %c12, %c0_89, %c0_90] : memref<1x40x10x8xf32, #tpu.memory_space<vmem>>, vector<1x8x8x8xf32>
    %109 = vector.shape_cast %108 : vector<1x8x8x8xf32> to vector<8x8x8xf32>
    %cst_91 = arith.constant 0.000000e+00 : f32
    %110 = vector.broadcast %cst_91 : f32 to vector<8x8x8xf32>
    %111 = arith.cmpf ogt, %109, %110 : vector<8x8x8xf32>
    %cst_92 = arith.constant 2.000000e-01 : f32
    %112 = vector.broadcast %cst_92 : f32 to vector<8x8x8xf32>
    %113 = arith.mulf %112, %109 : vector<8x8x8xf32>
    %114 = arith.select %111, %109, %113 : vector<8x8x8xi1>, vector<8x8x8xf32>
    %115 = arith.truncf %114 : vector<8x8x8xf32> to vector<8x8x8xbf16>
    %c0_93 = arith.constant 0 : index
    %c0_94 = arith.constant 0 : index
    %c96 = arith.constant 96 : index
    %116 = vector.load %arg7[%c0_93, %c0_94, %c96] : memref<8x8x128xbf16, #tpu.memory_space<vmem>>, vector<8x8x8xbf16>
    tpu.vector_store %arg7[%c0_93, %c0_94, %c96], %115 {strides = array<i32>} : memref<8x8x128xbf16, #tpu.memory_space<vmem>>, vector<8x8x8xbf16>,
    %c0_95 = arith.constant 0 : index
    %c2_96 = arith.constant 2 : index
    %c1_97 = arith.constant 1 : index
    %c0_98 = arith.constant 0 : index
    %117 = vector.load %arg1[%c0_95, %c2_96, %c1_97, %c0_98] : memref<1x40x10x8xf32, #tpu.memory_space<vmem>>, vector<1x8x8x8xf32>
    %118 = vector.shape_cast %117 : vector<1x8x8x8xf32> to vector<8x8x8xf32>
    %cst_99 = arith.constant 0.000000e+00 : f32
    %119 = vector.broadcast %cst_99 : f32 to vector<8x8x8xf32>
    %120 = arith.cmpf ogt, %118, %119 : vector<8x8x8xf32>
    %cst_100 = arith.constant 2.000000e-01 : f32
    %121 = vector.broadcast %cst_100 : f32 to vector<8x8x8xf32>
    %122 = arith.mulf %121, %118 : vector<8x8x8xf32>
    %123 = arith.select %120, %118, %122 : vector<8x8x8xi1>, vector<8x8x8xf32>
    %124 = arith.truncf %123 : vector<8x8x8xf32> to vector<8x8x8xbf16>
    %c0_101 = arith.constant 0 : index
    %c0_102 = arith.constant 0 : index
    %c104 = arith.constant 104 : index
    %125 = vector.load %arg7[%c0_101, %c0_102, %c104] : memref<8x8x128xbf16, #tpu.memory_space<vmem>>, vector<8x8x8xbf16>
    tpu.vector_store %arg7[%c0_101, %c0_102, %c104], %124 {strides = array<i32>} : memref<8x8x128xbf16, #tpu.memory_space<vmem>>, vector<8x8x8xbf16>,
    %c0_103 = arith.constant 0 : index
    %c12_104 = arith.constant 12 : index
    %c1_105 = arith.constant 1 : index
    %c0_106 = arith.constant 0 : index
    %126 = vector.load %arg1[%c0_103, %c12_104, %c1_105, %c0_106] : memref<1x40x10x8xf32, #tpu.memory_space<vmem>>, vector<1x8x8x8xf32>
    %127 = vector.shape_cast %126 : vector<1x8x8x8xf32> to vector<8x8x8xf32>
    %cst_107 = arith.constant 0.000000e+00 : f32
    %128 = vector.broadcast %cst_107 : f32 to vector<8x8x8xf32>
    %129 = arith.cmpf ogt, %127, %128 : vector<8x8x8xf32>
    %cst_108 = arith.constant 2.000000e-01 : f32
    %130 = vector.broadcast %cst_108 : f32 to vector<8x8x8xf32>
    %131 = arith.mulf %130, %127 : vector<8x8x8xf32>
    %132 = arith.select %129, %127, %131 : vector<8x8x8xi1>, vector<8x8x8xf32>
    %133 = arith.truncf %132 : vector<8x8x8xf32> to vector<8x8x8xbf16>
    %c0_109 = arith.constant 0 : index
    %c0_110 = arith.constant 0 : index
    %c112 = arith.constant 112 : index
    %134 = vector.load %arg7[%c0_109, %c0_110, %c112] : memref<8x8x128xbf16, #tpu.memory_space<vmem>>, vector<8x8x8xbf16>
    tpu.vector_store %arg7[%c0_109, %c0_110, %c112], %133 {strides = array<i32>} : memref<8x8x128xbf16, #tpu.memory_space<vmem>>, vector<8x8x8xbf16>,
    %c0_111 = arith.constant 0 : index
    %c2_112 = arith.constant 2 : index
    %c2_113 = arith.constant 2 : index
    %c0_114 = arith.constant 0 : index
    %135 = vector.load %arg1[%c0_111, %c2_112, %c2_113, %c0_114] : memref<1x40x10x8xf32, #tpu.memory_space<vmem>>, vector<1x8x8x8xf32>
    %136 = vector.shape_cast %135 : vector<1x8x8x8xf32> to vector<8x8x8xf32>
    %cst_115 = arith.constant 0.000000e+00 : f32
    %137 = vector.broadcast %cst_115 : f32 to vector<8x8x8xf32>
    %138 = arith.cmpf ogt, %136, %137 : vector<8x8x8xf32>
    %cst_116 = arith.constant 2.000000e-01 : f32
    %139 = vector.broadcast %cst_116 : f32 to vector<8x8x8xf32>
    %140 = arith.mulf %139, %136 : vector<8x8x8xf32>
    %141 = arith.select %138, %136, %140 : vector<8x8x8xi1>, vector<8x8x8xf32>
    %142 = arith.truncf %141 : vector<8x8x8xf32> to vector<8x8x8xbf16>
    %c0_117 = arith.constant 0 : index
    %c0_118 = arith.constant 0 : index
    %c120 = arith.constant 120 : index
    %143 = vector.load %arg7[%c0_117, %c0_118, %c120] : memref<8x8x128xbf16, #tpu.memory_space<vmem>>, vector<8x8x8xbf16>
    tpu.vector_store %arg7[%c0_117, %c0_118, %c120], %142 {strides = array<i32>} : memref<8x8x128xbf16, #tpu.memory_space<vmem>>, vector<8x8x8xbf16>,
    %c0_119 = arith.constant 0 : index
    %c0_120 = arith.constant 0 : index
    %c0_121 = arith.constant 0 : index
    %144 = vector.load %arg7[%c0_119, %c0_120, %c0_121] : memref<8x8x128xbf16, #tpu.memory_space<vmem>>, vector<8x8x128xbf16>
    %145 = vector.shape_cast %144 : vector<8x8x128xbf16> to vector<64x128xbf16>
    %c0_122 = arith.constant 0 : index
    %c0_123 = arith.constant 0 : index
    %146 = vector.load %arg2[%c0_122, %c0_123] : memref<128x16xbf16, #tpu.memory_space<vmem>>, vector<128x16xbf16>
    %cst_124 = arith.constant dense<0.000000e+00> : vector<64x16xf32>
    %147 = tpu.matmul %145, %146, %cst_124 {dimension_numbers = #tpu.dot_dimension_numbers<[1], [0], [0], [1], [0, 0, 1, 1], [], []>} : vector<64x128xbf16>, vector<128x16xbf16>, vector<64x16xf32> -> vector<64x16xf32>
    %cst_125 = arith.constant 0.000000e+00 : f32
    %148 = vector.broadcast %cst_125 : f32 to vector<64x16xf32>
    %149 = arith.maximumf %147, %148 : vector<64x16xf32>
    %cst_126 = arith.constant 0.000000e+00 : f32
    %150 = vector.broadcast %cst_126 : f32 to vector<10x10x16xf32>
    %c0_127 = arith.constant 0 : index
    %c0_128 = arith.constant 0 : index
    %c0_129 = arith.constant 0 : index
    %151 = vector.load %arg8[%c0_127, %c0_128, %c0_129] : memref<10x10x16xf32, #tpu.memory_space<vmem>>, vector<10x10x16xf32>
    tpu.vector_store %arg8[%c0_127, %c0_128, %c0_129], %150 {strides = array<i32>} : memref<10x10x16xf32, #tpu.memory_space<vmem>>, vector<10x10x16xf32>,
    %152 = vector.shape_cast %149 : vector<64x16xf32> to vector<8x8x16xf32>
    %c1_130 = arith.constant 1 : index
    %c1_131 = arith.constant 1 : index
    %c0_132 = arith.constant 0 : index
    %153 = vector.load %arg8[%c1_130, %c1_131, %c0_132] : memref<10x10x16xf32, #tpu.memory_space<vmem>>, vector<8x8x16xf32>
    tpu.vector_store %arg8[%c1_130, %c1_131, %c0_132], %152 {strides = array<i32>} : memref<10x10x16xf32, #tpu.memory_space<vmem>>, vector<8x8x16xf32>,
    %c0_133 = arith.constant 0 : index
    %c0_134 = arith.constant 0 : index
    %c0_135 = arith.constant 0 : index
    %154 = vector.load %arg8[%c0_133, %c0_134, %c0_135] : memref<10x10x16xf32, #tpu.memory_space<vmem>>, vector<8x8x16xf32>
    %155 = arith.truncf %154 : vector<8x8x16xf32> to vector<8x8x16xbf16>
    %c0_136 = arith.constant 0 : index
    %c0_137 = arith.constant 0 : index
    %c0_138 = arith.constant 0 : index
    %156 = vector.load %arg9[%c0_136, %c0_137, %c0_138] : memref<8x8x144xbf16, #tpu.memory_space<vmem>>, vector<8x8x16xbf16>
    tpu.vector_store %arg9[%c0_136, %c0_137, %c0_138], %155 {strides = array<i32>} : memref<8x8x144xbf16, #tpu.memory_space<vmem>>, vector<8x8x16xbf16>,
    %c0_139 = arith.constant 0 : index
    %c1_140 = arith.constant 1 : index
    %c0_141 = arith.constant 0 : index
    %157 = vector.load %arg8[%c0_139, %c1_140, %c0_141] : memref<10x10x16xf32, #tpu.memory_space<vmem>>, vector<8x8x16xf32>
    %158 = arith.truncf %157 : vector<8x8x16xf32> to vector<8x8x16xbf16>
    %c0_142 = arith.constant 0 : index
    %c0_143 = arith.constant 0 : index
    %c16_144 = arith.constant 16 : index
    %159 = vector.load %arg9[%c0_142, %c0_143, %c16_144] : memref<8x8x144xbf16, #tpu.memory_space<vmem>>, vector<8x8x16xbf16>
    tpu.vector_store %arg9[%c0_142, %c0_143, %c16_144], %158 {strides = array<i32>} : memref<8x8x144xbf16, #tpu.memory_space<vmem>>, vector<8x8x16xbf16>,
    %c0_145 = arith.constant 0 : index
    %c2_146 = arith.constant 2 : index
    %c0_147 = arith.constant 0 : index
    %160 = vector.load %arg8[%c0_145, %c2_146, %c0_147] : memref<10x10x16xf32, #tpu.memory_space<vmem>>, vector<8x8x16xf32>
    %161 = arith.truncf %160 : vector<8x8x16xf32> to vector<8x8x16xbf16>
    %c0_148 = arith.constant 0 : index
    %c0_149 = arith.constant 0 : index
    %c32_150 = arith.constant 32 : index
    %162 = vector.load %arg9[%c0_148, %c0_149, %c32_150] : memref<8x8x144xbf16, #tpu.memory_space<vmem>>, vector<8x8x16xbf16>
    tpu.vector_store %arg9[%c0_148, %c0_149, %c32_150], %161 {strides = array<i32>} : memref<8x8x144xbf16, #tpu.memory_space<vmem>>, vector<8x8x16xbf16>,
    %c1_151 = arith.constant 1 : index
    %c0_152 = arith.constant 0 : index
    %c0_153 = arith.constant 0 : index
    %163 = vector.load %arg8[%c1_151, %c0_152, %c0_153] : memref<10x10x16xf32, #tpu.memory_space<vmem>>, vector<8x8x16xf32>
    %164 = arith.truncf %163 : vector<8x8x16xf32> to vector<8x8x16xbf16>
    %c0_154 = arith.constant 0 : index
    %c0_155 = arith.constant 0 : index
    %c48_156 = arith.constant 48 : index
    %165 = vector.load %arg9[%c0_154, %c0_155, %c48_156] : memref<8x8x144xbf16, #tpu.memory_space<vmem>>, vector<8x8x16xbf16>
    tpu.vector_store %arg9[%c0_154, %c0_155, %c48_156], %164 {strides = array<i32>} : memref<8x8x144xbf16, #tpu.memory_space<vmem>>, vector<8x8x16xbf16>,
    %c1_157 = arith.constant 1 : index
    %c1_158 = arith.constant 1 : index
    %c0_159 = arith.constant 0 : index
    %166 = vector.load %arg8[%c1_157, %c1_158, %c0_159] : memref<10x10x16xf32, #tpu.memory_space<vmem>>, vector<8x8x16xf32>
    %167 = arith.truncf %166 : vector<8x8x16xf32> to vector<8x8x16xbf16>
    %c0_160 = arith.constant 0 : index
    %c0_161 = arith.constant 0 : index
    %c64_162 = arith.constant 64 : index
    %168 = vector.load %arg9[%c0_160, %c0_161, %c64_162] : memref<8x8x144xbf16, #tpu.memory_space<vmem>>, vector<8x8x16xbf16>
    tpu.vector_store %arg9[%c0_160, %c0_161, %c64_162], %167 {strides = array<i32>} : memref<8x8x144xbf16, #tpu.memory_space<vmem>>, vector<8x8x16xbf16>,
    %c1_163 = arith.constant 1 : index
    %c2_164 = arith.constant 2 : index
    %c0_165 = arith.constant 0 : index
    %169 = vector.load %arg8[%c1_163, %c2_164, %c0_165] : memref<10x10x16xf32, #tpu.memory_space<vmem>>, vector<8x8x16xf32>
    %170 = arith.truncf %169 : vector<8x8x16xf32> to vector<8x8x16xbf16>
    %c0_166 = arith.constant 0 : index
    %c0_167 = arith.constant 0 : index
    %c80_168 = arith.constant 80 : index
    %171 = vector.load %arg9[%c0_166, %c0_167, %c80_168] : memref<8x8x144xbf16, #tpu.memory_space<vmem>>, vector<8x8x16xbf16>
    tpu.vector_store %arg9[%c0_166, %c0_167, %c80_168], %170 {strides = array<i32>} : memref<8x8x144xbf16, #tpu.memory_space<vmem>>, vector<8x8x16xbf16>,
    %c2_169 = arith.constant 2 : index
    %c0_170 = arith.constant 0 : index
    %c0_171 = arith.constant 0 : index
    %172 = vector.load %arg8[%c2_169, %c0_170, %c0_171] : memref<10x10x16xf32, #tpu.memory_space<vmem>>, vector<8x8x16xf32>
    %173 = arith.truncf %172 : vector<8x8x16xf32> to vector<8x8x16xbf16>
    %c0_172 = arith.constant 0 : index
    %c0_173 = arith.constant 0 : index
    %c96_174 = arith.constant 96 : index
    %174 = vector.load %arg9[%c0_172, %c0_173, %c96_174] : memref<8x8x144xbf16, #tpu.memory_space<vmem>>, vector<8x8x16xbf16>
    tpu.vector_store %arg9[%c0_172, %c0_173, %c96_174], %173 {strides = array<i32>} : memref<8x8x144xbf16, #tpu.memory_space<vmem>>, vector<8x8x16xbf16>,
    %c2_175 = arith.constant 2 : index
    %c1_176 = arith.constant 1 : index
    %c0_177 = arith.constant 0 : index
    %175 = vector.load %arg8[%c2_175, %c1_176, %c0_177] : memref<10x10x16xf32, #tpu.memory_space<vmem>>, vector<8x8x16xf32>
    %176 = arith.truncf %175 : vector<8x8x16xf32> to vector<8x8x16xbf16>
    %c0_178 = arith.constant 0 : index
    %c0_179 = arith.constant 0 : index
    %c112_180 = arith.constant 112 : index
    %177 = vector.load %arg9[%c0_178, %c0_179, %c112_180] : memref<8x8x144xbf16, #tpu.memory_space<vmem>>, vector<8x8x16xbf16>
    tpu.vector_store %arg9[%c0_178, %c0_179, %c112_180], %176 {strides = array<i32>} : memref<8x8x144xbf16, #tpu.memory_space<vmem>>, vector<8x8x16xbf16>,
    %c2_181 = arith.constant 2 : index
    %c2_182 = arith.constant 2 : index
    %c0_183 = arith.constant 0 : index
    %178 = vector.load %arg8[%c2_181, %c2_182, %c0_183] : memref<10x10x16xf32, #tpu.memory_space<vmem>>, vector<8x8x16xf32>
    %179 = arith.truncf %178 : vector<8x8x16xf32> to vector<8x8x16xbf16>
    %c0_184 = arith.constant 0 : index
    %c0_185 = arith.constant 0 : index
    %c128 = arith.constant 128 : index
    %180 = vector.load %arg9[%c0_184, %c0_185, %c128] : memref<8x8x144xbf16, #tpu.memory_space<vmem>>, vector<8x8x16xbf16>
    tpu.vector_store %arg9[%c0_184, %c0_185, %c128], %179 {strides = array<i32>} : memref<8x8x144xbf16, #tpu.memory_space<vmem>>, vector<8x8x16xbf16>,
    %c0_186 = arith.constant 0 : index
    %c0_187 = arith.constant 0 : index
    %c0_188 = arith.constant 0 : index
    %181 = vector.load %arg9[%c0_186, %c0_187, %c0_188] : memref<8x8x144xbf16, #tpu.memory_space<vmem>>, vector<8x8x144xbf16>
    %182 = vector.shape_cast %181 : vector<8x8x144xbf16> to vector<64x144xbf16>
    %c0_189 = arith.constant 0 : index
    %c0_190 = arith.constant 0 : index
    %183 = vector.load %arg3[%c0_189, %c0_190] : memref<144x32xbf16, #tpu.memory_space<vmem>>, vector<144x32xbf16>
    %cst_191 = arith.constant dense<0.000000e+00> : vector<64x32xf32>
    %184 = tpu.matmul %182, %183, %cst_191 {dimension_numbers = #tpu.dot_dimension_numbers<[1], [0], [0], [1], [0, 0, 1, 1], [], []>} : vector<64x144xbf16>, vector<144x32xbf16>, vector<64x32xf32> -> vector<64x32xf32>
    %c0_192 = arith.constant 0 : index
    %c0_193 = arith.constant 0 : index
    %185 = vector.load %arg4[%c0_192, %c0_193] : memref<64x32xf32, #tpu.memory_space<vmem>>, vector<64x32xf32>
    tpu.vector_store %arg4[%c0_192, %c0_193], %184 {strides = array<i32>} : memref<64x32xf32, #tpu.memory_space<vmem>>, vector<64x32xf32>,
    %cst_194 = arith.constant dense<0.000000e+00> : vector<32xf32>
    %186 = vector.multi_reduction <add>, %184, %cst_194 [0] : vector<64x32xf32> to vector<32xf32>
    %187 = vector.shape_cast %186 : vector<32xf32> to vector<1x32xf32>
    %cst_195 = arith.constant 1.562500e-02 : f32
    %188 = vector.broadcast %cst_195 : f32 to vector<1x32xf32>
    %189 = arith.mulf %187, %188 : vector<1x32xf32>
    %190 = vector.broadcast %189 : vector<1x32xf32> to vector<64x32xf32>
    %191 = arith.subf %184, %190 : vector<64x32xf32>
    %192 = vector.shape_cast %187 : vector<1x32xf32> to vector<1x1x32xf32>
    %c0_196 = arith.constant 0 : index
    %c0_197 = arith.constant 0 : index
    %c0_198 = arith.constant 0 : index
    %193 = vector.load %arg5[%c0_196, %c0_197, %c0_198] : memref<1x1x32xf32, #tpu.memory_space<vmem>>, vector<1x1x32xf32>
    tpu.vector_store %arg5[%c0_196, %c0_197, %c0_198], %192 {strides = array<i32>} : memref<1x1x32xf32, #tpu.memory_space<vmem>>, vector<1x1x32xf32>,
    %194 = arith.mulf %191, %191 : vector<64x32xf32>
    %cst_199 = arith.constant dense<0.000000e+00> : vector<32xf32>
    %195 = vector.multi_reduction <add>, %194, %cst_199 [0] : vector<64x32xf32> to vector<32xf32>
    %196 = vector.shape_cast %195 : vector<32xf32> to vector<1x32xf32>
    %197 = vector.shape_cast %196 : vector<1x32xf32> to vector<1x1x32xf32>
    %c0_200 = arith.constant 0 : index
    %c0_201 = arith.constant 0 : index
    %c0_202 = arith.constant 0 : index
    %198 = vector.load %arg6[%c0_200, %c0_201, %c0_202] : memref<1x1x32xf32, #tpu.memory_space<vmem>>, vector<1x1x32xf32>
    tpu.vector_store %arg6[%c0_200, %c0_201, %c0_202], %197 {strides = array<i32>} : memref<1x1x32xf32, #tpu.memory_space<vmem>>, vector<1x1x32xf32>,
    return
  }
  func.func @transform_0(%arg0: i32) -> (i32, i32, i32, i32) {
    %c0_i32 = arith.constant 0 : i32
    %c0_i32_0 = arith.constant 0 : i32
    %c0_i32_1 = arith.constant 0 : i32
    %c0_i32_2 = arith.constant 0 : i32
    return %arg0, %c0_i32, %c0_i32_0, %c0_i32_1 : i32, i32, i32, i32
  }
  func.func @transform_1(%arg0: i32) -> (i32, i32) {
    %c0_i32 = arith.constant 0 : i32
    %c0_i32_0 = arith.constant 0 : i32
    %c0_i32_1 = arith.constant 0 : i32
    return %c0_i32, %c0_i32_0 : i32, i32
  }
  func.func @transform_2(%arg0: i32) -> (i32, i32) {
    %c0_i32 = arith.constant 0 : i32
    %c0_i32_0 = arith.constant 0 : i32
    %c0_i32_1 = arith.constant 0 : i32
    return %c0_i32, %c0_i32_0 : i32, i32
  }
  func.func @transform_3(%arg0: i32) -> (i32, i32) {
    %c0_i32 = arith.constant 0 : i32
    %c0_i32_0 = arith.constant 0 : i32
    return %arg0, %c0_i32 : i32, i32
  }
  func.func @transform_4(%arg0: i32) -> (i32, i32, i32) {
    %c0_i32 = arith.constant 0 : i32
    %c0_i32_0 = arith.constant 0 : i32
    %c0_i32_1 = arith.constant 0 : i32
    return %arg0, %c0_i32, %c0_i32_0 : i32, i32, i32
  }
  func.func @transform_5(%arg0: i32) -> (i32, i32, i32) {
    %c0_i32 = arith.constant 0 : i32
    %c0_i32_0 = arith.constant 0 : i32
    %c0_i32_1 = arith.constant 0 : i32
    return %arg0, %c0_i32, %c0_i32_0 : i32, i32, i32
  }
}

module attributes {stable_mosaic.version = 11 : i64} {
  func.func @_bn_apply_kernel(%arg0: i32, %arg1: memref<16x256xf32, #tpu.memory_space<vmem>>, %arg2: memref<1x256xf32, #tpu.memory_space<vmem>>, %arg3: memref<1x256xf32, #tpu.memory_space<vmem>>, %arg4: memref<16x256xf32, #tpu.memory_space<vmem>>) attributes {dimension_semantics = [#tpu.dimension_semantics<parallel>], iteration_bounds = array<i64: 1>, scalar_prefetch = 0 : i64, scratch_operands = 0 : i64, tpu.core_type = #tpu.core_type<tc>, window_params = [{transform_indices = @transform_0, window_bounds = array<i64: 16, 256>}, {pipeline_mode = #tpu.pipeline_mode<synchronous>, transform_indices = @transform_1, window_bounds = array<i64: 1, 256>}, {pipeline_mode = #tpu.pipeline_mode<synchronous>, transform_indices = @transform_2, window_bounds = array<i64: 1, 256>}, {transform_indices = @transform_3, window_bounds = array<i64: 16, 256>}]} {
    %c0 = arith.constant 0 : index
    %c0_0 = arith.constant 0 : index
    %0 = vector.load %arg1[%c0, %c0_0] : memref<16x256xf32, #tpu.memory_space<vmem>>, vector<16x256xf32>
    %c0_1 = arith.constant 0 : index
    %c0_2 = arith.constant 0 : index
    %1 = vector.load %arg2[%c0_1, %c0_2] : memref<1x256xf32, #tpu.memory_space<vmem>>, vector<1x256xf32>
    %2 = vector.broadcast %1 : vector<1x256xf32> to vector<16x256xf32>
    %3 = arith.mulf %0, %2 : vector<16x256xf32>
    %c0_3 = arith.constant 0 : index
    %c0_4 = arith.constant 0 : index
    %4 = vector.load %arg3[%c0_3, %c0_4] : memref<1x256xf32, #tpu.memory_space<vmem>>, vector<1x256xf32>
    %5 = vector.broadcast %4 : vector<1x256xf32> to vector<16x256xf32>
    %6 = arith.addf %3, %5 : vector<16x256xf32>
    %c0_5 = arith.constant 0 : index
    %c0_6 = arith.constant 0 : index
    %7 = vector.load %arg4[%c0_5, %c0_6] : memref<16x256xf32, #tpu.memory_space<vmem>>, vector<16x256xf32>
    tpu.vector_store %arg4[%c0_5, %c0_6], %6 {strides = array<i32>} : memref<16x256xf32, #tpu.memory_space<vmem>>, vector<16x256xf32>,
    return
  }
  func.func @transform_0(%arg0: i32) -> (i32, i32) {
    %c0_i32 = arith.constant 0 : i32
    %c0_i32_0 = arith.constant 0 : i32
    return %arg0, %c0_i32 : i32, i32
  }
  func.func @transform_1(%arg0: i32) -> (i32, i32) {
    %c0_i32 = arith.constant 0 : i32
    %c0_i32_0 = arith.constant 0 : i32
    %c0_i32_1 = arith.constant 0 : i32
    return %c0_i32, %c0_i32_0 : i32, i32
  }
  func.func @transform_2(%arg0: i32) -> (i32, i32) {
    %c0_i32 = arith.constant 0 : i32
    %c0_i32_0 = arith.constant 0 : i32
    %c0_i32_1 = arith.constant 0 : i32
    return %c0_i32, %c0_i32_0 : i32, i32
  }
  func.func @transform_3(%arg0: i32) -> (i32, i32) {
    %c0_i32 = arith.constant 0 : i32
    %c0_i32_0 = arith.constant 0 : i32
    return %arg0, %c0_i32 : i32, i32
  }
}

</mosaic_0001>

<llo_original>
// kernel: tile.13
$region0: #{tile.13}
  #allocation0 [shape = 's32[1]{0}', space=sflag, size = 0x4, scoped, tag = 'scoped memory for tile.13']
  %s0 = inlined_call_operand.vmem [shape: f32[8], index: 0, kind: input, shape index: {}]
  %s1 = inlined_call_operand.vmem [shape: f32[32,8], index: 1, kind: output, shape index: {}]
  // Predicated region
  $region2: #{tile.13} parent=0 // pred_check
    _
  $region3: #{tile.13} parent=0 // pred_check_branch
    %3 = sbr.rel (0) target = $region5
  $region4: #{tile.13} parent=0 // pred_region
    _
  $region5: #{tile.13} parent=0 // pred_fallthru
    _
  %v4 = vld [vmem:[%s0] ss:$0 sm:$0xff]
  %5 = vst [vmem:[%s1] sm:$0xff] %v4
  %s6 = scalar_lea.vmem %s1, 8
  %7 = vst [vmem:[%s6] sm:$0xff] %v4
  %s8 = scalar_lea.vmem %s1, 16
  %9 = vst [vmem:[%s8] sm:$0xff] %v4
  %s10 = scalar_lea.vmem %s1, 24
  %11 = vst [vmem:[%s10] sm:$0xff] %v4

// kernel: tile.14
$region0: #{tile.14}
  %s0 = inlined_call_operand.vmem [shape: f32[32,8], index: 0, kind: input, shape index: {}]
  %s1 = inlined_call_operand.vmem [shape: f32[1,256], index: 1, kind: output, shape index: {}]
  $region1: #{tile.14} parent=0
    #allocation0 [shape = 'u8[8192]{0}', space=vmem, size = 0x2000, scoped, tag = 'scoped mem for output reshape']
    %s2 = smov 3
    %v3 = vld [vmem:[%s0] ss:$16 sm:%s2]
    %vm4 = vcmask 64512
    %5 = vst.msk [vmem:[#allocation0] ss:$8 sm:$0x3] %vm4, %v3
    %s6 = scalar_lea.vmem %s0, 15
    %s7 = smov 3
    %v8 = vld [vmem:[%s6] ss:$16 sm:%s7]
    %9 = vrot.lane.b32.xlu0 %v8, 120
    %v10 = vpop.permute.xlu0 %9
    %vm11 = vcmask 1048512
    %12 = vst.msk [vmem:[#allocation0] ss:$8 sm:$0x3] %vm11, %v10
    %s13 = scalar_lea.vmem %s0, 14
    %s14 = smov 3
    %v15 = vld [vmem:[%s13] ss:$16 sm:%s14]
    %16 = vrot.lane.b32.xlu0 %v15, 112
    %v17 = vpop.permute.xlu0 %16
    %vm18 = vcmask 982912
    %19 = vst.msk [vmem:[#allocation0] ss:$8 sm:$0x3] %vm18, %v17
    %s20 = scalar_lea.vmem %s0, 13
    %s21 = smov 3
    %v22 = vld [vmem:[%s20] ss:$16 sm:%s21]
    %23 = vrot.lane.b32.xlu0 %v22, 104
    %v24 = vpop.permute.xlu0 %23
    %vm25 = vcmask 917312
    %26 = vst.msk [vmem:[#allocation0] ss:$8 sm:$0x3] %vm25, %v24
    %s27 = scalar_lea.vmem %s0, 12
    %s28 = smov 3
    %v29 = vld [vmem:[%s27] ss:$16 sm:%s28]
    %30 = vrot.lane.b32.xlu0 %v29, 96
    %v31 = vpop.permute.xlu0 %30
    %vm32 = vcmask 851712
    %33 = vst.msk [vmem:[#allocation0] ss:$8 sm:$0x3] %vm32, %v31
    %s34 = scalar_lea.vmem %s0, 11
    %s35 = smov 3
    %v36 = vld [vmem:[%s34] ss:$16 sm:%s35]
    %37 = vrot.lane.b32.xlu0 %v36, 88
    %v38 = vpop.permute.xlu0 %37
    %vm39 = vcmask 786112
    %40 = vst.msk [vmem:[#allocation0] ss:$8 sm:$0x3] %vm39, %v38
    %s41 = scalar_lea.vmem %s0, 10
    %s42 = smov 3
    %v43 = vld [vmem:[%s41] ss:$16 sm:%s42]
    %44 = vrot.lane.b32.xlu0 %v43, 80
    %v45 = vpop.permute.xlu0 %44
    %vm46 = vcmask 720512
    %47 = vst.msk [vmem:[#allocation0] ss:$8 sm:$0x3] %vm46, %v45
    %s48 = scalar_lea.vmem %s0, 9
    %s49 = smov 3
    %v50 = vld [vmem:[%s48] ss:$16 sm:%s49]
    %51 = vrot.lane.b32.xlu0 %v50, 72
    %v52 = vpop.permute.xlu0 %51
    %vm53 = vcmask 654912
    %54 = vst.msk [vmem:[#allocation0] ss:$8 sm:$0x3] %vm53, %v52
    %s55 = scalar_lea.vmem %s0, 8
    %s56 = smov 3
    %v57 = vld [vmem:[%s55] ss:$16 sm:%s56]
    %58 = vrot.lane.b32.xlu0 %v57, 64
    %v59 = vpop.permute.xlu0 %58
    %vm60 = vcmask 589312
    %61 = vst.msk [vmem:[#allocation0] ss:$8 sm:$0x3] %vm60, %v59
    %s62 = scalar_lea.vmem %s0, 7
    %s63 = smov 3
    %v64 = vld [vmem:[%s62] ss:$16 sm:%s63]
    %65 = vrot.lane.b32.xlu0 %v64, 56
    %v66 = vpop.permute.xlu0 %65
    %vm67 = vcmask 523712
    %68 = vst.msk [vmem:[#allocation0] ss:$8 sm:$0x3] %vm67, %v66
    %s69 = scalar_lea.vmem %s0, 6
    %s70 = smov 3
    %v71 = vld [vmem:[%s69] ss:$16 sm:%s70]
    %72 = vrot.lane.b32.xlu0 %v71, 48
    %v73 = vpop.permute.xlu0 %72
    %vm74 = vcmask 458112
    %75 = vst.msk [vmem:[#allocation0] ss:$8 sm:$0x3] %vm74, %v73
    %s76 = scalar_lea.vmem %s0, 5
    %s77 = smov 3
    %v78 = vld [vmem:[%s76] ss:$16 sm:%s77]
    %79 = vrot.lane.b32.xlu0 %v78, 40
    %v80 = vpop.permute.xlu0 %79
    %vm81 = vcmask 392512
    %82 = vst.msk [vmem:[#allocation0] ss:$8 sm:$0x3] %vm81, %v80
    %s83 = scalar_lea.vmem %s0, 4
    %s84 = smov 3
    %v85 = vld [vmem:[%s83] ss:$16 sm:%s84]
    %86 = vrot.lane.b32.xlu0 %v85, 32
    %v87 = vpop.permute.xlu0 %86
    %vm88 = vcmask 326912
    %89 = vst.msk [vmem:[#allocation0] ss:$8 sm:$0x3] %vm88, %v87
    %s90 = scalar_lea.vmem %s0, 3
    %s91 = smov 3
    %v92 = vld [vmem:[%s90] ss:$16 sm:%s91]
    %93 = vrot.lane.b32.xlu0 %v92, 24
    %v94 = vpop.permute.xlu0 %93
    %vm95 = vcmask 261312
    %96 = vst.msk [vmem:[#allocation0] ss:$8 sm:$0x3] %vm95, %v94
    %s97 = scalar_lea.vmem %s0, 2
    %s98 = smov 3
    %v99 = vld [vmem:[%s97] ss:$16 sm:%s98]
    %100 = vrot.lane.b32.xlu0 %v99, 16
    %v101 = vpop.permute.xlu0 %100
    %vm102 = vcmask 195712
    %103 = vst.msk [vmem:[#allocation0] ss:$8 sm:$0x3] %vm102, %v101
    %s104 = scalar_lea.vmem %s0, 1
    %s105 = smov 3
    %v106 = vld [vmem:[%s104] ss:$16 sm:%s105]
    %107 = vrot.lane.b32.xlu0 %v106, 8
    %v108 = vpop.permute.xlu0 %107
    %vm109 = vcmask 130112
    %110 = vst.msk [vmem:[#allocation0] ss:$8 sm:$0x3] %vm109, %v108
    %s112 = sshllo.u32 0, 1
    %v114 = vld [vmem:[#allocation0] sm:%s112]
    %s115 = sshllo.u32 0, 1
    %116 = vst [vmem:[%s1] sm:%s115] %v114
    %s117 = scalar_lea.vmem [#allocation0], 8
    %v118 = vld [vmem:[%s117] sm:%s112]
    %s119 = sshllo.u32 0, 1
    %s120 = scalar_lea.vmem %s1, 1
    %121 = vst [vmem:[%s120] sm:%s119] %v118

// kernel: unet_block_forward.3
$region0: #{unet_block_forward.3}
  #allocation0 [shape = 'u32[]', space=smem, size = 0x4, offset = 0x4, fixed_abs, tag = 'smem constant byte address 0x4 - core index']
  #allocation1 [shape = 'u32[144,128]{1,0:T(1,128)}', space=vmem, size = 0x12000, scoped, tag = 'internal scratch']
  %s0 = inlined_call_operand.vmem [shape: f32[16,256], index: 0, kind: input, shape index: {}]
  %s1 = inlined_call_operand.vmem [shape: f32[1,256], index: 1, kind: input, shape index: {}]
  %s2 = inlined_call_operand.vmem [shape: f32[1,256], index: 2, kind: input, shape index: {}]
  %s3 = inlined_call_operand.vmem [shape: f32[16,256], index: 3, kind: output, shape index: {}]
  %s4 = sld [smem:[#allocation0]]
  $region22: #{unet_block_forward.3} parent=0
    _
  %s6 = ssub.s32 1, %s4
  %s7 = scalar_select 0, %s6, %s4
  // Predicated region
  $region2: #{unet_block_forward.3} parent=0 // pred_check
    _
  $region3: #{unet_block_forward.3} parent=0 // pred_check_branch
    %9 = sbr.rel (0) target = $region5
  $region4: #{unet_block_forward.3} parent=0 // pred_region
    _
  $region5: #{unet_block_forward.3} parent=0 // pred_fallthru
    _
  // Predicated region
  $region6: #{unet_block_forward.3} parent=0 // pred_check
    _
  $region7: #{unet_block_forward.3} parent=0 // pred_check_branch
    %11 = sbr.rel (0) target = $region9
  $region8: #{unet_block_forward.3} parent=0 // pred_region
    _
  $region9: #{unet_block_forward.3} parent=0 // pred_fallthru
    _
  // Predicated region
  $region10: #{unet_block_forward.3} parent=0 // pred_check
    _
  $region11: #{unet_block_forward.3} parent=0 // pred_check_branch
    %13 = sbr.rel (0) target = $region13
  $region12: #{unet_block_forward.3} parent=0 // pred_region
    _
  $region13: #{unet_block_forward.3} parent=0 // pred_fallthru
    _
  %v14 = vld [vmem:[%s0] sm:$0xff]
  %v15 = vld [vmem:[%s0 + $0x8] sm:$0xff]
  %v16 = vld [vmem:[%s0 + $0x10] sm:$0xff]
  %v17 = vld [vmem:[%s0 + $0x18] sm:$0xff]
  %v18 = vld [vmem:[%s1] sm:$0x3]
  %v20 = vlaneseq
  %v21 = vshrl.u32 %v20, 7
  %v22 = vsub.s32 0, %v21
  %v23 = vrot.slane %v18, %v22
  %v24 = vlaneseq
  %v25 = vshrl.u32 %v24, 7
  %v26 = vsub.s32 1, %v25
  %v27 = vrot.slane %v18, %v26
  %v30 = vmul.f32 %v14, %v23
  %v31 = vmul.f32 %v15, %v27
  %v32 = vmul.f32 %v16, %v23
  %v33 = vmul.f32 %v17, %v27
  %v34 = vld [vmem:[%s2] sm:$0x3]
  %v36 = vlaneseq
  %v37 = vshrl.u32 %v36, 7
  %v38 = vsub.s32 0, %v37
  %v39 = vrot.slane %v34, %v38
  %v40 = vlaneseq
  %v41 = vshrl.u32 %v40, 7
  %v42 = vsub.s32 1, %v41
  %v43 = vrot.slane %v34, %v42
  %v46 = vadd.f32 %v30, %v39
  %v47 = vadd.f32 %v31, %v43
  %v48 = vadd.f32 %v32, %v39
  %v49 = vadd.f32 %v33, %v43
  %50 = vst [vmem:[%s3] sm:$0xff] %v46
  %51 = vst [vmem:[%s3 + $0x8] sm:$0xff] %v47
  %52 = vst [vmem:[%s3 + $0x10] sm:$0xff] %v48
  %53 = vst [vmem:[%s3 + $0x18] sm:$0xff] %v49
  // Predicated region
  $region14: #{unet_block_forward.3} parent=0 // pred_check
    _
  $region15: #{unet_block_forward.3} parent=0 // pred_check_branch
    %55 = sbr.rel (0) target = $region17
  $region16: #{unet_block_forward.3} parent=0 // pred_region
    _
  $region17: #{unet_block_forward.3} parent=0 // pred_fallthru
    _
  // Predicated region
  $region18: #{unet_block_forward.3} parent=0 // pred_check
    _
  $region19: #{unet_block_forward.3} parent=0 // pred_check_branch
    %57 = sbr.rel (0) target = $region21
  $region20: #{unet_block_forward.3} parent=0 // pred_region
    _
  $region21: #{unet_block_forward.3} parent=0 // pred_fallthru
    _

// kernel: unet_block_forward.2
$region0: #{unet_block_forward.2}
  #allocation0 [shape = 'u32[]', space=smem, size = 0x4, offset = 0x4, fixed_abs, tag = 'smem constant byte address 0x4 - core index']
  #allocation1 [shape = 'u32[144,128]{1,0:T(1,128)}', space=vmem, size = 0x12000, scoped, tag = 'internal scratch']
  #allocation2 [shape = 'bf16[8,8,128]{2,1,0:T(8,128)(2,1)}', space=vmem, size = 0x4000, scoped, tag = 'scratch operand']
  #allocation3 [shape = 'f32[10,10,16]{2,1,0:T(8,128)}', space=vmem, size = 0x14000, scoped, tag = 'scratch operand']
  #allocation4 [shape = 'bf16[8,8,144]{2,1,0:T(8,128)(2,1)}', space=vmem, size = 0x8000, scoped, tag = 'scratch operand']
  %s0 = inlined_call_operand.vmem [shape: f32[2,40,10,8], index: 0, kind: input, shape index: {}]
  %s1 = inlined_call_operand.vmem [shape: bf16[128,16], index: 1, kind: input, shape index: {}]
  %s2 = inlined_call_operand.vmem [shape: bf16[144,32], index: 2, kind: input, shape index: {}]
  %s3 = inlined_call_operand.vmem [shape: f32[128,32], index: 3, kind: output, shape index: {0}]
  %s4 = inlined_call_operand.vmem [shape: f32[2,1,32], index: 4, kind: output, shape index: {1}]
  %s5 = inlined_call_operand.vmem [shape: f32[2,1,32], index: 5, kind: output, shape index: {2}]
  %6 = xla_tuple %s3, %s4, %s5
  %s7 = sld [smem:[#allocation0]]
  $region61: #{unet_block_forward.2} parent=0
    _
  %s9 = ssub.s32 1, %s7
  %s10 = scalar_select 0, %s9, %s7
  loop: start=0, step=1, limit=4
  $region2: #{unet_block_forward.2} parent=0 // loop_pre_header
    _
  $region3: #{unet_block_forward.2} parent=0 // loop_header
    %s12 = sphi 0, %s16
    %p13 = scmp.ge.s32.totalorder %s12, 4
    %s22 = sphi 0, %s24
    %s25 = sphi 0, %s22
    %s26 = sphi 0, %s25
    %s42 = sphi 0, %s26
    %s46 = sphi 0, %s46
    %s48 = sphi 0, %s46
    %s49 = sphi 0, %s48
    %s63 = sphi 0, %s49
    %s67 = sphi 0, %s67
    %s69 = sphi 0, %s67
    %s70 = sphi 0, %s69
    %s84 = sphi 0, %s70
    %s90 = sphi 0, %s92
    %s93 = sphi 0, %s90
    %s94 = sphi 0, %s93
    %s110 = sphi 0, %s94
    %s116 = sphi 0, %s118
    %s119 = sphi 0, %s116
    %s120 = sphi 0, %s119
    %s136 = sphi 0, %s120
    %s142 = sphi 0, %s144
    %s145 = sphi 0, %s142
    %s146 = sphi 0, %s145
    %s162 = sphi 0, %s146
  $region4: #{unet_block_forward.2} parent=0 // loop_header_branch
    %15 = sbr.rel (%p13) target = $region8
  $region5: #{unet_block_forward.2} parent=0 // loop_body
    %s17 = ssub.s32 %s12, 1
    %s18 = ssub.s32 %s12, 2
    %s19 = sadd.s32 %s12, 1
    %s20 = ssub.s32 %s12, %s19
    %p21 = scmp.eq.s32.totalorder %s20, 0
    %s23 = sadd.s32 %s22, 1
    %s24 = scalar_select %p21, %s22, %s23
    %p27 = pneg %p21
    %p28 = scmp.eq.s32.totalorder %s12, 1
    %p29 = por %p27, %p28
    %p30 = scmp.ne.s32.totalorder %s22, %s25
    %p31 = scmp.eq.s32.totalorder %s12, 0
    %p32 = por %p30, %p31
    %p33 = scmp.ne.s32.totalorder %s22, %s25
    %p34 = scmp.eq.s32.totalorder %s17, 1
    %p35 = por %p33, %p34
    %p36 = scmp.ne.s32.totalorder %s25, %s26
    %p37 = scmp.eq.s32.totalorder %s17, 0
    %p38 = por %p36, %p37
    %p39 = scmp.ne.s32.totalorder %s25, %s26
    %p40 = scmp.eq.s32.totalorder %s18, 1
    %p41 = por %p39, %p40
    %p43 = scmp.ne.s32.totalorder %s26, %s42
    %p44 = scmp.eq.s32.totalorder %s18, 0
    %p45 = por %p43, %p44
    %s47 = sadd.s32 %s46, 1
    %p50 = scmp.eq.s32.totalorder %s12, 1
    %p51 = scmp.ne.s32.totalorder %s46, %s48
    %p52 = scmp.eq.s32.totalorder %s12, 0
    %p53 = por %p51, %p52
    %p54 = scmp.ne.s32.totalorder %s46, %s48
    %p55 = scmp.eq.s32.totalorder %s17, 1
    %p56 = por %p54, %p55
    %p57 = scmp.ne.s32.totalorder %s48, %s49
    %p58 = scmp.eq.s32.totalorder %s17, 0
    %p59 = por %p57, %p58
    %p60 = scmp.ne.s32.totalorder %s48, %s49
    %p61 = scmp.eq.s32.totalorder %s18, 1
    %p62 = por %p60, %p61
    %p64 = scmp.ne.s32.totalorder %s49, %s63
    %p65 = scmp.eq.s32.totalorder %s18, 0
    %p66 = por %p64, %p65
    %s68 = sadd.s32 %s67, 1
    %p71 = scmp.eq.s32.totalorder %s12, 1
    %p72 = scmp.ne.s32.totalorder %s67, %s69
    %p73 = scmp.eq.s32.totalorder %s12, 0
    %p74 = por %p72, %p73
    %p75 = scmp.ne.s32.totalorder %s67, %s69
    %p76 = scmp.eq.s32.totalorder %s17, 1
    %p77 = por %p75, %p76
    %p78 = scmp.ne.s32.totalorder %s69, %s70
    %p79 = scmp.eq.s32.totalorder %s17, 0
    %p80 = por %p78, %p79
    %p81 = scmp.ne.s32.totalorder %s69, %s70
    %p82 = scmp.eq.s32.totalorder %s18, 1
    %p83 = por %p81, %p82
    %p85 = scmp.ne.s32.totalorder %s70, %s84
    %p86 = scmp.eq.s32.totalorder %s18, 0
    %p87 = por %p85, %p86
    %s88 = ssub.s32 %s12, %s19
    %p89 = scmp.eq.s32.totalorder %s88, 0
    %s91 = sadd.s32 %s90, 1
    %s92 = scalar_select %p89, %s90, %s91
    %p95 = pneg %p89
    %p96 = scmp.eq.s32.totalorder %s12, 1
    %p97 = por %p95, %p96
    %p98 = scmp.ne.s32.totalorder %s90, %s93
    %p99 = scmp.eq.s32.totalorder %s12, 0
    %p100 = por %p98, %p99
    %p101 = scmp.ne.s32.totalorder %s90, %s93
    %p102 = scmp.eq.s32.totalorder %s17, 1
    %p103 = por %p101, %p102
    %p104 = scmp.ne.s32.totalorder %s93, %s94
    %p105 = scmp.eq.s32.totalorder %s17, 0
    %p106 = por %p104, %p105
    %p107 = scmp.ne.s32.totalorder %s93, %s94
    %p108 = scmp.eq.s32.totalorder %s18, 1
    %p109 = por %p107, %p108
    %p111 = scmp.ne.s32.totalorder %s94, %s110
    %p112 = scmp.eq.s32.totalorder %s18, 0
    %p113 = por %p111, %p112
    %s114 = ssub.s32 %s12, %s19
    %p115 = scmp.eq.s32.totalorder %s114, 0
    %s117 = sadd.s32 %s116, 1
    %s118 = scalar_select %p115, %s116, %s117
    %p121 = pneg %p115
    %p122 = scmp.eq.s32.totalorder %s12, 1
    %p123 = por %p121, %p122
    %p124 = scmp.ne.s32.totalorder %s116, %s119
    %p125 = scmp.eq.s32.totalorder %s12, 0
    %p126 = por %p124, %p125
    %p127 = scmp.ne.s32.totalorder %s116, %s119
    %p128 = scmp.eq.s32.totalorder %s17, 1
    %p129 = por %p127, %p128
    %p130 = scmp.ne.s32.totalorder %s119, %s120
    %p131 = scmp.eq.s32.totalorder %s17, 0
    %p132 = por %p130, %p131
    %p133 = scmp.ne.s32.totalorder %s119, %s120
    %p134 = scmp.eq.s32.totalorder %s18, 1
    %p135 = por %p133, %p134
    %p137 = scmp.ne.s32.totalorder %s120, %s136
    %p138 = scmp.eq.s32.totalorder %s18, 0
    %p139 = por %p137, %p138
    %s140 = ssub.s32 %s12, %s19
    %p141 = scmp.eq.s32.totalorder %s140, 0
    %s143 = sadd.s32 %s142, 1
    %s144 = scalar_select %p141, %s142, %s143
    %p147 = pneg %p141
    %p148 = scmp.eq.s32.totalorder %s12, 1
    %p149 = por %p147, %p148
    %p150 = scmp.ne.s32.totalorder %s142, %s145
    %p151 = scmp.eq.s32.totalorder %s12, 0
    %p152 = por %p150, %p151
    %p153 = scmp.ne.s32.totalorder %s142, %s145
    %p154 = scmp.eq.s32.totalorder %s17, 1
    %p155 = por %p153, %p154
    %p156 = scmp.ne.s32.totalorder %s145, %s146
    %p157 = scmp.eq.s32.totalorder %s17, 0
    %p158 = por %p156, %p157
    %p159 = scmp.ne.s32.totalorder %s145, %s146
    %p160 = scmp.eq.s32.totalorder %s18, 1
    %p161 = por %p159, %p160
    %p163 = scmp.ne.s32.totalorder %s146, %s162
    %p164 = scmp.eq.s32.totalorder %s18, 0
    %p165 = por %p163, %p164
    %p166 = scmp.le.s32.totalorder 1, %s12
    %p167 = scmp.lt.s32.totalorder %s12, 3
    %p168 = pnand %p166, %p167
    %p169 = pneg %p168
    // Predicated region
    $region9: #{unet_block_forward.2} parent=5 // pred_check
      _
    $region10: #{unet_block_forward.2} parent=5 // pred_check_branch
      %171 = sbr.rel (%p168) target = $region12
    $region11: #{unet_block_forward.2} parent=5 // pred_region
      %s172 = ssub.s32 %s12, 1
      // Predicated region
      $region13: #{unet_block_forward.2} parent=11 // pred_check
        %p173 = pneg %p59
      $region14: #{unet_block_forward.2} parent=11 // pred_check_branch
        %175 = sbr.rel (%p173) target = $region16
      $region15: #{unet_block_forward.2} parent=11 // pred_region
        _
      $region16: #{unet_block_forward.2} parent=11 // pred_fallthru
        _
      // Predicated region
      $region17: #{unet_block_forward.2} parent=11 // pred_check
        %p176 = pneg %p80
      $region18: #{unet_block_forward.2} parent=11 // pred_check_branch
        %178 = sbr.rel (%p176) target = $region20
      $region19: #{unet_block_forward.2} parent=11 // pred_region
        _
      $region20: #{unet_block_forward.2} parent=11 // pred_fallthru
        _
    $region12: #{unet_block_forward.2} parent=5 // pred_fallthru
      _
    %p179 = scmp.lt.s32.totalorder %s12, 2
    // Predicated region
    $region21: #{unet_block_forward.2} parent=5 // pred_check
      %p180 = pneg %p179
    $region22: #{unet_block_forward.2} parent=5 // pred_check_branch
      %182 = sbr.rel (%p180) target = $region24
    $region23: #{unet_block_forward.2} parent=5 // pred_region
      // Predicated region
      $region25: #{unet_block_forward.2} parent=23 // pred_check
        %p183 = pneg %p32
      $region26: #{unet_block_forward.2} parent=23 // pred_check_branch
        %185 = sbr.rel (%p183) target = $region28
      $region27: #{unet_block_forward.2} parent=23 // pred_region
        %p186 = scmp.lt.s32.totalorder %s12, 1
        %s187 = scalar_select %p186, %s12, 1
        %s188 = smul.addr %s187, 80
        %s189 = smul.addr %s188, 8
        %s190 = scalar_lea.vmem %s0, %s189
      $region28: #{unet_block_forward.2} parent=23 // pred_fallthru
        _
    $region24: #{unet_block_forward.2} parent=5 // pred_fallthru
      _
    %p191 = scmp.le.s32.totalorder 1, %s12
    %p192 = scmp.lt.s32.totalorder %s12, 3
    %p193 = pnand %p191, %p192
    %p194 = pneg %p193
    // Predicated region
    $region29: #{unet_block_forward.2} parent=5 // pred_check
      _
    $region30: #{unet_block_forward.2} parent=5 // pred_check_branch
      %196 = sbr.rel (%p193) target = $region32
    $region31: #{unet_block_forward.2} parent=5 // pred_region
      %s197 = ssub.s32 %s12, 1
      %p198 = scmp.lt.s32.totalorder %s17, 1
      %s199 = scalar_select %p198, %s17, 1
      %s200 = smul.addr %s199, 80
      %s201 = smul.addr %s200, 8
      %s202 = scalar_lea.vmem %s0, %s201
      %p203 = pneg %p38
      %p204 = pneg %p35
      %p205 = pneg %p59
      %p206 = pneg %p56
      %p207 = pneg %p80
      %p208 = pneg %p77
      %p209 = pneg %p106
      %p210 = pneg %p103
      %s211 = smul.u32 8, %s17
      %p212 = scmp.lt.s32.totalorder %s211, 15
      %s213 = scalar_select %p212, %s211, 15
      %s214 = smul.addr %s213, 8
      %s215 = scalar_lea.vmem %s3, %s214
      %p216 = pneg %p132
      %p217 = pneg %p129
      %p218 = scmp.lt.s32.totalorder %s17, 1
      %s219 = scalar_select %p218, %s17, 1
      %s220 = scalar_lea.vmem %s4, %s219
      %p221 = pneg %p158
      %p222 = pneg %p155
      %p223 = scmp.lt.s32.totalorder %s17, 1
      %s224 = scalar_select %p223, %s17, 1
      %s225 = scalar_lea.vmem %s5, %s224
      %p226 = scmp.lt.s32.totalorder %s17, 1
      %s227 = scalar_select %p226, %s17, 1
      %s228 = smul.addr %s227, 80
      %s229 = smul.addr %s228, 8
      %s230 = scalar_lea.vmem %s0, %s229
      %s231 = smul.u32 8, %s17
      %p232 = scmp.lt.s32.totalorder %s231, 15
      %s233 = scalar_select %p232, %s231, 15
      %s234 = smul.addr %s233, 8
      %s235 = scalar_lea.vmem %s3, %s234
      %s236 = smul.u32 8, %s17
      %p237 = scmp.lt.s32.totalorder %s17, 1
      %s238 = scalar_select %p237, %s17, 1
      %s239 = scalar_lea.vmem %s4, %s238
      %p240 = scmp.lt.s32.totalorder %s17, 1
      %s241 = scalar_select %p240, %s17, 1
      %s242 = scalar_lea.vmem %s5, %s241
      %s244 = scalar_lea.vmem %s230, 480
      %v245 = vld [vmem:[%s244] sm:$0xff]
      %v246 = vld [vmem:[%s244 + $0x10] sm:$0xff]
      %v247 = vld [vmem:[%s244 + $0x20] sm:$0xff]
      %v248 = vld [vmem:[%s244 + $0x30] sm:$0xff]
      %v249 = vld [vmem:[%s244 + $0x40] sm:$0xff]
      %v250 = vld [vmem:[%s244 + $0x50] sm:$0xff]
      %v251 = vld [vmem:[%s244 + $0x60] sm:$0xff]
      %v252 = vld [vmem:[%s244 + $0x70] sm:$0xff]
      %vm253 = vcmp.gt.f32.partialorder %v245, 0.0
      %vm254 = vcmp.gt.f32.partialorder %v246, 0.0
      %vm255 = vcmp.gt.f32.partialorder %v247, 0.0
      %vm256 = vcmp.gt.f32.partialorder %v248, 0.0
      %vm257 = vcmp.gt.f32.partialorder %v249, 0.0
      %vm258 = vcmp.gt.f32.partialorder %v250, 0.0
      %vm259 = vcmp.gt.f32.partialorder %v251, 0.0
      %vm260 = vcmp.gt.f32.partialorder %v252, 0.0
      %v261 = vmul.f32 %v245, 0.2
      %v262 = vmul.f32 %v246, 0.2
      %v263 = vmul.f32 %v247, 0.2
      %v264 = vmul.f32 %v248, 0.2
      %v265 = vmul.f32 %v249, 0.2
      %v266 = vmul.f32 %v250, 0.2
      %v267 = vmul.f32 %v251, 0.2
      %v268 = vmul.f32 %v252, 0.2
      %v269 = vsel %vm253, %v245, %v261
      %v270 = vsel %vm254, %v246, %v262
      %v271 = vsel %vm255, %v247, %v263
      %v272 = vsel %vm256, %v248, %v264
      %v273 = vsel %vm257, %v249, %v265
      %v274 = vsel %vm258, %v250, %v266
      %v275 = vsel %vm259, %v251, %v267
      %v276 = vsel %vm260, %v252, %v268
      %v277 = vpack.c.bf16 %v269, %v269
      %v278 = vpack.c.bf16 %v270, %v270
      %v279 = vpack.c.bf16 %v271, %v271
      %v280 = vpack.c.bf16 %v272, %v272
      %v281 = vpack.c.bf16 %v273, %v273
      %v282 = vpack.c.bf16 %v274, %v274
      %v283 = vpack.c.bf16 %v275, %v275
      %v284 = vpack.c.bf16 %v276, %v276
      %vm285 = vcmask 60416
      %286 = vst.msk [vmem:[#allocation2] sm:$0xf] %vm285, %v277
      %287 = vst.msk [vmem:[#allocation2 + $0x4] sm:$0xf] %vm285, %v278
      %288 = vst.msk [vmem:[#allocation2 + $0x8] sm:$0xf] %vm285, %v279
      %289 = vst.msk [vmem:[#allocation2 + $0xc] sm:$0xf] %vm285, %v280
      %290 = vst.msk [vmem:[#allocation2 + $0x10] sm:$0xf] %vm285, %v281
      %291 = vst.msk [vmem:[#allocation2 + $0x14] sm:$0xf] %vm285, %v282
      %292 = vst.msk [vmem:[#allocation2 + $0x18] sm:$0xf] %vm285, %v283
      %293 = vst.msk [vmem:[#allocation2 + $0x1c] sm:$0xf] %vm285, %v284
      %s294 = scalar_lea.vmem %s230, 320
      %v295 = vld [vmem:[%s294 + $0x1] sm:$0xff]
      %v296 = vld [vmem:[%s294 + $0x11] sm:$0xff]
      %v297 = vld [vmem:[%s294 + $0x21] sm:$0xff]
      %v298 = vld [vmem:[%s294 + $0x31] sm:$0xff]
      %v299 = vld [vmem:[%s294 + $0x41] sm:$0xff]
      %v300 = vld [vmem:[%s294 + $0x51] sm:$0xff]
      %v301 = vld [vmem:[%s294 + $0x61] sm:$0xff]
      %v302 = vld [vmem:[%s294 + $0x71] sm:$0xff]
      %vm303 = vcmp.gt.f32.partialorder %v295, 0.0
      %vm304 = vcmp.gt.f32.partialorder %v296, 0.0
      %vm305 = vcmp.gt.f32.partialorder %v297, 0.0
      %vm306 = vcmp.gt.f32.partialorder %v298, 0.0
      %vm307 = vcmp.gt.f32.partialorder %v299, 0.0
      %vm308 = vcmp.gt.f32.partialorder %v300, 0.0
      %vm309 = vcmp.gt.f32.partialorder %v301, 0.0
      %vm310 = vcmp.gt.f32.partialorder %v302, 0.0
      %v311 = vmul.f32 %v295, 0.2
      %v312 = vmul.f32 %v296, 0.2
      %v313 = vmul.f32 %v297, 0.2
      %v314 = vmul.f32 %v298, 0.2
      %v315 = vmul.f32 %v299, 0.2
      %v316 = vmul.f32 %v300, 0.2
      %v317 = vmul.f32 %v301, 0.2
      %v318 = vmul.f32 %v302, 0.2
      %v319 = vsel %vm303, %v295, %v311
      %v320 = vsel %vm304, %v296, %v312
      %v321 = vsel %vm305, %v297, %v313
      %v322 = vsel %vm306, %v298, %v314
      %v323 = vsel %vm307, %v299, %v315
      %v324 = vsel %vm308, %v300, %v316
      %v325 = vsel %vm309, %v301, %v317
      %v326 = vsel %vm310, %v302, %v318
      %v327 = vpack.c.bf16 %v319, %v319
      %v328 = vpack.c.bf16 %v320, %v320
      %v329 = vpack.c.bf16 %v321, %v321
      %v330 = vpack.c.bf16 %v322, %v322
      %v331 = vpack.c.bf16 %v323, %v323
      %v332 = vpack.c.bf16 %v324, %v324
      %v333 = vpack.c.bf16 %v325, %v325
      %v334 = vpack.c.bf16 %v326, %v326
      %v343 = vunpack.c.l.b16 %v327
      %v344 = vunpack.c.l.b16 %v328
      %v345 = vunpack.c.l.b16 %v329
      %v346 = vunpack.c.l.b16 %v330
      %v347 = vunpack.c.l.b16 %v331
      %v348 = vunpack.c.l.b16 %v332
      %v349 = vunpack.c.l.b16 %v333
      %v350 = vunpack.c.l.b16 %v334
      %v351 = vpack.c.b16 %v343, %v343
      %v352 = vpack.c.b16 %v344, %v344
      %v353 = vpack.c.b16 %v345, %v345
      %v354 = vpack.c.b16 %v346, %v346
      %v355 = vpack.c.b16 %v347, %v347
      %v356 = vpack.c.b16 %v348, %v348
      %v357 = vpack.c.b16 %v349, %v349
      %v358 = vpack.c.b16 %v350, %v350
      %359 = vrot.lane.b32.xlu0 %v351, 8
      %v360 = vpop.permute.xlu0 %359
      %361 = vrot.lane.b32.xlu0 %v352, 8
      %v362 = vpop.permute.xlu0 %361
      %363 = vrot.lane.b32.xlu0 %v353, 8
      %v364 = vpop.permute.xlu0 %363
      %365 = vrot.lane.b32.xlu0 %v354, 8
      %v366 = vpop.permute.xlu0 %365
      %367 = vrot.lane.b32.xlu0 %v355, 8
      %v368 = vpop.permute.xlu0 %367
      %369 = vrot.lane.b32.xlu0 %v356, 8
      %v370 = vpop.permute.xlu0 %369
      %371 = vrot.lane.b32.xlu0 %v357, 8
      %v372 = vpop.permute.xlu0 %371
      %373 = vrot.lane.b32.xlu0 %v358, 8
      %v374 = vpop.permute.xlu0 %373
      %vm383 = vcmask 126016
      %384 = vst.msk [vmem:[#allocation2] sm:$0xf] %vm383, %v360
      %385 = vst.msk [vmem:[#allocation2 + $0x4] sm:$0xf] %vm383, %v362
      %386 = vst.msk [vmem:[#allocation2 + $0x8] sm:$0xf] %vm383, %v364
      %387 = vst.msk [vmem:[#allocation2 + $0xc] sm:$0xf] %vm383, %v366
      %388 = vst.msk [vmem:[#allocation2 + $0x10] sm:$0xf] %vm383, %v368
      %389 = vst.msk [vmem:[#allocation2 + $0x14] sm:$0xf] %vm383, %v370
      %390 = vst.msk [vmem:[#allocation2 + $0x18] sm:$0xf] %vm383, %v372
      %391 = vst.msk [vmem:[#allocation2 + $0x1c] sm:$0xf] %vm383, %v374
      %v392 = vld [vmem:[%s244 + $0x1] sm:$0xff]
      %v393 = vld [vmem:[%s244 + $0x11] sm:$0xff]
      %v394 = vld [vmem:[%s244 + $0x21] sm:$0xff]
      %v395 = vld [vmem:[%s244 + $0x31] sm:$0xff]
      %v396 = vld [vmem:[%s244 + $0x41] sm:$0xff]
      %v397 = vld [vmem:[%s244 + $0x51] sm:$0xff]
      %v398 = vld [vmem:[%s244 + $0x61] sm:$0xff]
      %v399 = vld [vmem:[%s244 + $0x71] sm:$0xff]
      %vm400 = vcmp.gt.f32.partialorder %v392, 0.0
      %vm401 = vcmp.gt.f32.partialorder %v393, 0.0
      %vm402 = vcmp.gt.f32.partialorder %v394, 0.0
      %vm403 = vcmp.gt.f32.partialorder %v395, 0.0
      %vm404 = vcmp.gt.f32.partialorder %v396, 0.0
      %vm405 = vcmp.gt.f32.partialorder %v397, 0.0
      %vm406 = vcmp.gt.f32.partialorder %v398, 0.0
      %vm407 = vcmp.gt.f32.partialorder %v399, 0.0
      %v408 = vmul.f32 %v392, 0.2
      %v409 = vmul.f32 %v393, 0.2
      %v410 = vmul.f32 %v394, 0.2
      %v411 = vmul.f32 %v395, 0.2
      %v412 = vmul.f32 %v396, 0.2
      %v413 = vmul.f32 %v397, 0.2
      %v414 = vmul.f32 %v398, 0.2
      %v415 = vmul.f32 %v399, 0.2
      %v416 = vsel %vm400, %v392, %v408
      %v417 = vsel %vm401, %v393, %v409
      %v418 = vsel %vm402, %v394, %v410
      %v419 = vsel %vm403, %v395, %v411
      %v420 = vsel %vm404, %v396, %v412
      %v421 = vsel %vm405, %v397, %v413
      %v422 = vsel %vm406, %v398, %v414
      %v423 = vsel %vm407, %v399, %v415
      %v424 = vpack.c.bf16 %v416, %v416
      %v425 = vpack.c.bf16 %v417, %v417
      %v426 = vpack.c.bf16 %v418, %v418
      %v427 = vpack.c.bf16 %v419, %v419
      %v428 = vpack.c.bf16 %v420, %v420
      %v429 = vpack.c.bf16 %v421, %v421
      %v430 = vpack.c.bf16 %v422, %v422
      %v431 = vpack.c.bf16 %v423, %v423
      %v440 = vunpack.c.l.b16 %v424
      %v441 = vunpack.c.l.b16 %v425
      %v442 = vunpack.c.l.b16 %v426
      %v443 = vunpack.c.l.b16 %v427
      %v444 = vunpack.c.l.b16 %v428
      %v445 = vunpack.c.l.b16 %v429
      %v446 = vunpack.c.l.b16 %v430
      %v447 = vunpack.c.l.b16 %v431
      %v448 = vpack.c.b16 %v440, %v440
      %v449 = vpack.c.b16 %v441, %v441
      %v450 = vpack.c.b16 %v442, %v442
      %v451 = vpack.c.b16 %v443, %v443
      %v452 = vpack.c.b16 %v444, %v444
      %v453 = vpack.c.b16 %v445, %v445
      %v454 = vpack.c.b16 %v446, %v446
      %v455 = vpack.c.b16 %v447, %v447
      %456 = vrot.lane.b32.xlu0 %v448, 16
      %v457 = vpop.permute.xlu0 %456
      %458 = vrot.lane.b32.xlu0 %v449, 16
      %v459 = vpop.permute.xlu0 %458
      %460 = vrot.lane.b32.xlu0 %v450, 16
      %v461 = vpop.permute.xlu0 %460
      %462 = vrot.lane.b32.xlu0 %v451, 16
      %v463 = vpop.permute.xlu0 %462
      %464 = vrot.lane.b32.xlu0 %v452, 16
      %v465 = vpop.permute.xlu0 %464
      %466 = vrot.lane.b32.xlu0 %v453, 16
      %v467 = vpop.permute.xlu0 %466
      %468 = vrot.lane.b32.xlu0 %v454, 16
      %v469 = vpop.permute.xlu0 %468
      %470 = vrot.lane.b32.xlu0 %v455, 16
      %v471 = vpop.permute.xlu0 %470
      %vm480 = vcmask 191616
      %481 = vst.msk [vmem:[#allocation2] sm:$0xf] %vm480, %v457
      %482 = vst.msk [vmem:[#allocation2 + $0x4] sm:$0xf] %vm480, %v459
      %483 = vst.msk [vmem:[#allocation2 + $0x8] sm:$0xf] %vm480, %v461
      %484 = vst.msk [vmem:[#allocation2 + $0xc] sm:$0xf] %vm480, %v463
      %485 = vst.msk [vmem:[#allocation2 + $0x10] sm:$0xf] %vm480, %v465
      %486 = vst.msk [vmem:[#allocation2 + $0x14] sm:$0xf] %vm480, %v467
      %487 = vst.msk [vmem:[#allocation2 + $0x18] sm:$0xf] %vm480, %v469
      %488 = vst.msk [vmem:[#allocation2 + $0x1c] sm:$0xf] %vm480, %v471
      %v489 = vld [vmem:[%s294 + $0x2] sm:$0xff]
      %v490 = vld [vmem:[%s294 + $0x12] sm:$0xff]
      %v491 = vld [vmem:[%s294 + $0x22] sm:$0xff]
      %v492 = vld [vmem:[%s294 + $0x32] sm:$0xff]
      %v493 = vld [vmem:[%s294 + $0x42] sm:$0xff]
      %v494 = vld [vmem:[%s294 + $0x52] sm:$0xff]
      %v495 = vld [vmem:[%s294 + $0x62] sm:$0xff]
      %v496 = vld [vmem:[%s294 + $0x72] sm:$0xff]
      %vm497 = vcmp.gt.f32.partialorder %v489, 0.0
      %vm498 = vcmp.gt.f32.partialorder %v490, 0.0
      %vm499 = vcmp.gt.f32.partialorder %v491, 0.0
      %vm500 = vcmp.gt.f32.partialorder %v492, 0.0
      %vm501 = vcmp.gt.f32.partialorder %v493, 0.0
      %vm502 = vcmp.gt.f32.partialorder %v494, 0.0
      %vm503 = vcmp.gt.f32.partialorder %v495, 0.0
      %vm504 = vcmp.gt.f32.partialorder %v496, 0.0
      %v505 = vmul.f32 %v489, 0.2
      %v506 = vmul.f32 %v490, 0.2
      %v507 = vmul.f32 %v491, 0.2
      %v508 = vmul.f32 %v492, 0.2
      %v509 = vmul.f32 %v493, 0.2
      %v510 = vmul.f32 %v494, 0.2
      %v511 = vmul.f32 %v495, 0.2
      %v512 = vmul.f32 %v496, 0.2
      %v513 = vsel %vm497, %v489, %v505
      %v514 = vsel %vm498, %v490, %v506
      %v515 = vsel %vm499, %v491, %v507
      %v516 = vsel %vm500, %v492, %v508
      %v517 = vsel %vm501, %v493, %v509
      %v518 = vsel %vm502, %v494, %v510
      %v519 = vsel %vm503, %v495, %v511
      %v520 = vsel %vm504, %v496, %v512
      %v521 = vpack.c.bf16 %v513, %v513
      %v522 = vpack.c.bf16 %v514, %v514
      %v523 = vpack.c.bf16 %v515, %v515
      %v524 = vpack.c.bf16 %v516, %v516
      %v525 = vpack.c.bf16 %v517, %v517
      %v526 = vpack.c.bf16 %v518, %v518
      %v527 = vpack.c.bf16 %v519, %v519
      %v528 = vpack.c.bf16 %v520, %v520
      %v537 = vunpack.c.l.b16 %v521
      %v538 = vunpack.c.l.b16 %v522
      %v539 = vunpack.c.l.b16 %v523
      %v540 = vunpack.c.l.b16 %v524
      %v541 = vunpack.c.l.b16 %v525
      %v542 = vunpack.c.l.b16 %v526
      %v543 = vunpack.c.l.b16 %v527
      %v544 = vunpack.c.l.b16 %v528
      %v545 = vpack.c.b16 %v537, %v537
      %v546 = vpack.c.b16 %v538, %v538
      %v547 = vpack.c.b16 %v539, %v539
      %v548 = vpack.c.b16 %v540, %v540
      %v549 = vpack.c.b16 %v541, %v541
      %v550 = vpack.c.b16 %v542, %v542
      %v551 = vpack.c.b16 %v543, %v543
      %v552 = vpack.c.b16 %v544, %v544
      %553 = vrot.lane.b32.xlu0 %v545, 24
      %v554 = vpop.permute.xlu0 %553
      %555 = vrot.lane.b32.xlu0 %v546, 24
      %v556 = vpop.permute.xlu0 %555
      %557 = vrot.lane.b32.xlu0 %v547, 24
      %v558 = vpop.permute.xlu0 %557
      %559 = vrot.lane.b32.xlu0 %v548, 24
      %v560 = vpop.permute.xlu0 %559
      %561 = vrot.lane.b32.xlu0 %v549, 24
      %v562 = vpop.permute.xlu0 %561
      %563 = vrot.lane.b32.xlu0 %v550, 24
      %v564 = vpop.permute.xlu0 %563
      %565 = vrot.lane.b32.xlu0 %v551, 24
      %v566 = vpop.permute.xlu0 %565
      %567 = vrot.lane.b32.xlu0 %v552, 24
      %v568 = vpop.permute.xlu0 %567
      %vm577 = vcmask 257216
      %578 = vst.msk [vmem:[#allocation2] sm:$0xf] %vm577, %v554
      %579 = vst.msk [vmem:[#allocation2 + $0x4] sm:$0xf] %vm577, %v556
      %580 = vst.msk [vmem:[#allocation2 + $0x8] sm:$0xf] %vm577, %v558
      %581 = vst.msk [vmem:[#allocation2 + $0xc] sm:$0xf] %vm577, %v560
      %582 = vst.msk [vmem:[#allocation2 + $0x10] sm:$0xf] %vm577, %v562
      %583 = vst.msk [vmem:[#allocation2 + $0x14] sm:$0xf] %vm577, %v564
      %584 = vst.msk [vmem:[#allocation2 + $0x18] sm:$0xf] %vm577, %v566
      %585 = vst.msk [vmem:[#allocation2 + $0x1c] sm:$0xf] %vm577, %v568
      %s586 = scalar_lea.vmem %s230, 176
      %v587 = vld [vmem:[%s586] sm:$0xff]
      %v588 = vld [vmem:[%s586 + $0x10] sm:$0xff]
      %v589 = vld [vmem:[%s586 + $0x20] sm:$0xff]
      %v590 = vld [vmem:[%s586 + $0x30] sm:$0xff]
      %v591 = vld [vmem:[%s586 + $0x40] sm:$0xff]
      %v592 = vld [vmem:[%s586 + $0x50] sm:$0xff]
      %v593 = vld [vmem:[%s586 + $0x60] sm:$0xff]
      %v594 = vld [vmem:[%s586 + $0x70] sm:$0xff]
      %vm595 = vcmp.gt.f32.partialorder %v587, 0.0
      %vm596 = vcmp.gt.f32.partialorder %v588, 0.0
      %vm597 = vcmp.gt.f32.partialorder %v589, 0.0
      %vm598 = vcmp.gt.f32.partialorder %v590, 0.0
      %vm599 = vcmp.gt.f32.partialorder %v591, 0.0
      %vm600 = vcmp.gt.f32.partialorder %v592, 0.0
      %vm601 = vcmp.gt.f32.partialorder %v593, 0.0
      %vm602 = vcmp.gt.f32.partialorder %v594, 0.0
      %v603 = vmul.f32 %v587, 0.2
      %v604 = vmul.f32 %v588, 0.2
      %v605 = vmul.f32 %v589, 0.2
      %v606 = vmul.f32 %v590, 0.2
      %v607 = vmul.f32 %v591, 0.2
      %v608 = vmul.f32 %v592, 0.2
      %v609 = vmul.f32 %v593, 0.2
      %v610 = vmul.f32 %v594, 0.2
      %v611 = vsel %vm595, %v587, %v603
      %v612 = vsel %vm596, %v588, %v604
      %v613 = vsel %vm597, %v589, %v605
      %v614 = vsel %vm598, %v590, %v606
      %v615 = vsel %vm599, %v591, %v607
      %v616 = vsel %vm600, %v592, %v608
      %v617 = vsel %vm601, %v593, %v609
      %v618 = vsel %vm602, %v594, %v610
      %v619 = vpack.c.bf16 %v611, %v611
      %v620 = vpack.c.bf16 %v612, %v612
      %v621 = vpack.c.bf16 %v613, %v613
      %v622 = vpack.c.bf16 %v614, %v614
      %v623 = vpack.c.bf16 %v615, %v615
      %v624 = vpack.c.bf16 %v616, %v616
      %v625 = vpack.c.bf16 %v617, %v617
      %v626 = vpack.c.bf16 %v618, %v618
      %v635 = vunpack.c.l.b16 %v619
      %v636 = vunpack.c.l.b16 %v620
      %v637 = vunpack.c.l.b16 %v621
      %v638 = vunpack.c.l.b16 %v622
      %v639 = vunpack.c.l.b16 %v623
      %v640 = vunpack.c.l.b16 %v624
      %v641 = vunpack.c.l.b16 %v625
      %v642 = vunpack.c.l.b16 %v626
      %v643 = vpack.c.b16 %v635, %v635
      %v644 = vpack.c.b16 %v636, %v636
      %v645 = vpack.c.b16 %v637, %v637
      %v646 = vpack.c.b16 %v638, %v638
      %v647 = vpack.c.b16 %v639, %v639
      %v648 = vpack.c.b16 %v640, %v640
      %v649 = vpack.c.b16 %v641, %v641
      %v650 = vpack.c.b16 %v642, %v642
      %651 = vrot.lane.b32.xlu0 %v643, 32
      %v652 = vpop.permute.xlu0 %651
      %653 = vrot.lane.b32.xlu0 %v644, 32
      %v654 = vpop.permute.xlu0 %653
      %655 = vrot.lane.b32.xlu0 %v645, 32
      %v656 = vpop.permute.xlu0 %655
      %657 = vrot.lane.b32.xlu0 %v646, 32
      %v658 = vpop.permute.xlu0 %657
      %659 = vrot.lane.b32.xlu0 %v647, 32
      %v660 = vpop.permute.xlu0 %659
      %661 = vrot.lane.b32.xlu0 %v648, 32
      %v662 = vpop.permute.xlu0 %661
      %663 = vrot.lane.b32.xlu0 %v649, 32
      %v664 = vpop.permute.xlu0 %663
      %665 = vrot.lane.b32.xlu0 %v650, 32
      %v666 = vpop.permute.xlu0 %665
      %vm675 = vcmask 322816
      %676 = vst.msk [vmem:[#allocation2] sm:$0xf] %vm675, %v652
      %677 = vst.msk [vmem:[#allocation2 + $0x4] sm:$0xf] %vm675, %v654
      %678 = vst.msk [vmem:[#allocation2 + $0x8] sm:$0xf] %vm675, %v656
      %679 = vst.msk [vmem:[#allocation2 + $0xc] sm:$0xf] %vm675, %v658
      %680 = vst.msk [vmem:[#allocation2 + $0x10] sm:$0xf] %vm675, %v660
      %681 = vst.msk [vmem:[#allocation2 + $0x14] sm:$0xf] %vm675, %v662
      %682 = vst.msk [vmem:[#allocation2 + $0x18] sm:$0xf] %vm675, %v664
      %683 = vst.msk [vmem:[#allocation2 + $0x1c] sm:$0xf] %vm675, %v666
      %s684 = scalar_lea.vmem %s230, 16
      %v685 = vld [vmem:[%s684 + $0x1] sm:$0xff]
      %v686 = vld [vmem:[%s684 + $0x11] sm:$0xff]
      %v687 = vld [vmem:[%s684 + $0x21] sm:$0xff]
      %v688 = vld [vmem:[%s684 + $0x31] sm:$0xff]
      %v689 = vld [vmem:[%s684 + $0x41] sm:$0xff]
      %v690 = vld [vmem:[%s684 + $0x51] sm:$0xff]
      %v691 = vld [vmem:[%s684 + $0x61] sm:$0xff]
      %v692 = vld [vmem:[%s684 + $0x71] sm:$0xff]
      %vm693 = vcmp.gt.f32.partialorder %v685, 0.0
      %vm694 = vcmp.gt.f32.partialorder %v686, 0.0
      %vm695 = vcmp.gt.f32.partialorder %v687, 0.0
      %vm696 = vcmp.gt.f32.partialorder %v688, 0.0
      %vm697 = vcmp.gt.f32.partialorder %v689, 0.0
      %vm698 = vcmp.gt.f32.partialorder %v690, 0.0
      %vm699 = vcmp.gt.f32.partialorder %v691, 0.0
      %vm700 = vcmp.gt.f32.partialorder %v692, 0.0
      %v701 = vmul.f32 %v685, 0.2
      %v702 = vmul.f32 %v686, 0.2
      %v703 = vmul.f32 %v687, 0.2
      %v704 = vmul.f32 %v688, 0.2
      %v705 = vmul.f32 %v689, 0.2
      %v706 = vmul.f32 %v690, 0.2
      %v707 = vmul.f32 %v691, 0.2
      %v708 = vmul.f32 %v692, 0.2
      %v709 = vsel %vm693, %v685, %v701
      %v710 = vsel %vm694, %v686, %v702
      %v711 = vsel %vm695, %v687, %v703
      %v712 = vsel %vm696, %v688, %v704
      %v713 = vsel %vm697, %v689, %v705
      %v714 = vsel %vm698, %v690, %v706
      %v715 = vsel %vm699, %v691, %v707
      %v716 = vsel %vm700, %v692, %v708
      %v717 = vpack.c.bf16 %v709, %v709
      %v718 = vpack.c.bf16 %v710, %v710
      %v719 = vpack.c.bf16 %v711, %v711
      %v720 = vpack.c.bf16 %v712, %v712
      %v721 = vpack.c.bf16 %v713, %v713
      %v722 = vpack.c.bf16 %v714, %v714
      %v723 = vpack.c.bf16 %v715, %v715
      %v724 = vpack.c.bf16 %v716, %v716
      %v733 = vunpack.c.l.b16 %v717
      %v734 = vunpack.c.l.b16 %v718
      %v735 = vunpack.c.l.b16 %v719
      %v736 = vunpack.c.l.b16 %v720
      %v737 = vunpack.c.l.b16 %v721
      %v738 = vunpack.c.l.b16 %v722
      %v739 = vunpack.c.l.b16 %v723
      %v740 = vunpack.c.l.b16 %v724
      %v741 = vpack.c.b16 %v733, %v733
      %v742 = vpack.c.b16 %v734, %v734
      %v743 = vpack.c.b16 %v735, %v735
      %v744 = vpack.c.b16 %v736, %v736
      %v745 = vpack.c.b16 %v737, %v737
      %v746 = vpack.c.b16 %v738, %v738
      %v747 = vpack.c.b16 %v739, %v739
      %v748 = vpack.c.b16 %v740, %v740
      %749 = vrot.lane.b32.xlu0 %v741, 40
      %v750 = vpop.permute.xlu0 %749
      %751 = vrot.lane.b32.xlu0 %v742, 40
      %v752 = vpop.permute.xlu0 %751
      %753 = vrot.lane.b32.xlu0 %v743, 40
      %v754 = vpop.permute.xlu0 %753
      %755 = vrot.lane.b32.xlu0 %v744, 40
      %v756 = vpop.permute.xlu0 %755
      %757 = vrot.lane.b32.xlu0 %v745, 40
      %v758 = vpop.permute.xlu0 %757
      %759 = vrot.lane.b32.xlu0 %v746, 40
      %v760 = vpop.permute.xlu0 %759
      %761 = vrot.lane.b32.xlu0 %v747, 40
      %v762 = vpop.permute.xlu0 %761
      %763 = vrot.lane.b32.xlu0 %v748, 40
      %v764 = vpop.permute.xlu0 %763
      %vm773 = vcmask 388416
      %774 = vst.msk [vmem:[#allocation2] sm:$0xf] %vm773, %v750
      %775 = vst.msk [vmem:[#allocation2 + $0x4] sm:$0xf] %vm773, %v752
      %776 = vst.msk [vmem:[#allocation2 + $0x8] sm:$0xf] %vm773, %v754
      %777 = vst.msk [vmem:[#allocation2 + $0xc] sm:$0xf] %vm773, %v756
      %778 = vst.msk [vmem:[#allocation2 + $0x10] sm:$0xf] %vm773, %v758
      %779 = vst.msk [vmem:[#allocation2 + $0x14] sm:$0xf] %vm773, %v760
      %780 = vst.msk [vmem:[#allocation2 + $0x18] sm:$0xf] %vm773, %v762
      %781 = vst.msk [vmem:[#allocation2 + $0x1c] sm:$0xf] %vm773, %v764
      %v782 = vld [vmem:[%s586 + $0x1] sm:$0xff]
      %v783 = vld [vmem:[%s586 + $0x11] sm:$0xff]
      %v784 = vld [vmem:[%s586 + $0x21] sm:$0xff]
      %v785 = vld [vmem:[%s586 + $0x31] sm:$0xff]
      %v786 = vld [vmem:[%s586 + $0x41] sm:$0xff]
      %v787 = vld [vmem:[%s586 + $0x51] sm:$0xff]
      %v788 = vld [vmem:[%s586 + $0x61] sm:$0xff]
      %v789 = vld [vmem:[%s586 + $0x71] sm:$0xff]
      %vm790 = vcmp.gt.f32.partialorder %v782, 0.0
      %vm791 = vcmp.gt.f32.partialorder %v783, 0.0
      %vm792 = vcmp.gt.f32.partialorder %v784, 0.0
      %vm793 = vcmp.gt.f32.partialorder %v785, 0.0
      %vm794 = vcmp.gt.f32.partialorder %v786, 0.0
      %vm795 = vcmp.gt.f32.partialorder %v787, 0.0
      %vm796 = vcmp.gt.f32.partialorder %v788, 0.0
      %vm797 = vcmp.gt.f32.partialorder %v789, 0.0
      %v798 = vmul.f32 %v782, 0.2
      %v799 = vmul.f32 %v783, 0.2
      %v800 = vmul.f32 %v784, 0.2
      %v801 = vmul.f32 %v785, 0.2
      %v802 = vmul.f32 %v786, 0.2
      %v803 = vmul.f32 %v787, 0.2
      %v804 = vmul.f32 %v788, 0.2
      %v805 = vmul.f32 %v789, 0.2
      %v806 = vsel %vm790, %v782, %v798
      %v807 = vsel %vm791, %v783, %v799
      %v808 = vsel %vm792, %v784, %v800
      %v809 = vsel %vm793, %v785, %v801
      %v810 = vsel %vm794, %v786, %v802
      %v811 = vsel %vm795, %v787, %v803
      %v812 = vsel %vm796, %v788, %v804
      %v813 = vsel %vm797, %v789, %v805
      %v814 = vpack.c.bf16 %v806, %v806
      %v815 = vpack.c.bf16 %v807, %v807
      %v816 = vpack.c.bf16 %v808, %v808
      %v817 = vpack.c.bf16 %v809, %v809
      %v818 = vpack.c.bf16 %v810, %v810
      %v819 = vpack.c.bf16 %v811, %v811
      %v820 = vpack.c.bf16 %v812, %v812
      %v821 = vpack.c.bf16 %v813, %v813
      %v830 = vunpack.c.l.b16 %v814
      %v831 = vunpack.c.l.b16 %v815
      %v832 = vunpack.c.l.b16 %v816
      %v833 = vunpack.c.l.b16 %v817
      %v834 = vunpack.c.l.b16 %v818
      %v835 = vunpack.c.l.b16 %v819
      %v836 = vunpack.c.l.b16 %v820
      %v837 = vunpack.c.l.b16 %v821
      %v838 = vpack.c.b16 %v830, %v830
      %v839 = vpack.c.b16 %v831, %v831
      %v840 = vpack.c.b16 %v832, %v832
      %v841 = vpack.c.b16 %v833, %v833
      %v842 = vpack.c.b16 %v834, %v834
      %v843 = vpack.c.b16 %v835, %v835
      %v844 = vpack.c.b16 %v836, %v836
      %v845 = vpack.c.b16 %v837, %v837
      %846 = vrot.lane.b32.xlu0 %v838, 48
      %v847 = vpop.permute.xlu0 %846
      %848 = vrot.lane.b32.xlu0 %v839, 48
      %v849 = vpop.permute.xlu0 %848
      %850 = vrot.lane.b32.xlu0 %v840, 48
      %v851 = vpop.permute.xlu0 %850
      %852 = vrot.lane.b32.xlu0 %v841, 48
      %v853 = vpop.permute.xlu0 %852
      %854 = vrot.lane.b32.xlu0 %v842, 48
      %v855 = vpop.permute.xlu0 %854
      %856 = vrot.lane.b32.xlu0 %v843, 48
      %v857 = vpop.permute.xlu0 %856
      %858 = vrot.lane.b32.xlu0 %v844, 48
      %v859 = vpop.permute.xlu0 %858
      %860 = vrot.lane.b32.xlu0 %v845, 48
      %v861 = vpop.permute.xlu0 %860
      %vm870 = vcmask 454016
      %871 = vst.msk [vmem:[#allocation2] sm:$0xf] %vm870, %v847
      %872 = vst.msk [vmem:[#allocation2 + $0x4] sm:$0xf] %vm870, %v849
      %873 = vst.msk [vmem:[#allocation2 + $0x8] sm:$0xf] %vm870, %v851
      %874 = vst.msk [vmem:[#allocation2 + $0xc] sm:$0xf] %vm870, %v853
      %875 = vst.msk [vmem:[#allocation2 + $0x10] sm:$0xf] %vm870, %v855
      %876 = vst.msk [vmem:[#allocation2 + $0x14] sm:$0xf] %vm870, %v857
      %877 = vst.msk [vmem:[#allocation2 + $0x18] sm:$0xf] %vm870, %v859
      %878 = vst.msk [vmem:[#allocation2 + $0x1c] sm:$0xf] %vm870, %v861
      %v879 = vld [vmem:[%s684 + $0x2] sm:$0xff]
      %v880 = vld [vmem:[%s684 + $0x12] sm:$0xff]
      %v881 = vld [vmem:[%s684 + $0x22] sm:$0xff]
      %v882 = vld [vmem:[%s684 + $0x32] sm:$0xff]
      %v883 = vld [vmem:[%s684 + $0x42] sm:$0xff]
      %v884 = vld [vmem:[%s684 + $0x52] sm:$0xff]
      %v885 = vld [vmem:[%s684 + $0x62] sm:$0xff]
      %v886 = vld [vmem:[%s684 + $0x72] sm:$0xff]
      %vm887 = vcmp.gt.f32.partialorder %v879, 0.0
      %vm888 = vcmp.gt.f32.partialorder %v880, 0.0
      %vm889 = vcmp.gt.f32.partialorder %v881, 0.0
      %vm890 = vcmp.gt.f32.partialorder %v882, 0.0
      %vm891 = vcmp.gt.f32.partialorder %v883, 0.0
      %vm892 = vcmp.gt.f32.partialorder %v884, 0.0
      %vm893 = vcmp.gt.f32.partialorder %v885, 0.0
      %vm894 = vcmp.gt.f32.partialorder %v886, 0.0
      %v895 = vmul.f32 %v879, 0.2
      %v896 = vmul.f32 %v880, 0.2
      %v897 = vmul.f32 %v881, 0.2
      %v898 = vmul.f32 %v882, 0.2
      %v899 = vmul.f32 %v883, 0.2
      %v900 = vmul.f32 %v884, 0.2
      %v901 = vmul.f32 %v885, 0.2
      %v902 = vmul.f32 %v886, 0.2
      %v903 = vsel %vm887, %v879, %v895
      %v904 = vsel %vm888, %v880, %v896
      %v905 = vsel %vm889, %v881, %v897
      %v906 = vsel %vm890, %v882, %v898
      %v907 = vsel %vm891, %v883, %v899
      %v908 = vsel %vm892, %v884, %v900
      %v909 = vsel %vm893, %v885, %v901
      %v910 = vsel %vm894, %v886, %v902
      %v911 = vpack.c.bf16 %v903, %v903
      %v912 = vpack.c.bf16 %v904, %v904
      %v913 = vpack.c.bf16 %v905, %v905
      %v914 = vpack.c.bf16 %v906, %v906
      %v915 = vpack.c.bf16 %v907, %v907
      %v916 = vpack.c.bf16 %v908, %v908
      %v917 = vpack.c.bf16 %v909, %v909
      %v918 = vpack.c.bf16 %v910, %v910
      %v927 = vunpack.c.l.b16 %v911
      %v928 = vunpack.c.l.b16 %v912
      %v929 = vunpack.c.l.b16 %v913
      %v930 = vunpack.c.l.b16 %v914
      %v931 = vunpack.c.l.b16 %v915
      %v932 = vunpack.c.l.b16 %v916
      %v933 = vunpack.c.l.b16 %v917
      %v934 = vunpack.c.l.b16 %v918
      %v935 = vpack.c.b16 %v927, %v927
      %v936 = vpack.c.b16 %v928, %v928
      %v937 = vpack.c.b16 %v929, %v929
      %v938 = vpack.c.b16 %v930, %v930
      %v939 = vpack.c.b16 %v931, %v931
      %v940 = vpack.c.b16 %v932, %v932
      %v941 = vpack.c.b16 %v933, %v933
      %v942 = vpack.c.b16 %v934, %v934
      %943 = vrot.lane.b32.xlu0 %v935, 56
      %v944 = vpop.permute.xlu0 %943
      %945 = vrot.lane.b32.xlu0 %v936, 56
      %v946 = vpop.permute.xlu0 %945
      %947 = vrot.lane.b32.xlu0 %v937, 56
      %v948 = vpop.permute.xlu0 %947
      %949 = vrot.lane.b32.xlu0 %v938, 56
      %v950 = vpop.permute.xlu0 %949
      %951 = vrot.lane.b32.xlu0 %v939, 56
      %v952 = vpop.permute.xlu0 %951
      %953 = vrot.lane.b32.xlu0 %v940, 56
      %v954 = vpop.permute.xlu0 %953
      %955 = vrot.lane.b32.xlu0 %v941, 56
      %v956 = vpop.permute.xlu0 %955
      %957 = vrot.lane.b32.xlu0 %v942, 56
      %v958 = vpop.permute.xlu0 %957
      %vm967 = vcmask 519616
      %968 = vst.msk [vmem:[#allocation2] sm:$0xf] %vm967, %v944
      %969 = vst.msk [vmem:[#allocation2 + $0x4] sm:$0xf] %vm967, %v946
      %970 = vst.msk [vmem:[#allocation2 + $0x8] sm:$0xf] %vm967, %v948
      %971 = vst.msk [vmem:[#allocation2 + $0xc] sm:$0xf] %vm967, %v950
      %972 = vst.msk [vmem:[#allocation2 + $0x10] sm:$0xf] %vm967, %v952
      %973 = vst.msk [vmem:[#allocation2 + $0x14] sm:$0xf] %vm967, %v954
      %974 = vst.msk [vmem:[#allocation2 + $0x18] sm:$0xf] %vm967, %v956
      %975 = vst.msk [vmem:[#allocation2 + $0x1c] sm:$0xf] %vm967, %v958
      %s976 = scalar_lea.vmem %s230, 496
      %v977 = vld [vmem:[%s976] sm:$0xff]
      %v978 = vld [vmem:[%s976 + $0x10] sm:$0xff]
      %v979 = vld [vmem:[%s976 + $0x20] sm:$0xff]
      %v980 = vld [vmem:[%s976 + $0x30] sm:$0xff]
      %v981 = vld [vmem:[%s976 + $0x40] sm:$0xff]
      %v982 = vld [vmem:[%s976 + $0x50] sm:$0xff]
      %v983 = vld [vmem:[%s976 + $0x60] sm:$0xff]
      %v984 = vld [vmem:[%s976 + $0x70] sm:$0xff]
      %vm985 = vcmp.gt.f32.partialorder %v977, 0.0
      %vm986 = vcmp.gt.f32.partialorder %v978, 0.0
      %vm987 = vcmp.gt.f32.partialorder %v979, 0.0
      %vm988 = vcmp.gt.f32.partialorder %v980, 0.0
      %vm989 = vcmp.gt.f32.partialorder %v981, 0.0
      %vm990 = vcmp.gt.f32.partialorder %v982, 0.0
      %vm991 = vcmp.gt.f32.partialorder %v983, 0.0
      %vm992 = vcmp.gt.f32.partialorder %v984, 0.0
      %v993 = vmul.f32 %v977, 0.2
      %v994 = vmul.f32 %v978, 0.2
      %v995 = vmul.f32 %v979, 0.2
      %v996 = vmul.f32 %v980, 0.2
      %v997 = vmul.f32 %v981, 0.2
      %v998 = vmul.f32 %v982, 0.2
      %v999 = vmul.f32 %v983, 0.2
      %v1000 = vmul.f32 %v984, 0.2
      %v1001 = vsel %vm985, %v977, %v993
      %v1002 = vsel %vm986, %v978, %v994
      %v1003 = vsel %vm987, %v979, %v995
      %v1004 = vsel %vm988, %v980, %v996
      %v1005 = vsel %vm989, %v981, %v997
      %v1006 = vsel %vm990, %v982, %v998
      %v1007 = vsel %vm991, %v983, %v999
      %v1008 = vsel %vm992, %v984, %v1000
      %v1009 = vpack.c.bf16 %v1001, %v1001
      %v1010 = vpack.c.bf16 %v1002, %v1002
      %v1011 = vpack.c.bf16 %v1003, %v1003
      %v1012 = vpack.c.bf16 %v1004, %v1004
      %v1013 = vpack.c.bf16 %v1005, %v1005
      %v1014 = vpack.c.bf16 %v1006, %v1006
      %v1015 = vpack.c.bf16 %v1007, %v1007
      %v1016 = vpack.c.bf16 %v1008, %v1008
      %v1025 = vunpack.c.l.b16 %v1009
      %v1026 = vunpack.c.l.b16 %v1010
      %v1027 = vunpack.c.l.b16 %v1011
      %v1028 = vunpack.c.l.b16 %v1012
      %v1029 = vunpack.c.l.b16 %v1013
      %v1030 = vunpack.c.l.b16 %v1014
      %v1031 = vunpack.c.l.b16 %v1015
      %v1032 = vunpack.c.l.b16 %v1016
      %v1033 = vpack.c.b16 %v1025, %v1025
      %v1034 = vpack.c.b16 %v1026, %v1026
      %v1035 = vpack.c.b16 %v1027, %v1027
      %v1036 = vpack.c.b16 %v1028, %v1028
      %v1037 = vpack.c.b16 %v1029, %v1029
      %v1038 = vpack.c.b16 %v1030, %v1030
      %v1039 = vpack.c.b16 %v1031, %v1031
      %v1040 = vpack.c.b16 %v1032, %v1032
      %1041 = vrot.lane.b32.xlu0 %v1033, 64
      %v1042 = vpop.permute.xlu0 %1041
      %1043 = vrot.lane.b32.xlu0 %v1034, 64
      %v1044 = vpop.permute.xlu0 %1043
      %1045 = vrot.lane.b32.xlu0 %v1035, 64
      %v1046 = vpop.permute.xlu0 %1045
      %1047 = vrot.lane.b32.xlu0 %v1036, 64
      %v1048 = vpop.permute.xlu0 %1047
      %1049 = vrot.lane.b32.xlu0 %v1037, 64
      %v1050 = vpop.permute.xlu0 %1049
      %1051 = vrot.lane.b32.xlu0 %v1038, 64
      %v1052 = vpop.permute.xlu0 %1051
      %1053 = vrot.lane.b32.xlu0 %v1039, 64
      %v1054 = vpop.permute.xlu0 %1053
      %1055 = vrot.lane.b32.xlu0 %v1040, 64
      %v1056 = vpop.permute.xlu0 %1055
      %vm1065 = vcmask 585216
      %1066 = vst.msk [vmem:[#allocation2] sm:$0xf] %vm1065, %v1042
      %1067 = vst.msk [vmem:[#allocation2 + $0x4] sm:$0xf] %vm1065, %v1044
      %1068 = vst.msk [vmem:[#allocation2 + $0x8] sm:$0xf] %vm1065, %v1046
      %1069 = vst.msk [vmem:[#allocation2 + $0xc] sm:$0xf] %vm1065, %v1048
      %1070 = vst.msk [vmem:[#allocation2 + $0x10] sm:$0xf] %vm1065, %v1050
      %1071 = vst.msk [vmem:[#allocation2 + $0x14] sm:$0xf] %vm1065, %v1052
      %1072 = vst.msk [vmem:[#allocation2 + $0x18] sm:$0xf] %vm1065, %v1054
      %1073 = vst.msk [vmem:[#allocation2 + $0x1c] sm:$0xf] %vm1065, %v1056
      %s1074 = scalar_lea.vmem %s230, 336
      %v1075 = vld [vmem:[%s1074 + $0x1] sm:$0xff]
      %v1076 = vld [vmem:[%s1074 + $0x11] sm:$0xff]
      %v1077 = vld [vmem:[%s1074 + $0x21] sm:$0xff]
      %v1078 = vld [vmem:[%s1074 + $0x31] sm:$0xff]
      %v1079 = vld [vmem:[%s1074 + $0x41] sm:$0xff]
      %v1080 = vld [vmem:[%s1074 + $0x51] sm:$0xff]
      %v1081 = vld [vmem:[%s1074 + $0x61] sm:$0xff]
      %v1082 = vld [vmem:[%s1074 + $0x71] sm:$0xff]
      %vm1083 = vcmp.gt.f32.partialorder %v1075, 0.0
      %vm1084 = vcmp.gt.f32.partialorder %v1076, 0.0
      %vm1085 = vcmp.gt.f32.partialorder %v1077, 0.0
      %vm1086 = vcmp.gt.f32.partialorder %v1078, 0.0
      %vm1087 = vcmp.gt.f32.partialorder %v1079, 0.0
      %vm1088 = vcmp.gt.f32.partialorder %v1080, 0.0
      %vm1089 = vcmp.gt.f32.partialorder %v1081, 0.0
      %vm1090 = vcmp.gt.f32.partialorder %v1082, 0.0
      %v1091 = vmul.f32 %v1075, 0.2
      %v1092 = vmul.f32 %v1076, 0.2
      %v1093 = vmul.f32 %v1077, 0.2
      %v1094 = vmul.f32 %v1078, 0.2
      %v1095 = vmul.f32 %v1079, 0.2
      %v1096 = vmul.f32 %v1080, 0.2
      %v1097 = vmul.f32 %v1081, 0.2
      %v1098 = vmul.f32 %v1082, 0.2
      %v1099 = vsel %vm1083, %v1075, %v1091
      %v1100 = vsel %vm1084, %v1076, %v1092
      %v1101 = vsel %vm1085, %v1077, %v1093
      %v1102 = vsel %vm1086, %v1078, %v1094
      %v1103 = vsel %vm1087, %v1079, %v1095
      %v1104 = vsel %vm1088, %v1080, %v1096
      %v1105 = vsel %vm1089, %v1081, %v1097
      %v1106 = vsel %vm1090, %v1082, %v1098
      %v1107 = vpack.c.bf16 %v1099, %v1099
      %v1108 = vpack.c.bf16 %v1100, %v1100
      %v1109 = vpack.c.bf16 %v1101, %v1101
      %v1110 = vpack.c.bf16 %v1102, %v1102
      %v1111 = vpack.c.bf16 %v1103, %v1103
      %v1112 = vpack.c.bf16 %v1104, %v1104
      %v1113 = vpack.c.bf16 %v1105, %v1105
      %v1114 = vpack.c.bf16 %v1106, %v1106
      %v1123 = vunpack.c.l.b16 %v1107
      %v1124 = vunpack.c.l.b16 %v1108
      %v1125 = vunpack.c.l.b16 %v1109
      %v1126 = vunpack.c.l.b16 %v1110
      %v1127 = vunpack.c.l.b16 %v1111
      %v1128 = vunpack.c.l.b16 %v1112
      %v1129 = vunpack.c.l.b16 %v1113
      %v1130 = vunpack.c.l.b16 %v1114
      %v1131 = vpack.c.b16 %v1123, %v1123
      %v1132 = vpack.c.b16 %v1124, %v1124
      %v1133 = vpack.c.b16 %v1125, %v1125
      %v1134 = vpack.c.b16 %v1126, %v1126
      %v1135 = vpack.c.b16 %v1127, %v1127
      %v1136 = vpack.c.b16 %v1128, %v1128
      %v1137 = vpack.c.b16 %v1129, %v1129
      %v1138 = vpack.c.b16 %v1130, %v1130
      %1139 = vrot.lane.b32.xlu0 %v1131, 72
      %v1140 = vpop.permute.xlu0 %1139
      %1141 = vrot.lane.b32.xlu0 %v1132, 72
      %v1142 = vpop.permute.xlu0 %1141
      %1143 = vrot.lane.b32.xlu0 %v1133, 72
      %v1144 = vpop.permute.xlu0 %1143
      %1145 = vrot.lane.b32.xlu0 %v1134, 72
      %v1146 = vpop.permute.xlu0 %1145
      %1147 = vrot.lane.b32.xlu0 %v1135, 72
      %v1148 = vpop.permute.xlu0 %1147
      %1149 = vrot.lane.b32.xlu0 %v1136, 72
      %v1150 = vpop.permute.xlu0 %1149
      %1151 = vrot.lane.b32.xlu0 %v1137, 72
      %v1152 = vpop.permute.xlu0 %1151
      %1153 = vrot.lane.b32.xlu0 %v1138, 72
      %v1154 = vpop.permute.xlu0 %1153
      %vm1163 = vcmask 650816
      %1164 = vst.msk [vmem:[#allocation2] sm:$0xf] %vm1163, %v1140
      %1165 = vst.msk [vmem:[#allocation2 + $0x4] sm:$0xf] %vm1163, %v1142
      %1166 = vst.msk [vmem:[#allocation2 + $0x8] sm:$0xf] %vm1163, %v1144
      %1167 = vst.msk [vmem:[#allocation2 + $0xc] sm:$0xf] %vm1163, %v1146
      %1168 = vst.msk [vmem:[#allocation2 + $0x10] sm:$0xf] %vm1163, %v1148
      %1169 = vst.msk [vmem:[#allocation2 + $0x14] sm:$0xf] %vm1163, %v1150
      %1170 = vst.msk [vmem:[#allocation2 + $0x18] sm:$0xf] %vm1163, %v1152
      %1171 = vst.msk [vmem:[#allocation2 + $0x1c] sm:$0xf] %vm1163, %v1154
      %v1172 = vld [vmem:[%s976 + $0x1] sm:$0xff]
      %v1173 = vld [vmem:[%s976 + $0x11] sm:$0xff]
      %v1174 = vld [vmem:[%s976 + $0x21] sm:$0xff]
      %v1175 = vld [vmem:[%s976 + $0x31] sm:$0xff]
      %v1176 = vld [vmem:[%s976 + $0x41] sm:$0xff]
      %v1177 = vld [vmem:[%s976 + $0x51] sm:$0xff]
      %v1178 = vld [vmem:[%s976 + $0x61] sm:$0xff]
      %v1179 = vld [vmem:[%s976 + $0x71] sm:$0xff]
      %vm1180 = vcmp.gt.f32.partialorder %v1172, 0.0
      %vm1181 = vcmp.gt.f32.partialorder %v1173, 0.0
      %vm1182 = vcmp.gt.f32.partialorder %v1174, 0.0
      %vm1183 = vcmp.gt.f32.partialorder %v1175, 0.0
      %vm1184 = vcmp.gt.f32.partialorder %v1176, 0.0
      %vm1185 = vcmp.gt.f32.partialorder %v1177, 0.0
      %vm1186 = vcmp.gt.f32.partialorder %v1178, 0.0
      %vm1187 = vcmp.gt.f32.partialorder %v1179, 0.0
      %v1188 = vmul.f32 %v1172, 0.2
      %v1189 = vmul.f32 %v1173, 0.2
      %v1190 = vmul.f32 %v1174, 0.2
      %v1191 = vmul.f32 %v1175, 0.2
      %v1192 = vmul.f32 %v1176, 0.2
      %v1193 = vmul.f32 %v1177, 0.2
      %v1194 = vmul.f32 %v1178, 0.2
      %v1195 = vmul.f32 %v1179, 0.2
      %v1196 = vsel %vm1180, %v1172, %v1188
      %v1197 = vsel %vm1181, %v1173, %v1189
      %v1198 = vsel %vm1182, %v1174, %v1190
      %v1199 = vsel %vm1183, %v1175, %v1191
      %v1200 = vsel %vm1184, %v1176, %v1192
      %v1201 = vsel %vm1185, %v1177, %v1193
      %v1202 = vsel %vm1186, %v1178, %v1194
      %v1203 = vsel %vm1187, %v1179, %v1195
      %v1204 = vpack.c.bf16 %v1196, %v1196
      %v1205 = vpack.c.bf16 %v1197, %v1197
      %v1206 = vpack.c.bf16 %v1198, %v1198
      %v1207 = vpack.c.bf16 %v1199, %v1199
      %v1208 = vpack.c.bf16 %v1200, %v1200
      %v1209 = vpack.c.bf16 %v1201, %v1201
      %v1210 = vpack.c.bf16 %v1202, %v1202
      %v1211 = vpack.c.bf16 %v1203, %v1203
      %v1220 = vunpack.c.l.b16 %v1204
      %v1221 = vunpack.c.l.b16 %v1205
      %v1222 = vunpack.c.l.b16 %v1206
      %v1223 = vunpack.c.l.b16 %v1207
      %v1224 = vunpack.c.l.b16 %v1208
      %v1225 = vunpack.c.l.b16 %v1209
      %v1226 = vunpack.c.l.b16 %v1210
      %v1227 = vunpack.c.l.b16 %v1211
      %v1228 = vpack.c.b16 %v1220, %v1220
      %v1229 = vpack.c.b16 %v1221, %v1221
      %v1230 = vpack.c.b16 %v1222, %v1222
      %v1231 = vpack.c.b16 %v1223, %v1223
      %v1232 = vpack.c.b16 %v1224, %v1224
      %v1233 = vpack.c.b16 %v1225, %v1225
      %v1234 = vpack.c.b16 %v1226, %v1226
      %v1235 = vpack.c.b16 %v1227, %v1227
      %1236 = vrot.lane.b32.xlu0 %v1228, 80
      %v1237 = vpop.permute.xlu0 %1236
      %1238 = vrot.lane.b32.xlu0 %v1229, 80
      %v1239 = vpop.permute.xlu0 %1238
      %1240 = vrot.lane.b32.xlu0 %v1230, 80
      %v1241 = vpop.permute.xlu0 %1240
      %1242 = vrot.lane.b32.xlu0 %v1231, 80
      %v1243 = vpop.permute.xlu0 %1242
      %1244 = vrot.lane.b32.xlu0 %v1232, 80
      %v1245 = vpop.permute.xlu0 %1244
      %1246 = vrot.lane.b32.xlu0 %v1233, 80
      %v1247 = vpop.permute.xlu0 %1246
      %1248 = vrot.lane.b32.xlu0 %v1234, 80
      %v1249 = vpop.permute.xlu0 %1248
      %1250 = vrot.lane.b32.xlu0 %v1235, 80
      %v1251 = vpop.permute.xlu0 %1250
      %vm1260 = vcmask 716416
      %1261 = vst.msk [vmem:[#allocation2] sm:$0xf] %vm1260, %v1237
      %1262 = vst.msk [vmem:[#allocation2 + $0x4] sm:$0xf] %vm1260, %v1239
      %1263 = vst.msk [vmem:[#allocation2 + $0x8] sm:$0xf] %vm1260, %v1241
      %1264 = vst.msk [vmem:[#allocation2 + $0xc] sm:$0xf] %vm1260, %v1243
      %1265 = vst.msk [vmem:[#allocation2 + $0x10] sm:$0xf] %vm1260, %v1245
      %1266 = vst.msk [vmem:[#allocation2 + $0x14] sm:$0xf] %vm1260, %v1247
      %1267 = vst.msk [vmem:[#allocation2 + $0x18] sm:$0xf] %vm1260, %v1249
      %1268 = vst.msk [vmem:[#allocation2 + $0x1c] sm:$0xf] %vm1260, %v1251
      %v1269 = vld [vmem:[%s1074 + $0x2] sm:$0xff]
      %v1270 = vld [vmem:[%s1074 + $0x12] sm:$0xff]
      %v1271 = vld [vmem:[%s1074 + $0x22] sm:$0xff]
      %v1272 = vld [vmem:[%s1074 + $0x32] sm:$0xff]
      %v1273 = vld [vmem:[%s1074 + $0x42] sm:$0xff]
      %v1274 = vld [vmem:[%s1074 + $0x52] sm:$0xff]
      %v1275 = vld [vmem:[%s1074 + $0x62] sm:$0xff]
      %v1276 = vld [vmem:[%s1074 + $0x72] sm:$0xff]
      %vm1277 = vcmp.gt.f32.partialorder %v1269, 0.0
      %vm1278 = vcmp.gt.f32.partialorder %v1270, 0.0
      %vm1279 = vcmp.gt.f32.partialorder %v1271, 0.0
      %vm1280 = vcmp.gt.f32.partialorder %v1272, 0.0
      %vm1281 = vcmp.gt.f32.partialorder %v1273, 0.0
      %vm1282 = vcmp.gt.f32.partialorder %v1274, 0.0
      %vm1283 = vcmp.gt.f32.partialorder %v1275, 0.0
      %vm1284 = vcmp.gt.f32.partialorder %v1276, 0.0
      %v1285 = vmul.f32 %v1269, 0.2
      %v1286 = vmul.f32 %v1270, 0.2
      %v1287 = vmul.f32 %v1271, 0.2
      %v1288 = vmul.f32 %v1272, 0.2
      %v1289 = vmul.f32 %v1273, 0.2
      %v1290 = vmul.f32 %v1274, 0.2
      %v1291 = vmul.f32 %v1275, 0.2
      %v1292 = vmul.f32 %v1276, 0.2
      %v1293 = vsel %vm1277, %v1269, %v1285
      %v1294 = vsel %vm1278, %v1270, %v1286
      %v1295 = vsel %vm1279, %v1271, %v1287
      %v1296 = vsel %vm1280, %v1272, %v1288
      %v1297 = vsel %vm1281, %v1273, %v1289
      %v1298 = vsel %vm1282, %v1274, %v1290
      %v1299 = vsel %vm1283, %v1275, %v1291
      %v1300 = vsel %vm1284, %v1276, %v1292
      %v1301 = vpack.c.bf16 %v1293, %v1293
      %v1302 = vpack.c.bf16 %v1294, %v1294
      %v1303 = vpack.c.bf16 %v1295, %v1295
      %v1304 = vpack.c.bf16 %v1296, %v1296
      %v1305 = vpack.c.bf16 %v1297, %v1297
      %v1306 = vpack.c.bf16 %v1298, %v1298
      %v1307 = vpack.c.bf16 %v1299, %v1299
      %v1308 = vpack.c.bf16 %v1300, %v1300
      %v1317 = vunpack.c.l.b16 %v1301
      %v1318 = vunpack.c.l.b16 %v1302
      %v1319 = vunpack.c.l.b16 %v1303
      %v1320 = vunpack.c.l.b16 %v1304
      %v1321 = vunpack.c.l.b16 %v1305
      %v1322 = vunpack.c.l.b16 %v1306
      %v1323 = vunpack.c.l.b16 %v1307
      %v1324 = vunpack.c.l.b16 %v1308
      %v1325 = vpack.c.b16 %v1317, %v1317
      %v1326 = vpack.c.b16 %v1318, %v1318
      %v1327 = vpack.c.b16 %v1319, %v1319
      %v1328 = vpack.c.b16 %v1320, %v1320
      %v1329 = vpack.c.b16 %v1321, %v1321
      %v1330 = vpack.c.b16 %v1322, %v1322
      %v1331 = vpack.c.b16 %v1323, %v1323
      %v1332 = vpack.c.b16 %v1324, %v1324
      %1333 = vrot.lane.b32.xlu0 %v1325, 88
      %v1334 = vpop.permute.xlu0 %1333
      %1335 = vrot.lane.b32.xlu0 %v1326, 88
      %v1336 = vpop.permute.xlu0 %1335
      %1337 = vrot.lane.b32.xlu0 %v1327, 88
      %v1338 = vpop.permute.xlu0 %1337
      %1339 = vrot.lane.b32.xlu0 %v1328, 88
      %v1340 = vpop.permute.xlu0 %1339
      %1341 = vrot.lane.b32.xlu0 %v1329, 88
      %v1342 = vpop.permute.xlu0 %1341
      %1343 = vrot.lane.b32.xlu0 %v1330, 88
      %v1344 = vpop.permute.xlu0 %1343
      %1345 = vrot.lane.b32.xlu0 %v1331, 88
      %v1346 = vpop.permute.xlu0 %1345
      %1347 = vrot.lane.b32.xlu0 %v1332, 88
      %v1348 = vpop.permute.xlu0 %1347
      %vm1357 = vcmask 782016
      %1358 = vst.msk [vmem:[#allocation2] sm:$0xf] %vm1357, %v1334
      %1359 = vst.msk [vmem:[#allocation2 + $0x4] sm:$0xf] %vm1357, %v1336
      %1360 = vst.msk [vmem:[#allocation2 + $0x8] sm:$0xf] %vm1357, %v1338
      %1361 = vst.msk [vmem:[#allocation2 + $0xc] sm:$0xf] %vm1357, %v1340
      %1362 = vst.msk [vmem:[#allocation2 + $0x10] sm:$0xf] %vm1357, %v1342
      %1363 = vst.msk [vmem:[#allocation2 + $0x14] sm:$0xf] %vm1357, %v1344
      %1364 = vst.msk [vmem:[#allocation2 + $0x18] sm:$0xf] %vm1357, %v1346
      %1365 = vst.msk [vmem:[#allocation2 + $0x1c] sm:$0xf] %vm1357, %v1348
      %s1366 = scalar_lea.vmem %s230, 192
      %v1367 = vld [vmem:[%s1366] sm:$0xff]
      %v1368 = vld [vmem:[%s1366 + $0x10] sm:$0xff]
      %v1369 = vld [vmem:[%s1366 + $0x20] sm:$0xff]
      %v1370 = vld [vmem:[%s1366 + $0x30] sm:$0xff]
      %v1371 = vld [vmem:[%s1366 + $0x40] sm:$0xff]
      %v1372 = vld [vmem:[%s1366 + $0x50] sm:$0xff]
      %v1373 = vld [vmem:[%s1366 + $0x60] sm:$0xff]
      %v1374 = vld [vmem:[%s1366 + $0x70] sm:$0xff]
      %vm1375 = vcmp.gt.f32.partialorder %v1367, 0.0
      %vm1376 = vcmp.gt.f32.partialorder %v1368, 0.0
      %vm1377 = vcmp.gt.f32.partialorder %v1369, 0.0
      %vm1378 = vcmp.gt.f32.partialorder %v1370, 0.0
      %vm1379 = vcmp.gt.f32.partialorder %v1371, 0.0
      %vm1380 = vcmp.gt.f32.partialorder %v1372, 0.0
      %vm1381 = vcmp.gt.f32.partialorder %v1373, 0.0
      %vm1382 = vcmp.gt.f32.partialorder %v1374, 0.0
      %v1383 = vmul.f32 %v1367, 0.2
      %v1384 = vmul.f32 %v1368, 0.2
      %v1385 = vmul.f32 %v1369, 0.2
      %v1386 = vmul.f32 %v1370, 0.2
      %v1387 = vmul.f32 %v1371, 0.2
      %v1388 = vmul.f32 %v1372, 0.2
      %v1389 = vmul.f32 %v1373, 0.2
      %v1390 = vmul.f32 %v1374, 0.2
      %v1391 = vsel %vm1375, %v1367, %v1383
      %v1392 = vsel %vm1376, %v1368, %v1384
      %v1393 = vsel %vm1377, %v1369, %v1385
      %v1394 = vsel %vm1378, %v1370, %v1386
      %v1395 = vsel %vm1379, %v1371, %v1387
      %v1396 = vsel %vm1380, %v1372, %v1388
      %v1397 = vsel %vm1381, %v1373, %v1389
      %v1398 = vsel %vm1382, %v1374, %v1390
      %v1399 = vpack.c.bf16 %v1391, %v1391
      %v1400 = vpack.c.bf16 %v1392, %v1392
      %v1401 = vpack.c.bf16 %v1393, %v1393
      %v1402 = vpack.c.bf16 %v1394, %v1394
      %v1403 = vpack.c.bf16 %v1395, %v1395
      %v1404 = vpack.c.bf16 %v1396, %v1396
      %v1405 = vpack.c.bf16 %v1397, %v1397
      %v1406 = vpack.c.bf16 %v1398, %v1398
      %v1415 = vunpack.c.l.b16 %v1399
      %v1416 = vunpack.c.l.b16 %v1400
      %v1417 = vunpack.c.l.b16 %v1401
      %v1418 = vunpack.c.l.b16 %v1402
      %v1419 = vunpack.c.l.b16 %v1403
      %v1420 = vunpack.c.l.b16 %v1404
      %v1421 = vunpack.c.l.b16 %v1405
      %v1422 = vunpack.c.l.b16 %v1406
      %v1423 = vpack.c.b16 %v1415, %v1415
      %v1424 = vpack.c.b16 %v1416, %v1416
      %v1425 = vpack.c.b16 %v1417, %v1417
      %v1426 = vpack.c.b16 %v1418, %v1418
      %v1427 = vpack.c.b16 %v1419, %v1419
      %v1428 = vpack.c.b16 %v1420, %v1420
      %v1429 = vpack.c.b16 %v1421, %v1421
      %v1430 = vpack.c.b16 %v1422, %v1422
      %1431 = vrot.lane.b32.xlu0 %v1423, 96
      %v1432 = vpop.permute.xlu0 %1431
      %1433 = vrot.lane.b32.xlu0 %v1424, 96
      %v1434 = vpop.permute.xlu0 %1433
      %1435 = vrot.lane.b32.xlu0 %v1425, 96
      %v1436 = vpop.permute.xlu0 %1435
      %1437 = vrot.lane.b32.xlu0 %v1426, 96
      %v1438 = vpop.permute.xlu0 %1437
      %1439 = vrot.lane.b32.xlu0 %v1427, 96
      %v1440 = vpop.permute.xlu0 %1439
      %1441 = vrot.lane.b32.xlu0 %v1428, 96
      %v1442 = vpop.permute.xlu0 %1441
      %1443 = vrot.lane.b32.xlu0 %v1429, 96
      %v1444 = vpop.permute.xlu0 %1443
      %1445 = vrot.lane.b32.xlu0 %v1430, 96
      %v1446 = vpop.permute.xlu0 %1445
      %vm1455 = vcmask 847616
      %1456 = vst.msk [vmem:[#allocation2] sm:$0xf] %vm1455, %v1432
      %1457 = vst.msk [vmem:[#allocation2 + $0x4] sm:$0xf] %vm1455, %v1434
      %1458 = vst.msk [vmem:[#allocation2 + $0x8] sm:$0xf] %vm1455, %v1436
      %1459 = vst.msk [vmem:[#allocation2 + $0xc] sm:$0xf] %vm1455, %v1438
      %1460 = vst.msk [vmem:[#allocation2 + $0x10] sm:$0xf] %vm1455, %v1440
      %1461 = vst.msk [vmem:[#allocation2 + $0x14] sm:$0xf] %vm1455, %v1442
      %1462 = vst.msk [vmem:[#allocation2 + $0x18] sm:$0xf] %vm1455, %v1444
      %1463 = vst.msk [vmem:[#allocation2 + $0x1c] sm:$0xf] %vm1455, %v1446
      %s1464 = scalar_lea.vmem %s230, 32
      %v1465 = vld [vmem:[%s1464 + $0x1] sm:$0xff]
      %v1466 = vld [vmem:[%s1464 + $0x11] sm:$0xff]
      %v1467 = vld [vmem:[%s1464 + $0x21] sm:$0xff]
      %v1468 = vld [vmem:[%s1464 + $0x31] sm:$0xff]
      %v1469 = vld [vmem:[%s1464 + $0x41] sm:$0xff]
      %v1470 = vld [vmem:[%s1464 + $0x51] sm:$0xff]
      %v1471 = vld [vmem:[%s1464 + $0x61] sm:$0xff]
      %v1472 = vld [vmem:[%s1464 + $0x71] sm:$0xff]
      %vm1473 = vcmp.gt.f32.partialorder %v1465, 0.0
      %vm1474 = vcmp.gt.f32.partialorder %v1466, 0.0
      %vm1475 = vcmp.gt.f32.partialorder %v1467, 0.0
      %vm1476 = vcmp.gt.f32.partialorder %v1468, 0.0
      %vm1477 = vcmp.gt.f32.partialorder %v1469, 0.0
      %vm1478 = vcmp.gt.f32.partialorder %v1470, 0.0
      %vm1479 = vcmp.gt.f32.partialorder %v1471, 0.0
      %vm1480 = vcmp.gt.f32.partialorder %v1472, 0.0
      %v1481 = vmul.f32 %v1465, 0.2
      %v1482 = vmul.f32 %v1466, 0.2
      %v1483 = vmul.f32 %v1467, 0.2
      %v1484 = vmul.f32 %v1468, 0.2
      %v1485 = vmul.f32 %v1469, 0.2
      %v1486 = vmul.f32 %v1470, 0.2
      %v1487 = vmul.f32 %v1471, 0.2
      %v1488 = vmul.f32 %v1472, 0.2
      %v1489 = vsel %vm1473, %v1465, %v1481
      %v1490 = vsel %vm1474, %v1466, %v1482
      %v1491 = vsel %vm1475, %v1467, %v1483
      %v1492 = vsel %vm1476, %v1468, %v1484
      %v1493 = vsel %vm1477, %v1469, %v1485
      %v1494 = vsel %vm1478, %v1470, %v1486
      %v1495 = vsel %vm1479, %v1471, %v1487
      %v1496 = vsel %vm1480, %v1472, %v1488
      %v1497 = vpack.c.bf16 %v1489, %v1489
      %v1498 = vpack.c.bf16 %v1490, %v1490
      %v1499 = vpack.c.bf16 %v1491, %v1491
      %v1500 = vpack.c.bf16 %v1492, %v1492
      %v1501 = vpack.c.bf16 %v1493, %v1493
      %v1502 = vpack.c.bf16 %v1494, %v1494
      %v1503 = vpack.c.bf16 %v1495, %v1495
      %v1504 = vpack.c.bf16 %v1496, %v1496
      %v1513 = vunpack.c.l.b16 %v1497
      %v1514 = vunpack.c.l.b16 %v1498
      %v1515 = vunpack.c.l.b16 %v1499
      %v1516 = vunpack.c.l.b16 %v1500
      %v1517 = vunpack.c.l.b16 %v1501
      %v1518 = vunpack.c.l.b16 %v1502
      %v1519 = vunpack.c.l.b16 %v1503
      %v1520 = vunpack.c.l.b16 %v1504
      %v1521 = vpack.c.b16 %v1513, %v1513
      %v1522 = vpack.c.b16 %v1514, %v1514
      %v1523 = vpack.c.b16 %v1515, %v1515
      %v1524 = vpack.c.b16 %v1516, %v1516
      %v1525 = vpack.c.b16 %v1517, %v1517
      %v1526 = vpack.c.b16 %v1518, %v1518
      %v1527 = vpack.c.b16 %v1519, %v1519
      %v1528 = vpack.c.b16 %v1520, %v1520
      %1529 = vrot.lane.b32.xlu0 %v1521, 104
      %v1530 = vpop.permute.xlu0 %1529
      %1531 = vrot.lane.b32.xlu0 %v1522, 104
      %v1532 = vpop.permute.xlu0 %1531
      %1533 = vrot.lane.b32.xlu0 %v1523, 104
      %v1534 = vpop.permute.xlu0 %1533
      %1535 = vrot.lane.b32.xlu0 %v1524, 104
      %v1536 = vpop.permute.xlu0 %1535
      %1537 = vrot.lane.b32.xlu0 %v1525, 104
      %v1538 = vpop.permute.xlu0 %1537
      %1539 = vrot.lane.b32.xlu0 %v1526, 104
      %v1540 = vpop.permute.xlu0 %1539
      %1541 = vrot.lane.b32.xlu0 %v1527, 104
      %v1542 = vpop.permute.xlu0 %1541
      %1543 = vrot.lane.b32.xlu0 %v1528, 104
      %v1544 = vpop.permute.xlu0 %1543
      %vm1553 = vcmask 913216
      %1554 = vst.msk [vmem:[#allocation2] sm:$0xf] %vm1553, %v1530
      %1555 = vst.msk [vmem:[#allocation2 + $0x4] sm:$0xf] %vm1553, %v1532
      %1556 = vst.msk [vmem:[#allocation2 + $0x8] sm:$0xf] %vm1553, %v1534
      %1557 = vst.msk [vmem:[#allocation2 + $0xc] sm:$0xf] %vm1553, %v1536
      %1558 = vst.msk [vmem:[#allocation2 + $0x10] sm:$0xf] %vm1553, %v1538
      %1559 = vst.msk [vmem:[#allocation2 + $0x14] sm:$0xf] %vm1553, %v1540
      %1560 = vst.msk [vmem:[#allocation2 + $0x18] sm:$0xf] %vm1553, %v1542
      %1561 = vst.msk [vmem:[#allocation2 + $0x1c] sm:$0xf] %vm1553, %v1544
      %v1562 = vld [vmem:[%s1366 + $0x1] sm:$0xff]
      %v1563 = vld [vmem:[%s1366 + $0x11] sm:$0xff]
      %v1564 = vld [vmem:[%s1366 + $0x21] sm:$0xff]
      %v1565 = vld [vmem:[%s1366 + $0x31] sm:$0xff]
      %v1566 = vld [vmem:[%s1366 + $0x41] sm:$0xff]
      %v1567 = vld [vmem:[%s1366 + $0x51] sm:$0xff]
      %v1568 = vld [vmem:[%s1366 + $0x61] sm:$0xff]
      %v1569 = vld [vmem:[%s1366 + $0x71] sm:$0xff]
      %vm1570 = vcmp.gt.f32.partialorder %v1562, 0.0
      %vm1571 = vcmp.gt.f32.partialorder %v1563, 0.0
      %vm1572 = vcmp.gt.f32.partialorder %v1564, 0.0
      %vm1573 = vcmp.gt.f32.partialorder %v1565, 0.0
      %vm1574 = vcmp.gt.f32.partialorder %v1566, 0.0
      %vm1575 = vcmp.gt.f32.partialorder %v1567, 0.0
      %vm1576 = vcmp.gt.f32.partialorder %v1568, 0.0
      %vm1577 = vcmp.gt.f32.partialorder %v1569, 0.0
      %v1578 = vmul.f32 %v1562, 0.2
      %v1579 = vmul.f32 %v1563, 0.2
      %v1580 = vmul.f32 %v1564, 0.2
      %v1581 = vmul.f32 %v1565, 0.2
      %v1582 = vmul.f32 %v1566, 0.2
      %v1583 = vmul.f32 %v1567, 0.2
      %v1584 = vmul.f32 %v1568, 0.2
      %v1585 = vmul.f32 %v1569, 0.2
      %v1586 = vsel %vm1570, %v1562, %v1578
      %v1587 = vsel %vm1571, %v1563, %v1579
      %v1588 = vsel %vm1572, %v1564, %v1580
      %v1589 = vsel %vm1573, %v1565, %v1581
      %v1590 = vsel %vm1574, %v1566, %v1582
      %v1591 = vsel %vm1575, %v1567, %v1583
      %v1592 = vsel %vm1576, %v1568, %v1584
      %v1593 = vsel %vm1577, %v1569, %v1585
      %v1594 = vpack.c.bf16 %v1586, %v1586
      %v1595 = vpack.c.bf16 %v1587, %v1587
      %v1596 = vpack.c.bf16 %v1588, %v1588
      %v1597 = vpack.c.bf16 %v1589, %v1589
      %v1598 = vpack.c.bf16 %v1590, %v1590
      %v1599 = vpack.c.bf16 %v1591, %v1591
      %v1600 = vpack.c.bf16 %v1592, %v1592
      %v1601 = vpack.c.bf16 %v1593, %v1593
      %v1610 = vunpack.c.l.b16 %v1594
      %v1611 = vunpack.c.l.b16 %v1595
      %v1612 = vunpack.c.l.b16 %v1596
      %v1613 = vunpack.c.l.b16 %v1597
      %v1614 = vunpack.c.l.b16 %v1598
      %v1615 = vunpack.c.l.b16 %v1599
      %v1616 = vunpack.c.l.b16 %v1600
      %v1617 = vunpack.c.l.b16 %v1601
      %v1618 = vpack.c.b16 %v1610, %v1610
      %v1619 = vpack.c.b16 %v1611, %v1611
      %v1620 = vpack.c.b16 %v1612, %v1612
      %v1621 = vpack.c.b16 %v1613, %v1613
      %v1622 = vpack.c.b16 %v1614, %v1614
      %v1623 = vpack.c.b16 %v1615, %v1615
      %v1624 = vpack.c.b16 %v1616, %v1616
      %v1625 = vpack.c.b16 %v1617, %v1617
      %1626 = vrot.lane.b32.xlu0 %v1618, 112
      %v1627 = vpop.permute.xlu0 %1626
      %1628 = vrot.lane.b32.xlu0 %v1619, 112
      %v1629 = vpop.permute.xlu0 %1628
      %1630 = vrot.lane.b32.xlu0 %v1620, 112
      %v1631 = vpop.permute.xlu0 %1630
      %1632 = vrot.lane.b32.xlu0 %v1621, 112
      %v1633 = vpop.permute.xlu0 %1632
      %1634 = vrot.lane.b32.xlu0 %v1622, 112
      %v1635 = vpop.permute.xlu0 %1634
      %1636 = vrot.lane.b32.xlu0 %v1623, 112
      %v1637 = vpop.permute.xlu0 %1636
      %1638 = vrot.lane.b32.xlu0 %v1624, 112
      %v1639 = vpop.permute.xlu0 %1638
      %1640 = vrot.lane.b32.xlu0 %v1625, 112
      %v1641 = vpop.permute.xlu0 %1640
      %vm1650 = vcmask 978816
      %1651 = vst.msk [vmem:[#allocation2] sm:$0xf] %vm1650, %v1627
      %1652 = vst.msk [vmem:[#allocation2 + $0x4] sm:$0xf] %vm1650, %v1629
      %1653 = vst.msk [vmem:[#allocation2 + $0x8] sm:$0xf] %vm1650, %v1631
      %1654 = vst.msk [vmem:[#allocation2 + $0xc] sm:$0xf] %vm1650, %v1633
      %1655 = vst.msk [vmem:[#allocation2 + $0x10] sm:$0xf] %vm1650, %v1635
      %1656 = vst.msk [vmem:[#allocation2 + $0x14] sm:$0xf] %vm1650, %v1637
      %1657 = vst.msk [vmem:[#allocation2 + $0x18] sm:$0xf] %vm1650, %v1639
      %1658 = vst.msk [vmem:[#allocation2 + $0x1c] sm:$0xf] %vm1650, %v1641
      %v1659 = vld [vmem:[%s1464 + $0x2] sm:$0xff]
      %v1660 = vld [vmem:[%s1464 + $0x12] sm:$0xff]
      %v1661 = vld [vmem:[%s1464 + $0x22] sm:$0xff]
      %v1662 = vld [vmem:[%s1464 + $0x32] sm:$0xff]
      %v1663 = vld [vmem:[%s1464 + $0x42] sm:$0xff]
      %v1664 = vld [vmem:[%s1464 + $0x52] sm:$0xff]
      %v1665 = vld [vmem:[%s1464 + $0x62] sm:$0xff]
      %v1666 = vld [vmem:[%s1464 + $0x72] sm:$0xff]
      %vm1667 = vcmp.gt.f32.partialorder %v1659, 0.0
      %vm1668 = vcmp.gt.f32.partialorder %v1660, 0.0
      %vm1669 = vcmp.gt.f32.partialorder %v1661, 0.0
      %vm1670 = vcmp.gt.f32.partialorder %v1662, 0.0
      %vm1671 = vcmp.gt.f32.partialorder %v1663, 0.0
      %vm1672 = vcmp.gt.f32.partialorder %v1664, 0.0
      %vm1673 = vcmp.gt.f32.partialorder %v1665, 0.0
      %vm1674 = vcmp.gt.f32.partialorder %v1666, 0.0
      %v1675 = vmul.f32 %v1659, 0.2
      %v1676 = vmul.f32 %v1660, 0.2
      %v1677 = vmul.f32 %v1661, 0.2
      %v1678 = vmul.f32 %v1662, 0.2
      %v1679 = vmul.f32 %v1663, 0.2
      %v1680 = vmul.f32 %v1664, 0.2
      %v1681 = vmul.f32 %v1665, 0.2
      %v1682 = vmul.f32 %v1666, 0.2
      %v1683 = vsel %vm1667, %v1659, %v1675
      %v1684 = vsel %vm1668, %v1660, %v1676
      %v1685 = vsel %vm1669, %v1661, %v1677
      %v1686 = vsel %vm1670, %v1662, %v1678
      %v1687 = vsel %vm1671, %v1663, %v1679
      %v1688 = vsel %vm1672, %v1664, %v1680
      %v1689 = vsel %vm1673, %v1665, %v1681
      %v1690 = vsel %vm1674, %v1666, %v1682
      %v1691 = vpack.c.bf16 %v1683, %v1683
      %v1692 = vpack.c.bf16 %v1684, %v1684
      %v1693 = vpack.c.bf16 %v1685, %v1685
      %v1694 = vpack.c.bf16 %v1686, %v1686
      %v1695 = vpack.c.bf16 %v1687, %v1687
      %v1696 = vpack.c.bf16 %v1688, %v1688
      %v1697 = vpack.c.bf16 %v1689, %v1689
      %v1698 = vpack.c.bf16 %v1690, %v1690
      %v1707 = vunpack.c.l.b16 %v1691
      %v1708 = vunpack.c.l.b16 %v1692
      %v1709 = vunpack.c.l.b16 %v1693
      %v1710 = vunpack.c.l.b16 %v1694
      %v1711 = vunpack.c.l.b16 %v1695
      %v1712 = vunpack.c.l.b16 %v1696
      %v1713 = vunpack.c.l.b16 %v1697
      %v1714 = vunpack.c.l.b16 %v1698
      %v1715 = vpack.c.b16 %v1707, %v1707
      %v1716 = vpack.c.b16 %v1708, %v1708
      %v1717 = vpack.c.b16 %v1709, %v1709
      %v1718 = vpack.c.b16 %v1710, %v1710
      %v1719 = vpack.c.b16 %v1711, %v1711
      %v1720 = vpack.c.b16 %v1712, %v1712
      %v1721 = vpack.c.b16 %v1713, %v1713
      %v1722 = vpack.c.b16 %v1714, %v1714
      %1723 = vrot.lane.b32.xlu0 %v1715, 120
      %v1724 = vpop.permute.xlu0 %1723
      %1725 = vrot.lane.b32.xlu0 %v1716, 120
      %v1726 = vpop.permute.xlu0 %1725
      %1727 = vrot.lane.b32.xlu0 %v1717, 120
      %v1728 = vpop.permute.xlu0 %1727
      %1729 = vrot.lane.b32.xlu0 %v1718, 120
      %v1730 = vpop.permute.xlu0 %1729
      %1731 = vrot.lane.b32.xlu0 %v1719, 120
      %v1732 = vpop.permute.xlu0 %1731
      %1733 = vrot.lane.b32.xlu0 %v1720, 120
      %v1734 = vpop.permute.xlu0 %1733
      %1735 = vrot.lane.b32.xlu0 %v1721, 120
      %v1736 = vpop.permute.xlu0 %1735
      %1737 = vrot.lane.b32.xlu0 %v1722, 120
      %v1738 = vpop.permute.xlu0 %1737
      %vm1747 = vcmask 1044416
      %1748 = vst.msk [vmem:[#allocation2] sm:$0xf] %vm1747, %v1724
      %1749 = vst.msk [vmem:[#allocation2 + $0x4] sm:$0xf] %vm1747, %v1726
      %1750 = vst.msk [vmem:[#allocation2 + $0x8] sm:$0xf] %vm1747, %v1728
      %1751 = vst.msk [vmem:[#allocation2 + $0xc] sm:$0xf] %vm1747, %v1730
      %1752 = vst.msk [vmem:[#allocation2 + $0x10] sm:$0xf] %vm1747, %v1732
      %1753 = vst.msk [vmem:[#allocation2 + $0x14] sm:$0xf] %vm1747, %v1734
      %1754 = vst.msk [vmem:[#allocation2 + $0x18] sm:$0xf] %vm1747, %v1736
      %1755 = vst.msk [vmem:[#allocation2 + $0x1c] sm:$0xf] %vm1747, %v1738
      %v1756 = vld [vmem:[#allocation2] sm:$0xf]
      %v1757 = vld [vmem:[#allocation2 + $0x4] sm:$0xf]
      %v1758 = vld [vmem:[#allocation2 + $0x8] sm:$0xf]
      %v1759 = vld [vmem:[#allocation2 + $0xc] sm:$0xf]
      %v1760 = vld [vmem:[#allocation2 + $0x10] sm:$0xf]
      %v1761 = vld [vmem:[#allocation2 + $0x14] sm:$0xf]
      %v1762 = vld [vmem:[#allocation2 + $0x18] sm:$0xf]
      %v1763 = vld [vmem:[#allocation2 + $0x1c] sm:$0xf]
      %v1764 = vld [vmem:[%s1] sm:$0xf]
      %v1765 = vld [vmem:[%s1 + $0x4] sm:$0xf]
      %v1766 = vld [vmem:[%s1 + $0x8] sm:$0xf]
      %v1767 = vld [vmem:[%s1 + $0xc] sm:$0xf]
      %v1768 = vld [vmem:[%s1 + $0x10] sm:$0xf]
      %v1769 = vld [vmem:[%s1 + $0x14] sm:$0xf]
      %v1770 = vld [vmem:[%s1 + $0x18] sm:$0xf]
      %v1771 = vld [vmem:[%s1 + $0x1c] sm:$0xf]
      %v1772 = vld [vmem:[%s1 + $0x20] sm:$0xf]
      %v1773 = vld [vmem:[%s1 + $0x24] sm:$0xf]
      %v1774 = vld [vmem:[%s1 + $0x28] sm:$0xf]
      %v1775 = vld [vmem:[%s1 + $0x2c] sm:$0xf]
      %v1776 = vld [vmem:[%s1 + $0x30] sm:$0xf]
      %v1777 = vld [vmem:[%s1 + $0x34] sm:$0xf]
      %v1778 = vld [vmem:[%s1 + $0x38] sm:$0xf]
      %v1779 = vld [vmem:[%s1 + $0x3c] sm:$0xf]
      %v1788 = vunpack.c.l.b16 %v1756
      %v1789 = vunpack.c.l.b16 %v1757
      %v1790 = vunpack.c.l.b16 %v1758
      %v1791 = vunpack.c.l.b16 %v1759
      %v1792 = vunpack.c.l.b16 %v1760
      %v1793 = vunpack.c.l.b16 %v1761
      %v1794 = vunpack.c.l.b16 %v1762
      %v1795 = vunpack.c.l.b16 %v1763
      %v1796 = vpack.c.b16 %v1789, %v1788
      %v1797 = vpack.c.b16 %v1791, %v1790
      %v1798 = vpack.c.b16 %v1793, %v1792
      %v1799 = vpack.c.b16 %v1795, %v1794
      %v1820 = vunpack.c.l.b16 %v1764
      %v1821 = vunpack.c.l.b16 %v1765
      %v1822 = vunpack.c.l.b16 %v1766
      %v1823 = vunpack.c.l.b16 %v1767
      %v1824 = vunpack.c.l.b16 %v1768
      %v1825 = vunpack.c.l.b16 %v1769
      %v1826 = vunpack.c.l.b16 %v1770
      %v1827 = vunpack.c.l.b16 %v1771
      %v1828 = vunpack.c.l.b16 %v1772
      %v1829 = vunpack.c.l.b16 %v1773
      %v1830 = vunpack.c.l.b16 %v1774
      %v1831 = vunpack.c.l.b16 %v1775
      %v1832 = vunpack.c.l.b16 %v1776
      %v1833 = vunpack.c.l.b16 %v1777
      %v1834 = vunpack.c.l.b16 %v1778
      %v1835 = vunpack.c.l.b16 %v1779
      %v1836 = vpack.c.b16 %v1821, %v1820
      %v1837 = vpack.c.b16 %v1823, %v1822
      %v1838 = vpack.c.b16 %v1825, %v1824
      %v1839 = vpack.c.b16 %v1827, %v1826
      %v1840 = vpack.c.b16 %v1829, %v1828
      %v1841 = vpack.c.b16 %v1831, %v1830
      %v1842 = vpack.c.b16 %v1833, %v1832
      %v1843 = vpack.c.b16 %v1835, %v1834
      %1852 = vmatprep.subr.bf16.mxu0 0
      %1853 = vmatpush1.bf16.msra.mxu0 %v1836
      %1854 = vmatprep.subr.bf16.mxu0 0
      %1855 = vmatpush1.bf16.msra.mxu0 %v1837
      %1856 = vmatprep.subr.bf16.mxu0 0
      %1857 = vmatpush1.bf16.msra.mxu0 %v1838
      %1858 = vmatprep.subr.bf16.mxu0 0
      %1859 = vmatpush1.bf16.msra.mxu0 %v1839
      %1860 = vmatprep.subr.bf16.mxu0 0
      %1861 = vmatpush1.bf16.msra.mxu0 %v1840
      %1862 = vmatprep.subr.bf16.mxu0 0
      %1863 = vmatpush1.bf16.msra.mxu0 %v1841
      %1864 = vmatprep.subr.bf16.mxu0 0
      %1865 = vmatpush1.bf16.msra.mxu0 %v1842
      %1866 = vmatprep.subr.bf16.mxu0 0
      %1867 = vmatpush1.bf16.msra.mxu0 %v1843
      %1868 = vmatprep.subr.bf16.mxu0 0
      %1869 = vmatpush1.bf16.msra.mxu0 0
      %1870 = vmatprep.subr.bf16.mxu0 0
      %1871 = vmatpush1.bf16.msra.mxu0 0
      %1872 = vmatprep.subr.bf16.mxu0 0
      %1873 = vmatpush1.bf16.msra.mxu0 0
      %1874 = vmatprep.subr.bf16.mxu0 0
      %1875 = vmatpush1.bf16.msra.mxu0 0
      %1876 = vmatprep.subr.bf16.mxu0 0
      %1877 = vmatpush1.bf16.msra.mxu0 0
      %1878 = vmatprep.subr.bf16.mxu0 0
      %1879 = vmatpush1.bf16.msra.mxu0 0
      %1880 = vmatprep.subr.bf16.mxu0 0
      %1881 = vmatpush1.bf16.msra.mxu0 0
      %1882 = vmatprep.subr.bf16.mxu0 0
      %1883 = vmatpush1.bf16.msra.mxu0 0
      %1884 = vmatprep.mubr.bf16.mxu0 0
      %1885 = vmatmul.mubr.bf16.gmra.mrb[0].mxu0 %v1796
      %v1886 = vpop.f32.mrb[0].mxu0
      %v1887 = vadd.f32 0.0, %v1886
      %v1888 = vpop.f32.mrb[0].mxu0
      %v1889 = vpop.f32.mrb[0].mxu0
      %v1890 = vadd.f32 0.0, %v1889
      %v1891 = vpop.f32.mrb[0].mxu0
      %1892 = vmatprep.mubr.bf16.mxu0 0
      %1893 = vmatmul.mubr.bf16.gmra.mrb[0].mxu0 %v1797
      %v1894 = vpop.f32.mrb[0].mxu0
      %v1895 = vadd.f32 0.0, %v1894
      %v1896 = vpop.f32.mrb[0].mxu0
      %v1897 = vpop.f32.mrb[0].mxu0
      %v1898 = vadd.f32 0.0, %v1897
      %v1899 = vpop.f32.mrb[0].mxu0
      %1900 = vmatprep.mubr.bf16.mxu0 0
      %1901 = vmatmul.mubr.bf16.gmra.mrb[0].mxu0 %v1798
      %v1902 = vpop.f32.mrb[0].mxu0
      %v1903 = vadd.f32 0.0, %v1902
      %v1904 = vpop.f32.mrb[0].mxu0
      %v1905 = vpop.f32.mrb[0].mxu0
      %v1906 = vadd.f32 0.0, %v1905
      %v1907 = vpop.f32.mrb[0].mxu0
      %1908 = vmatprep.mubr.bf16.mxu0 0
      %1909 = vmatmul.mubr.bf16.gmra.mrb[0].mxu0 %v1799
      %v1910 = vpop.f32.mrb[0].mxu0
      %v1911 = vadd.f32 0.0, %v1910
      %v1912 = vpop.f32.mrb[0].mxu0
      %v1913 = vpop.f32.mrb[0].mxu0
      %v1914 = vadd.f32 0.0, %v1913
      %v1915 = vpop.f32.mrb[0].mxu0
      %1916 = vdwg.mxu0
      %v1917 = vmax.f32 %v1887, 0.0
      %v1918 = vmax.f32 %v1890, 0.0
      %v1919 = vmax.f32 %v1895, 0.0
      %v1920 = vmax.f32 %v1898, 0.0
      %v1921 = vmax.f32 %v1903, 0.0
      %v1922 = vmax.f32 %v1906, 0.0
      %v1923 = vmax.f32 %v1911, 0.0
      %v1924 = vmax.f32 %v1914, 0.0
      %vm1925 = vcmask 130048
      %1926 = vst.msk [vmem:[#allocation3] sm:$0xff] %vm1925, 0.0
      %vm1927 = vcmask 123904
      %1928 = vst.msk [vmem:[#allocation3 + $0x8] sm:$0x3] %vm1927, 0.0
      %1929 = vst.msk [vmem:[#allocation3 + $0x10] sm:$0xff] %vm1925, 0.0
      %1930 = vst.msk [vmem:[#allocation3 + $0x18] sm:$0x3] %vm1927, 0.0
      %1931 = vst.msk [vmem:[#allocation3 + $0x20] sm:$0xff] %vm1925, 0.0
      %1932 = vst.msk [vmem:[#allocation3 + $0x28] sm:$0x3] %vm1927, 0.0
      %1933 = vst.msk [vmem:[#allocation3 + $0x30] sm:$0xff] %vm1925, 0.0
      %1934 = vst.msk [vmem:[#allocation3 + $0x38] sm:$0x3] %vm1927, 0.0
      %1935 = vst.msk [vmem:[#allocation3 + $0x40] sm:$0xff] %vm1925, 0.0
      %1936 = vst.msk [vmem:[#allocation3 + $0x48] sm:$0x3] %vm1927, 0.0
      %1937 = vst.msk [vmem:[#allocation3 + $0x50] sm:$0xff] %vm1925, 0.0
      %1938 = vst.msk [vmem:[#allocation3 + $0x58] sm:$0x3] %vm1927, 0.0
      %1939 = vst.msk [vmem:[#allocation3 + $0x60] sm:$0xff] %vm1925, 0.0
      %1940 = vst.msk [vmem:[#allocation3 + $0x68] sm:$0x3] %vm1927, 0.0
      %1941 = vst.msk [vmem:[#allocation3 + $0x70] sm:$0xff] %vm1925, 0.0
      %1942 = vst.msk [vmem:[#allocation3 + $0x78] sm:$0x3] %vm1927, 0.0
      %1943 = vst.msk [vmem:[#allocation3 + $0x80] sm:$0xff] %vm1925, 0.0
      %1944 = vst.msk [vmem:[#allocation3 + $0x88] sm:$0x3] %vm1927, 0.0
      %1945 = vst.msk [vmem:[#allocation3 + $0x90] sm:$0xff] %vm1925, 0.0
      %1946 = vst.msk [vmem:[#allocation3 + $0x98] sm:$0x3] %vm1927, 0.0
      %s1947 = scalar_lea.vmem [#allocation3], 16
      %1948 = vst.msk [vmem:[%s1947 + $0x1] sm:$0xff] %vm1925, %v1917
      %1949 = vst.msk [vmem:[%s1947 + $0x11] sm:$0xff] %vm1925, %v1918
      %1950 = vst.msk [vmem:[%s1947 + $0x21] sm:$0xff] %vm1925, %v1919
      %1951 = vst.msk [vmem:[%s1947 + $0x31] sm:$0xff] %vm1925, %v1920
      %1952 = vst.msk [vmem:[%s1947 + $0x41] sm:$0xff] %vm1925, %v1921
      %1953 = vst.msk [vmem:[%s1947 + $0x51] sm:$0xff] %vm1925, %v1922
      %1954 = vst.msk [vmem:[%s1947 + $0x61] sm:$0xff] %vm1925, %v1923
      %1955 = vst.msk [vmem:[%s1947 + $0x71] sm:$0xff] %vm1925, %v1924
      %v1956 = vld [vmem:[#allocation3] sm:$0xff]
      %v1957 = vld [vmem:[#allocation3 + $0x10] sm:$0xff]
      %v1958 = vld [vmem:[#allocation3 + $0x20] sm:$0xff]
      %v1959 = vld [vmem:[#allocation3 + $0x30] sm:$0xff]
      %v1960 = vld [vmem:[#allocation3 + $0x40] sm:$0xff]
      %v1961 = vld [vmem:[#allocation3 + $0x50] sm:$0xff]
      %v1962 = vld [vmem:[#allocation3 + $0x60] sm:$0xff]
      %v1963 = vld [vmem:[#allocation3 + $0x70] sm:$0xff]
      %v1964 = vpack.c.bf16 %v1956, %v1956
      %v1965 = vpack.c.bf16 %v1957, %v1957
      %v1966 = vpack.c.bf16 %v1958, %v1958
      %v1967 = vpack.c.bf16 %v1959, %v1959
      %v1968 = vpack.c.bf16 %v1960, %v1960
      %v1969 = vpack.c.bf16 %v1961, %v1961
      %v1970 = vpack.c.bf16 %v1962, %v1962
      %v1971 = vpack.c.bf16 %v1963, %v1963
      %vm1972 = vcmask 125952
      %1973 = vst.msk [vmem:[#allocation4] sm:$0xf] %vm1972, %v1964
      %1974 = vst.msk [vmem:[#allocation4 + $0x8] sm:$0xf] %vm1972, %v1965
      %1975 = vst.msk [vmem:[#allocation4 + $0x10] sm:$0xf] %vm1972, %v1966
      %1976 = vst.msk [vmem:[#allocation4 + $0x18] sm:$0xf] %vm1972, %v1967
      %1977 = vst.msk [vmem:[#allocation4 + $0x20] sm:$0xf] %vm1972, %v1968
      %1978 = vst.msk [vmem:[#allocation4 + $0x28] sm:$0xf] %vm1972, %v1969
      %1979 = vst.msk [vmem:[#allocation4 + $0x30] sm:$0xf] %vm1972, %v1970
      %1980 = vst.msk [vmem:[#allocation4 + $0x38] sm:$0xf] %vm1972, %v1971
      %v1981 = vld [vmem:[#allocation3 + $0x1] sm:$0xff]
      %v1982 = vld [vmem:[#allocation3 + $0x11] sm:$0xff]
      %v1983 = vld [vmem:[#allocation3 + $0x21] sm:$0xff]
      %v1984 = vld [vmem:[#allocation3 + $0x31] sm:$0xff]
      %v1985 = vld [vmem:[#allocation3 + $0x41] sm:$0xff]
      %v1986 = vld [vmem:[#allocation3 + $0x51] sm:$0xff]
      %v1987 = vld [vmem:[#allocation3 + $0x61] sm:$0xff]
      %v1988 = vld [vmem:[#allocation3 + $0x71] sm:$0xff]
      %v1989 = vpack.c.bf16 %v1981, %v1981
      %v1990 = vpack.c.bf16 %v1982, %v1982
      %v1991 = vpack.c.bf16 %v1983, %v1983
      %v1992 = vpack.c.bf16 %v1984, %v1984
      %v1993 = vpack.c.bf16 %v1985, %v1985
      %v1994 = vpack.c.bf16 %v1986, %v1986
      %v1995 = vpack.c.bf16 %v1987, %v1987
      %v1996 = vpack.c.bf16 %v1988, %v1988
      %v2005 = vunpack.c.l.b16 %v1989
      %v2006 = vunpack.c.l.b16 %v1990
      %v2007 = vunpack.c.l.b16 %v1991
      %v2008 = vunpack.c.l.b16 %v1992
      %v2009 = vunpack.c.l.b16 %v1993
      %v2010 = vunpack.c.l.b16 %v1994
      %v2011 = vunpack.c.l.b16 %v1995
      %v2012 = vunpack.c.l.b16 %v1996
      %v2013 = vpack.c.b16 %v2005, %v2005
      %v2014 = vpack.c.b16 %v2006, %v2006
      %v2015 = vpack.c.b16 %v2007, %v2007
      %v2016 = vpack.c.b16 %v2008, %v2008
      %v2017 = vpack.c.b16 %v2009, %v2009
      %v2018 = vpack.c.b16 %v2010, %v2010
      %v2019 = vpack.c.b16 %v2011, %v2011
      %v2020 = vpack.c.b16 %v2012, %v2012
      %2021 = vrot.lane.b32.xlu0 %v2013, 16
      %v2022 = vpop.permute.xlu0 %2021
      %2023 = vrot.lane.b32.xlu0 %v2014, 16
      %v2024 = vpop.permute.xlu0 %2023
      %2025 = vrot.lane.b32.xlu0 %v2015, 16
      %v2026 = vpop.permute.xlu0 %2025
      %2027 = vrot.lane.b32.xlu0 %v2016, 16
      %v2028 = vpop.permute.xlu0 %2027
      %2029 = vrot.lane.b32.xlu0 %v2017, 16
      %v2030 = vpop.permute.xlu0 %2029
      %2031 = vrot.lane.b32.xlu0 %v2018, 16
      %v2032 = vpop.permute.xlu0 %2031
      %2033 = vrot.lane.b32.xlu0 %v2019, 16
      %v2034 = vpop.permute.xlu0 %2033
      %2035 = vrot.lane.b32.xlu0 %v2020, 16
      %v2036 = vpop.permute.xlu0 %2035
      %vm2045 = vcmask 257152
      %2046 = vst.msk [vmem:[#allocation4] sm:$0xf] %vm2045, %v2022
      %2047 = vst.msk [vmem:[#allocation4 + $0x8] sm:$0xf] %vm2045, %v2024
      %2048 = vst.msk [vmem:[#allocation4 + $0x10] sm:$0xf] %vm2045, %v2026
      %2049 = vst.msk [vmem:[#allocation4 + $0x18] sm:$0xf] %vm2045, %v2028
      %2050 = vst.msk [vmem:[#allocation4 + $0x20] sm:$0xf] %vm2045, %v2030
      %2051 = vst.msk [vmem:[#allocation4 + $0x28] sm:$0xf] %vm2045, %v2032
      %2052 = vst.msk [vmem:[#allocation4 + $0x30] sm:$0xf] %vm2045, %v2034
      %2053 = vst.msk [vmem:[#allocation4 + $0x38] sm:$0xf] %vm2045, %v2036
      %v2054 = vld [vmem:[#allocation3 + $0x2] sm:$0xff]
      %v2055 = vld [vmem:[#allocation3 + $0x12] sm:$0xff]
      %v2056 = vld [vmem:[#allocation3 + $0x22] sm:$0xff]
      %v2057 = vld [vmem:[#allocation3 + $0x32] sm:$0xff]
      %v2058 = vld [vmem:[#allocation3 + $0x42] sm:$0xff]
      %v2059 = vld [vmem:[#allocation3 + $0x52] sm:$0xff]
      %v2060 = vld [vmem:[#allocation3 + $0x62] sm:$0xff]
      %v2061 = vld [vmem:[#allocation3 + $0x72] sm:$0xff]
      %v2062 = vpack.c.bf16 %v2054, %v2054
      %v2063 = vpack.c.bf16 %v2055, %v2055
      %v2064 = vpack.c.bf16 %v2056, %v2056
      %v2065 = vpack.c.bf16 %v2057, %v2057
      %v2066 = vpack.c.bf16 %v2058, %v2058
      %v2067 = vpack.c.bf16 %v2059, %v2059
      %v2068 = vpack.c.bf16 %v2060, %v2060
      %v2069 = vpack.c.bf16 %v2061, %v2061
      %v2078 = vunpack.c.l.b16 %v2062
      %v2079 = vunpack.c.l.b16 %v2063
      %v2080 = vunpack.c.l.b16 %v2064
      %v2081 = vunpack.c.l.b16 %v2065
      %v2082 = vunpack.c.l.b16 %v2066
      %v2083 = vunpack.c.l.b16 %v2067
      %v2084 = vunpack.c.l.b16 %v2068
      %v2085 = vunpack.c.l.b16 %v2069
      %v2086 = vpack.c.b16 %v2078, %v2078
      %v2087 = vpack.c.b16 %v2079, %v2079
      %v2088 = vpack.c.b16 %v2080, %v2080
      %v2089 = vpack.c.b16 %v2081, %v2081
      %v2090 = vpack.c.b16 %v2082, %v2082
      %v2091 = vpack.c.b16 %v2083, %v2083
      %v2092 = vpack.c.b16 %v2084, %v2084
      %v2093 = vpack.c.b16 %v2085, %v2085
      %2094 = vrot.lane.b32.xlu0 %v2086, 32
      %v2095 = vpop.permute.xlu0 %2094
      %2096 = vrot.lane.b32.xlu0 %v2087, 32
      %v2097 = vpop.permute.xlu0 %2096
      %2098 = vrot.lane.b32.xlu0 %v2088, 32
      %v2099 = vpop.permute.xlu0 %2098
      %2100 = vrot.lane.b32.xlu0 %v2089, 32
      %v2101 = vpop.permute.xlu0 %2100
      %2102 = vrot.lane.b32.xlu0 %v2090, 32
      %v2103 = vpop.permute.xlu0 %2102
      %2104 = vrot.lane.b32.xlu0 %v2091, 32
      %v2105 = vpop.permute.xlu0 %2104
      %2106 = vrot.lane.b32.xlu0 %v2092, 32
      %v2107 = vpop.permute.xlu0 %2106
      %2108 = vrot.lane.b32.xlu0 %v2093, 32
      %v2109 = vpop.permute.xlu0 %2108
      %vm2118 = vcmask 388352
      %2119 = vst.msk [vmem:[#allocation4] sm:$0xf] %vm2118, %v2095
      %2120 = vst.msk [vmem:[#allocation4 + $0x8] sm:$0xf] %vm2118, %v2097
      %2121 = vst.msk [vmem:[#allocation4 + $0x10] sm:$0xf] %vm2118, %v2099
      %2122 = vst.msk [vmem:[#allocation4 + $0x18] sm:$0xf] %vm2118, %v2101
      %2123 = vst.msk [vmem:[#allocation4 + $0x20] sm:$0xf] %vm2118, %v2103
      %2124 = vst.msk [vmem:[#allocation4 + $0x28] sm:$0xf] %vm2118, %v2105
      %2125 = vst.msk [vmem:[#allocation4 + $0x30] sm:$0xf] %vm2118, %v2107
      %2126 = vst.msk [vmem:[#allocation4 + $0x38] sm:$0xf] %vm2118, %v2109
      %v2127 = vld [vmem:[%s1947] sm:$0xff]
      %v2128 = vld [vmem:[%s1947 + $0x10] sm:$0xff]
      %v2129 = vld [vmem:[%s1947 + $0x20] sm:$0xff]
      %v2130 = vld [vmem:[%s1947 + $0x30] sm:$0xff]
      %v2131 = vld [vmem:[%s1947 + $0x40] sm:$0xff]
      %v2132 = vld [vmem:[%s1947 + $0x50] sm:$0xff]
      %v2133 = vld [vmem:[%s1947 + $0x60] sm:$0xff]
      %v2134 = vld [vmem:[%s1947 + $0x70] sm:$0xff]
      %v2135 = vpack.c.bf16 %v2127, %v2127
      %v2136 = vpack.c.bf16 %v2128, %v2128
      %v2137 = vpack.c.bf16 %v2129, %v2129
      %v2138 = vpack.c.bf16 %v2130, %v2130
      %v2139 = vpack.c.bf16 %v2131, %v2131
      %v2140 = vpack.c.bf16 %v2132, %v2132
      %v2141 = vpack.c.bf16 %v2133, %v2133
      %v2142 = vpack.c.bf16 %v2134, %v2134
      %v2151 = vunpack.c.l.b16 %v2135
      %v2152 = vunpack.c.l.b16 %v2136
      %v2153 = vunpack.c.l.b16 %v2137
      %v2154 = vunpack.c.l.b16 %v2138
      %v2155 = vunpack.c.l.b16 %v2139
      %v2156 = vunpack.c.l.b16 %v2140
      %v2157 = vunpack.c.l.b16 %v2141
      %v2158 = vunpack.c.l.b16 %v2142
      %v2159 = vpack.c.b16 %v2151, %v2151
      %v2160 = vpack.c.b16 %v2152, %v2152
      %v2161 = vpack.c.b16 %v2153, %v2153
      %v2162 = vpack.c.b16 %v2154, %v2154
      %v2163 = vpack.c.b16 %v2155, %v2155
      %v2164 = vpack.c.b16 %v2156, %v2156
      %v2165 = vpack.c.b16 %v2157, %v2157
      %v2166 = vpack.c.b16 %v2158, %v2158
      %2167 = vrot.lane.b32.xlu0 %v2159, 48
      %v2168 = vpop.permute.xlu0 %2167
      %2169 = vrot.lane.b32.xlu0 %v2160, 48
      %v2170 = vpop.permute.xlu0 %2169
      %2171 = vrot.lane.b32.xlu0 %v2161, 48
      %v2172 = vpop.permute.xlu0 %2171
      %2173 = vrot.lane.b32.xlu0 %v2162, 48
      %v2174 = vpop.permute.xlu0 %2173
      %2175 = vrot.lane.b32.xlu0 %v2163, 48
      %v2176 = vpop.permute.xlu0 %2175
      %2177 = vrot.lane.b32.xlu0 %v2164, 48
      %v2178 = vpop.permute.xlu0 %2177
      %2179 = vrot.lane.b32.xlu0 %v2165, 48
      %v2180 = vpop.permute.xlu0 %2179
      %2181 = vrot.lane.b32.xlu0 %v2166, 48
      %v2182 = vpop.permute.xlu0 %2181
      %vm2191 = vcmask 519552
      %2192 = vst.msk [vmem:[#allocation4] sm:$0xf] %vm2191, %v2168
      %2193 = vst.msk [vmem:[#allocation4 + $0x8] sm:$0xf] %vm2191, %v2170
      %2194 = vst.msk [vmem:[#allocation4 + $0x10] sm:$0xf] %vm2191, %v2172
      %2195 = vst.msk [vmem:[#allocation4 + $0x18] sm:$0xf] %vm2191, %v2174
      %2196 = vst.msk [vmem:[#allocation4 + $0x20] sm:$0xf] %vm2191, %v2176
      %2197 = vst.msk [vmem:[#allocation4 + $0x28] sm:$0xf] %vm2191, %v2178
      %2198 = vst.msk [vmem:[#allocation4 + $0x30] sm:$0xf] %vm2191, %v2180
      %2199 = vst.msk [vmem:[#allocation4 + $0x38] sm:$0xf] %vm2191, %v2182
      %v2200 = vld [vmem:[%s1947 + $0x1] sm:$0xff]
      %v2201 = vld [vmem:[%s1947 + $0x11] sm:$0xff]
      %v2202 = vld [vmem:[%s1947 + $0x21] sm:$0xff]
      %v2203 = vld [vmem:[%s1947 + $0x31] sm:$0xff]
      %v2204 = vld [vmem:[%s1947 + $0x41] sm:$0xff]
      %v2205 = vld [vmem:[%s1947 + $0x51] sm:$0xff]
      %v2206 = vld [vmem:[%s1947 + $0x61] sm:$0xff]
      %v2207 = vld [vmem:[%s1947 + $0x71] sm:$0xff]
      %v2208 = vpack.c.bf16 %v2200, %v2200
      %v2209 = vpack.c.bf16 %v2201, %v2201
      %v2210 = vpack.c.bf16 %v2202, %v2202
      %v2211 = vpack.c.bf16 %v2203, %v2203
      %v2212 = vpack.c.bf16 %v2204, %v2204
      %v2213 = vpack.c.bf16 %v2205, %v2205
      %v2214 = vpack.c.bf16 %v2206, %v2206
      %v2215 = vpack.c.bf16 %v2207, %v2207
      %v2224 = vunpack.c.l.b16 %v2208
      %v2225 = vunpack.c.l.b16 %v2209
      %v2226 = vunpack.c.l.b16 %v2210
      %v2227 = vunpack.c.l.b16 %v2211
      %v2228 = vunpack.c.l.b16 %v2212
      %v2229 = vunpack.c.l.b16 %v2213
      %v2230 = vunpack.c.l.b16 %v2214
      %v2231 = vunpack.c.l.b16 %v2215
      %v2232 = vpack.c.b16 %v2224, %v2224
      %v2233 = vpack.c.b16 %v2225, %v2225
      %v2234 = vpack.c.b16 %v2226, %v2226
      %v2235 = vpack.c.b16 %v2227, %v2227
      %v2236 = vpack.c.b16 %v2228, %v2228
      %v2237 = vpack.c.b16 %v2229, %v2229
      %v2238 = vpack.c.b16 %v2230, %v2230
      %v2239 = vpack.c.b16 %v2231, %v2231
      %2240 = vrot.lane.b32.xlu0 %v2232, 64
      %v2241 = vpop.permute.xlu0 %2240
      %2242 = vrot.lane.b32.xlu0 %v2233, 64
      %v2243 = vpop.permute.xlu0 %2242
      %2244 = vrot.lane.b32.xlu0 %v2234, 64
      %v2245 = vpop.permute.xlu0 %2244
      %2246 = vrot.lane.b32.xlu0 %v2235, 64
      %v2247 = vpop.permute.xlu0 %2246
      %2248 = vrot.lane.b32.xlu0 %v2236, 64
      %v2249 = vpop.permute.xlu0 %2248
      %2250 = vrot.lane.b32.xlu0 %v2237, 64
      %v2251 = vpop.permute.xlu0 %2250
      %2252 = vrot.lane.b32.xlu0 %v2238, 64
      %v2253 = vpop.permute.xlu0 %2252
      %2254 = vrot.lane.b32.xlu0 %v2239, 64
      %v2255 = vpop.permute.xlu0 %2254
      %vm2264 = vcmask 650752
      %2265 = vst.msk [vmem:[#allocation4] sm:$0xf] %vm2264, %v2241
      %2266 = vst.msk [vmem:[#allocation4 + $0x8] sm:$0xf] %vm2264, %v2243
      %2267 = vst.msk [vmem:[#allocation4 + $0x10] sm:$0xf] %vm2264, %v2245
      %2268 = vst.msk [vmem:[#allocation4 + $0x18] sm:$0xf] %vm2264, %v2247
      %2269 = vst.msk [vmem:[#allocation4 + $0x20] sm:$0xf] %vm2264, %v2249
      %2270 = vst.msk [vmem:[#allocation4 + $0x28] sm:$0xf] %vm2264, %v2251
      %2271 = vst.msk [vmem:[#allocation4 + $0x30] sm:$0xf] %vm2264, %v2253
      %2272 = vst.msk [vmem:[#allocation4 + $0x38] sm:$0xf] %vm2264, %v2255
      %v2273 = vld [vmem:[%s1947 + $0x2] sm:$0xff]
      %v2274 = vld [vmem:[%s1947 + $0x12] sm:$0xff]
      %v2275 = vld [vmem:[%s1947 + $0x22] sm:$0xff]
      %v2276 = vld [vmem:[%s1947 + $0x32] sm:$0xff]
      %v2277 = vld [vmem:[%s1947 + $0x42] sm:$0xff]
      %v2278 = vld [vmem:[%s1947 + $0x52] sm:$0xff]
      %v2279 = vld [vmem:[%s1947 + $0x62] sm:$0xff]
      %v2280 = vld [vmem:[%s1947 + $0x72] sm:$0xff]
      %v2281 = vpack.c.bf16 %v2273, %v2273
      %v2282 = vpack.c.bf16 %v2274, %v2274
      %v2283 = vpack.c.bf16 %v2275, %v2275
      %v2284 = vpack.c.bf16 %v2276, %v2276
      %v2285 = vpack.c.bf16 %v2277, %v2277
      %v2286 = vpack.c.bf16 %v2278, %v2278
      %v2287 = vpack.c.bf16 %v2279, %v2279
      %v2288 = vpack.c.bf16 %v2280, %v2280
      %v2297 = vunpack.c.l.b16 %v2281
      %v2298 = vunpack.c.l.b16 %v2282
      %v2299 = vunpack.c.l.b16 %v2283
      %v2300 = vunpack.c.l.b16 %v2284
      %v2301 = vunpack.c.l.b16 %v2285
      %v2302 = vunpack.c.l.b16 %v2286
      %v2303 = vunpack.c.l.b16 %v2287
      %v2304 = vunpack.c.l.b16 %v2288
      %v2305 = vpack.c.b16 %v2297, %v2297
      %v2306 = vpack.c.b16 %v2298, %v2298
      %v2307 = vpack.c.b16 %v2299, %v2299
      %v2308 = vpack.c.b16 %v2300, %v2300
      %v2309 = vpack.c.b16 %v2301, %v2301
      %v2310 = vpack.c.b16 %v2302, %v2302
      %v2311 = vpack.c.b16 %v2303, %v2303
      %v2312 = vpack.c.b16 %v2304, %v2304
      %2313 = vrot.lane.b32.xlu0 %v2305, 80
      %v2314 = vpop.permute.xlu0 %2313
      %2315 = vrot.lane.b32.xlu0 %v2306, 80
      %v2316 = vpop.permute.xlu0 %2315
      %2317 = vrot.lane.b32.xlu0 %v2307, 80
      %v2318 = vpop.permute.xlu0 %2317
      %2319 = vrot.lane.b32.xlu0 %v2308, 80
      %v2320 = vpop.permute.xlu0 %2319
      %2321 = vrot.lane.b32.xlu0 %v2309, 80
      %v2322 = vpop.permute.xlu0 %2321
      %2323 = vrot.lane.b32.xlu0 %v2310, 80
      %v2324 = vpop.permute.xlu0 %2323
      %2325 = vrot.lane.b32.xlu0 %v2311, 80
      %v2326 = vpop.permute.xlu0 %2325
      %2327 = vrot.lane.b32.xlu0 %v2312, 80
      %v2328 = vpop.permute.xlu0 %2327
      %vm2337 = vcmask 781952
      %2338 = vst.msk [vmem:[#allocation4] sm:$0xf] %vm2337, %v2314
      %2339 = vst.msk [vmem:[#allocation4 + $0x8] sm:$0xf] %vm2337, %v2316
      %2340 = vst.msk [vmem:[#allocation4 + $0x10] sm:$0xf] %vm2337, %v2318
      %2341 = vst.msk [vmem:[#allocation4 + $0x18] sm:$0xf] %vm2337, %v2320
      %2342 = vst.msk [vmem:[#allocation4 + $0x20] sm:$0xf] %vm2337, %v2322
      %2343 = vst.msk [vmem:[#allocation4 + $0x28] sm:$0xf] %vm2337, %v2324
      %2344 = vst.msk [vmem:[#allocation4 + $0x30] sm:$0xf] %vm2337, %v2326
      %2345 = vst.msk [vmem:[#allocation4 + $0x38] sm:$0xf] %vm2337, %v2328
      %s2346 = scalar_lea.vmem [#allocation3], 32
      %v2347 = vld [vmem:[%s2346] sm:$0xff]
      %v2348 = vld [vmem:[%s2346 + $0x10] sm:$0xff]
      %v2349 = vld [vmem:[%s2346 + $0x20] sm:$0xff]
      %v2350 = vld [vmem:[%s2346 + $0x30] sm:$0xff]
      %v2351 = vld [vmem:[%s2346 + $0x40] sm:$0xff]
      %v2352 = vld [vmem:[%s2346 + $0x50] sm:$0xff]
      %v2353 = vld [vmem:[%s2346 + $0x60] sm:$0xff]
      %v2354 = vld [vmem:[%s2346 + $0x70] sm:$0xff]
      %v2355 = vpack.c.bf16 %v2347, %v2347
      %v2356 = vpack.c.bf16 %v2348, %v2348
      %v2357 = vpack.c.bf16 %v2349, %v2349
      %v2358 = vpack.c.bf16 %v2350, %v2350
      %v2359 = vpack.c.bf16 %v2351, %v2351
      %v2360 = vpack.c.bf16 %v2352, %v2352
      %v2361 = vpack.c.bf16 %v2353, %v2353
      %v2362 = vpack.c.bf16 %v2354, %v2354
      %v2371 = vunpack.c.l.b16 %v2355
      %v2372 = vunpack.c.l.b16 %v2356
      %v2373 = vunpack.c.l.b16 %v2357
      %v2374 = vunpack.c.l.b16 %v2358
      %v2375 = vunpack.c.l.b16 %v2359
      %v2376 = vunpack.c.l.b16 %v2360
      %v2377 = vunpack.c.l.b16 %v2361
      %v2378 = vunpack.c.l.b16 %v2362
      %v2379 = vpack.c.b16 %v2371, %v2371
      %v2380 = vpack.c.b16 %v2372, %v2372
      %v2381 = vpack.c.b16 %v2373, %v2373
      %v2382 = vpack.c.b16 %v2374, %v2374
      %v2383 = vpack.c.b16 %v2375, %v2375
      %v2384 = vpack.c.b16 %v2376, %v2376
      %v2385 = vpack.c.b16 %v2377, %v2377
      %v2386 = vpack.c.b16 %v2378, %v2378
      %2387 = vrot.lane.b32.xlu0 %v2379, 96
      %v2388 = vpop.permute.xlu0 %2387
      %2389 = vrot.lane.b32.xlu0 %v2380, 96
      %v2390 = vpop.permute.xlu0 %2389
      %2391 = vrot.lane.b32.xlu0 %v2381, 96
      %v2392 = vpop.permute.xlu0 %2391
      %2393 = vrot.lane.b32.xlu0 %v2382, 96
      %v2394 = vpop.permute.xlu0 %2393
      %2395 = vrot.lane.b32.xlu0 %v2383, 96
      %v2396 = vpop.permute.xlu0 %2395
      %2397 = vrot.lane.b32.xlu0 %v2384, 96
      %v2398 = vpop.permute.xlu0 %2397
      %2399 = vrot.lane.b32.xlu0 %v2385, 96
      %v2400 = vpop.permute.xlu0 %2399
      %2401 = vrot.lane.b32.xlu0 %v2386, 96
      %v2402 = vpop.permute.xlu0 %2401
      %vm2411 = vcmask 913152
      %2412 = vst.msk [vmem:[#allocation4] sm:$0xf] %vm2411, %v2388
      %2413 = vst.msk [vmem:[#allocation4 + $0x8] sm:$0xf] %vm2411, %v2390
      %2414 = vst.msk [vmem:[#allocation4 + $0x10] sm:$0xf] %vm2411, %v2392
      %2415 = vst.msk [vmem:[#allocation4 + $0x18] sm:$0xf] %vm2411, %v2394
      %2416 = vst.msk [vmem:[#allocation4 + $0x20] sm:$0xf] %vm2411, %v2396
      %2417 = vst.msk [vmem:[#allocation4 + $0x28] sm:$0xf] %vm2411, %v2398
      %2418 = vst.msk [vmem:[#allocation4 + $0x30] sm:$0xf] %vm2411, %v2400
      %2419 = vst.msk [vmem:[#allocation4 + $0x38] sm:$0xf] %vm2411, %v2402
      %v2420 = vld [vmem:[%s2346 + $0x1] sm:$0xff]
      %v2421 = vld [vmem:[%s2346 + $0x11] sm:$0xff]
      %v2422 = vld [vmem:[%s2346 + $0x21] sm:$0xff]
      %v2423 = vld [vmem:[%s2346 + $0x31] sm:$0xff]
      %v2424 = vld [vmem:[%s2346 + $0x41] sm:$0xff]
      %v2425 = vld [vmem:[%s2346 + $0x51] sm:$0xff]
      %v2426 = vld [vmem:[%s2346 + $0x61] sm:$0xff]
      %v2427 = vld [vmem:[%s2346 + $0x71] sm:$0xff]
      %v2428 = vpack.c.bf16 %v2420, %v2420
      %v2429 = vpack.c.bf16 %v2421, %v2421
      %v2430 = vpack.c.bf16 %v2422, %v2422
      %v2431 = vpack.c.bf16 %v2423, %v2423
      %v2432 = vpack.c.bf16 %v2424, %v2424
      %v2433 = vpack.c.bf16 %v2425, %v2425
      %v2434 = vpack.c.bf16 %v2426, %v2426
      %v2435 = vpack.c.bf16 %v2427, %v2427
      %v2444 = vunpack.c.l.b16 %v2428
      %v2445 = vunpack.c.l.b16 %v2429
      %v2446 = vunpack.c.l.b16 %v2430
      %v2447 = vunpack.c.l.b16 %v2431
      %v2448 = vunpack.c.l.b16 %v2432
      %v2449 = vunpack.c.l.b16 %v2433
      %v2450 = vunpack.c.l.b16 %v2434
      %v2451 = vunpack.c.l.b16 %v2435
      %v2452 = vpack.c.b16 %v2444, %v2444
      %v2453 = vpack.c.b16 %v2445, %v2445
      %v2454 = vpack.c.b16 %v2446, %v2446
      %v2455 = vpack.c.b16 %v2447, %v2447
      %v2456 = vpack.c.b16 %v2448, %v2448
      %v2457 = vpack.c.b16 %v2449, %v2449
      %v2458 = vpack.c.b16 %v2450, %v2450
      %v2459 = vpack.c.b16 %v2451, %v2451
      %2460 = vrot.lane.b32.xlu0 %v2452, 112
      %v2461 = vpop.permute.xlu0 %2460
      %2462 = vrot.lane.b32.xlu0 %v2453, 112
      %v2463 = vpop.permute.xlu0 %2462
      %2464 = vrot.lane.b32.xlu0 %v2454, 112
      %v2465 = vpop.permute.xlu0 %2464
      %2466 = vrot.lane.b32.xlu0 %v2455, 112
      %v2467 = vpop.permute.xlu0 %2466
      %2468 = vrot.lane.b32.xlu0 %v2456, 112
      %v2469 = vpop.permute.xlu0 %2468
      %2470 = vrot.lane.b32.xlu0 %v2457, 112
      %v2471 = vpop.permute.xlu0 %2470
      %2472 = vrot.lane.b32.xlu0 %v2458, 112
      %v2473 = vpop.permute.xlu0 %2472
      %2474 = vrot.lane.b32.xlu0 %v2459, 112
      %v2475 = vpop.permute.xlu0 %2474
      %vm2484 = vcmask 1044352
      %2485 = vst.msk [vmem:[#allocation4] sm:$0xf] %vm2484, %v2461
      %2486 = vst.msk [vmem:[#allocation4 + $0x8] sm:$0xf] %vm2484, %v2463
      %2487 = vst.msk [vmem:[#allocation4 + $0x10] sm:$0xf] %vm2484, %v2465
      %2488 = vst.msk [vmem:[#allocation4 + $0x18] sm:$0xf] %vm2484, %v2467
      %2489 = vst.msk [vmem:[#allocation4 + $0x20] sm:$0xf] %vm2484, %v2469
      %2490 = vst.msk [vmem:[#allocation4 + $0x28] sm:$0xf] %vm2484, %v2471
      %2491 = vst.msk [vmem:[#allocation4 + $0x30] sm:$0xf] %vm2484, %v2473
      %2492 = vst.msk [vmem:[#allocation4 + $0x38] sm:$0xf] %vm2484, %v2475
      %v2493 = vld [vmem:[%s2346 + $0x2] sm:$0xff]
      %v2494 = vld [vmem:[%s2346 + $0x12] sm:$0xff]
      %v2495 = vld [vmem:[%s2346 + $0x22] sm:$0xff]
      %v2496 = vld [vmem:[%s2346 + $0x32] sm:$0xff]
      %v2497 = vld [vmem:[%s2346 + $0x42] sm:$0xff]
      %v2498 = vld [vmem:[%s2346 + $0x52] sm:$0xff]
      %v2499 = vld [vmem:[%s2346 + $0x62] sm:$0xff]
      %v2500 = vld [vmem:[%s2346 + $0x72] sm:$0xff]
      %v2501 = vpack.c.bf16 %v2493, %v2493
      %v2502 = vpack.c.bf16 %v2494, %v2494
      %v2503 = vpack.c.bf16 %v2495, %v2495
      %v2504 = vpack.c.bf16 %v2496, %v2496
      %v2505 = vpack.c.bf16 %v2497, %v2497
      %v2506 = vpack.c.bf16 %v2498, %v2498
      %v2507 = vpack.c.bf16 %v2499, %v2499
      %v2508 = vpack.c.bf16 %v2500, %v2500
      %2509 = vst.msk [vmem:[#allocation4 + $0x4] sm:$0xf] %vm1972, %v2501
      %2510 = vst.msk [vmem:[#allocation4 + $0xc] sm:$0xf] %vm1972, %v2502
      %2511 = vst.msk [vmem:[#allocation4 + $0x14] sm:$0xf] %vm1972, %v2503
      %2512 = vst.msk [vmem:[#allocation4 + $0x1c] sm:$0xf] %vm1972, %v2504
      %2513 = vst.msk [vmem:[#allocation4 + $0x24] sm:$0xf] %vm1972, %v2505
      %2514 = vst.msk [vmem:[#allocation4 + $0x2c] sm:$0xf] %vm1972, %v2506
      %2515 = vst.msk [vmem:[#allocation4 + $0x34] sm:$0xf] %vm1972, %v2507
      %2516 = vst.msk [vmem:[#allocation4 + $0x3c] sm:$0xf] %vm1972, %v2508
      %v2517 = vld [vmem:[#allocation4] sm:$0xff]
      %v2518 = vld [vmem:[#allocation4 + $0x8] sm:$0xff]
      %v2519 = vld [vmem:[#allocation4 + $0x10] sm:$0xff]
      %v2520 = vld [vmem:[#allocation4 + $0x18] sm:$0xff]
      %v2521 = vld [vmem:[#allocation4 + $0x20] sm:$0xff]
      %v2522 = vld [vmem:[#allocation4 + $0x28] sm:$0xff]
      %v2523 = vld [vmem:[#allocation4 + $0x30] sm:$0xff]
      %v2524 = vld [vmem:[#allocation4 + $0x38] sm:$0xff]
      %v2525 = vld [vmem:[%s2] sm:$0xf]
      %v2526 = vld [vmem:[%s2 + $0x4] sm:$0xf]
      %v2527 = vld [vmem:[%s2 + $0x8] sm:$0xf]
      %v2528 = vld [vmem:[%s2 + $0xc] sm:$0xf]
      %v2529 = vld [vmem:[%s2 + $0x10] sm:$0xf]
      %v2530 = vld [vmem:[%s2 + $0x14] sm:$0xf]
      %v2531 = vld [vmem:[%s2 + $0x18] sm:$0xf]
      %v2532 = vld [vmem:[%s2 + $0x1c] sm:$0xf]
      %v2533 = vld [vmem:[%s2 + $0x20] sm:$0xf]
      %v2534 = vld [vmem:[%s2 + $0x24] sm:$0xf]
      %v2535 = vld [vmem:[%s2 + $0x28] sm:$0xf]
      %v2536 = vld [vmem:[%s2 + $0x2c] sm:$0xf]
      %v2537 = vld [vmem:[%s2 + $0x30] sm:$0xf]
      %v2538 = vld [vmem:[%s2 + $0x34] sm:$0xf]
      %v2539 = vld [vmem:[%s2 + $0x38] sm:$0xf]
      %v2540 = vld [vmem:[%s2 + $0x3c] sm:$0xf]
      %v2541 = vld [vmem:[%s2 + $0x40] sm:$0xf]
      %v2542 = vld [vmem:[%s2 + $0x44] sm:$0xf]
      %v2551 = vunpack.c.l.b16 %v2517
      %v2552 = vunpack.c.h.b16 %v2517
      %v2553 = vunpack.c.l.b16 %v2518
      %v2554 = vunpack.c.h.b16 %v2518
      %v2555 = vunpack.c.l.b16 %v2519
      %v2556 = vunpack.c.h.b16 %v2519
      %v2557 = vunpack.c.l.b16 %v2520
      %v2558 = vunpack.c.h.b16 %v2520
      %v2559 = vunpack.c.l.b16 %v2521
      %v2560 = vunpack.c.h.b16 %v2521
      %v2561 = vunpack.c.l.b16 %v2522
      %v2562 = vunpack.c.h.b16 %v2522
      %v2563 = vunpack.c.l.b16 %v2523
      %v2564 = vunpack.c.h.b16 %v2523
      %v2565 = vunpack.c.l.b16 %v2524
      %v2566 = vunpack.c.h.b16 %v2524
      %v2567 = vpack.c.b16 %v2553, %v2551
      %v2568 = vpack.c.b16 %v2554, %v2552
      %v2569 = vpack.c.b16 %v2557, %v2555
      %v2570 = vpack.c.b16 %v2558, %v2556
      %v2571 = vpack.c.b16 %v2561, %v2559
      %v2572 = vpack.c.b16 %v2562, %v2560
      %v2573 = vpack.c.b16 %v2565, %v2563
      %v2574 = vpack.c.b16 %v2566, %v2564
      %v2597 = vunpack.c.l.b16 %v2525
      %v2598 = vunpack.c.l.b16 %v2526
      %v2599 = vunpack.c.l.b16 %v2527
      %v2600 = vunpack.c.l.b16 %v2528
      %v2601 = vunpack.c.l.b16 %v2529
      %v2602 = vunpack.c.l.b16 %v2530
      %v2603 = vunpack.c.l.b16 %v2531
      %v2604 = vunpack.c.l.b16 %v2532
      %v2605 = vunpack.c.l.b16 %v2533
      %v2606 = vunpack.c.l.b16 %v2534
      %v2607 = vunpack.c.l.b16 %v2535
      %v2608 = vunpack.c.l.b16 %v2536
      %v2609 = vunpack.c.l.b16 %v2537
      %v2610 = vunpack.c.l.b16 %v2538
      %v2611 = vunpack.c.l.b16 %v2539
      %v2612 = vunpack.c.l.b16 %v2540
      %v2613 = vunpack.c.l.b16 %v2541
      %v2614 = vunpack.c.l.b16 %v2542
      %v2615 = vpack.c.b16 %v2598, %v2597
      %v2616 = vpack.c.b16 %v2600, %v2599
      %v2617 = vpack.c.b16 %v2602, %v2601
      %v2618 = vpack.c.b16 %v2604, %v2603
      %v2619 = vpack.c.b16 %v2606, %v2605
      %v2620 = vpack.c.b16 %v2608, %v2607
      %v2621 = vpack.c.b16 %v2610, %v2609
      %v2622 = vpack.c.b16 %v2612, %v2611
      %v2623 = vpack.c.b16 %v2614, %v2613
      %v2634 = vsel %vm1925, %v2568, 0
      %v2637 = vsel %vm1925, %v2570, 0
      %v2640 = vsel %vm1925, %v2572, 0
      %v2643 = vsel %vm1925, %v2574, 0
      %2645 = vmatprep.subr.bf16.mxu0 0
      %2646 = vmatpush1.bf16.msra.mxu0 %v2615
      %2647 = vmatprep.subr.bf16.mxu0 0
      %2648 = vmatpush1.bf16.msra.mxu0 %v2616
      %2649 = vmatprep.subr.bf16.mxu0 0
      %2650 = vmatpush1.bf16.msra.mxu0 %v2617
      %2651 = vmatprep.subr.bf16.mxu0 0
      %2652 = vmatpush1.bf16.msra.mxu0 %v2618
      %2653 = vmatprep.subr.bf16.mxu0 0
      %2654 = vmatpush1.bf16.msra.mxu0 %v2619
      %2655 = vmatprep.subr.bf16.mxu0 0
      %2656 = vmatpush1.bf16.msra.mxu0 %v2620
      %2657 = vmatprep.subr.bf16.mxu0 0
      %2658 = vmatpush1.bf16.msra.mxu0 %v2621
      %2659 = vmatprep.subr.bf16.mxu0 0
      %2660 = vmatpush1.bf16.msra.mxu0 %v2622
      %2661 = vmatprep.subr.bf16.mxu0 0
      %2662 = vmatpush1.bf16.msra.mxu0 %v2623
      %2663 = vmatprep.subr.bf16.mxu0 0
      %2664 = vmatpush1.bf16.msra.mxu0 0
      %2665 = vmatprep.subr.bf16.mxu0 0
      %2666 = vmatpush1.bf16.msra.mxu0 0
      %2667 = vmatprep.subr.bf16.mxu0 0
      %2668 = vmatpush1.bf16.msra.mxu0 0
      %2669 = vmatprep.subr.bf16.mxu0 0
      %2670 = vmatpush1.bf16.msra.mxu0 0
      %2671 = vmatprep.subr.bf16.mxu0 0
      %2672 = vmatpush1.bf16.msra.mxu0 0
      %2673 = vmatprep.subr.bf16.mxu0 0
      %2674 = vmatpush1.bf16.msra.mxu0 0
      %2675 = vmatprep.subr.bf16.mxu0 0
      %2676 = vmatpush1.bf16.msra.mxu0 0
      %2677 = vmatprep.mubr.bf16.mxu0 %v2634
      %2678 = vmatmul.mubr.bf16.gmra.mrb[0].mxu0 %v2567
      %v2679 = vpop.f32.mrb[0].mxu0
      %v2680 = vadd.f32 0.0, %v2679
      %v2681 = vpop.f32.mrb[0].mxu0
      %v2682 = vpop.f32.mrb[0].mxu0
      %v2683 = vadd.f32 0.0, %v2682
      %v2684 = vpop.f32.mrb[0].mxu0
      %2685 = vmatprep.mubr.bf16.mxu0 %v2637
      %2686 = vmatmul.mubr.bf16.gmra.mrb[0].mxu0 %v2569
      %v2687 = vpop.f32.mrb[0].mxu0
      %v2688 = vadd.f32 0.0, %v2687
      %v2689 = vpop.f32.mrb[0].mxu0
      %v2690 = vpop.f32.mrb[0].mxu0
      %v2691 = vadd.f32 0.0, %v2690
      %v2692 = vpop.f32.mrb[0].mxu0
      %2693 = vmatprep.mubr.bf16.mxu0 %v2640
      %2694 = vmatmul.mubr.bf16.gmra.mrb[0].mxu0 %v2571
      %v2695 = vpop.f32.mrb[0].mxu0
      %v2696 = vadd.f32 0.0, %v2695
      %v2697 = vpop.f32.mrb[0].mxu0
      %v2698 = vpop.f32.mrb[0].mxu0
      %v2699 = vadd.f32 0.0, %v2698
      %v2700 = vpop.f32.mrb[0].mxu0
      %2701 = vmatprep.mubr.bf16.mxu0 %v2643
      %2702 = vmatmul.mubr.bf16.gmra.mrb[0].mxu0 %v2573
      %v2703 = vpop.f32.mrb[0].mxu0
      %v2704 = vadd.f32 0.0, %v2703
      %v2705 = vpop.f32.mrb[0].mxu0
      %v2706 = vpop.f32.mrb[0].mxu0
      %v2707 = vadd.f32 0.0, %v2706
      %v2708 = vpop.f32.mrb[0].mxu0
      %2709 = vdwg.mxu0
      %vm2710 = vcmask 261120
      %2711 = vst.msk [vmem:[%s235] sm:$0xff] %vm2710, %v2680
      %2712 = vst.msk [vmem:[%s235 + $0x8] sm:$0xff] %vm2710, %v2683
      %2713 = vst.msk [vmem:[%s235 + $0x10] sm:$0xff] %vm2710, %v2688
      %2714 = vst.msk [vmem:[%s235 + $0x18] sm:$0xff] %vm2710, %v2691
      %2715 = vst.msk [vmem:[%s235 + $0x20] sm:$0xff] %vm2710, %v2696
      %2716 = vst.msk [vmem:[%s235 + $0x28] sm:$0xff] %vm2710, %v2699
      %2717 = vst.msk [vmem:[%s235 + $0x30] sm:$0xff] %vm2710, %v2704
      %2718 = vst.msk [vmem:[%s235 + $0x38] sm:$0xff] %vm2710, %v2707
      %v2719 = vsel %vm2710, %v2680, 0.0
      %v2720 = vsel %vm2710, %v2683, 0.0
      %v2721 = vadd.f32 %v2719, %v2720
      %v2722 = vsel %vm2710, %v2688, 0.0
      %v2723 = vadd.f32 %v2721, %v2722
      %v2724 = vsel %vm2710, %v2691, 0.0
      %v2725 = vadd.f32 %v2723, %v2724
      %v2726 = vsel %vm2710, %v2696, 0.0
      %v2727 = vadd.f32 %v2725, %v2726
      %v2728 = vsel %vm2710, %v2699, 0.0
      %v2729 = vadd.f32 %v2727, %v2728
      %v2730 = vsel %vm2710, %v2704, 0.0
      %v2731 = vadd.f32 %v2729, %v2730
      %v2732 = vsel %vm2710, %v2707, 0.0
      %v2733 = vadd.f32 %v2731, %v2732
      %v2734 = vrot.slane %v2733, 4
      %v2735 = vadd.f32 %v2733, %v2734
      %v2736 = vrot.slane %v2735, 2
      %v2737 = vadd.f32 %v2735, %v2736
      %v2738 = vrot.slane %v2737, 1
      %v2739 = vadd.f32 %v2737, %v2738
      %v2740 = vmul.f32 %v2739, 0.015625
      %v2741 = vsub.f32 %v2680, %v2740
      %v2742 = vsub.f32 %v2683, %v2740
      %v2743 = vsub.f32 %v2688, %v2740
      %v2744 = vsub.f32 %v2691, %v2740
      %v2745 = vsub.f32 %v2696, %v2740
      %v2746 = vsub.f32 %v2699, %v2740
      %v2747 = vsub.f32 %v2704, %v2740
      %v2748 = vsub.f32 %v2707, %v2740
      %vm2749 = vcmask 253952
      %2750 = vst.msk [vmem:[%s239] sm:$0x1] %vm2749, %v2739
      %v2751 = vmul.f32 %v2741, %v2741
      %v2752 = vmul.f32 %v2742, %v2742
      %v2753 = vmul.f32 %v2743, %v2743
      %v2754 = vmul.f32 %v2744, %v2744
      %v2755 = vmul.f32 %v2745, %v2745
      %v2756 = vmul.f32 %v2746, %v2746
      %v2757 = vmul.f32 %v2747, %v2747
      %v2758 = vmul.f32 %v2748, %v2748
      %v2759 = vsel %vm2710, %v2751, 0.0
      %v2760 = vsel %vm2710, %v2752, 0.0
      %v2761 = vadd.f32 %v2759, %v2760
      %v2762 = vsel %vm2710, %v2753, 0.0
      %v2763 = vadd.f32 %v2761, %v2762
      %v2764 = vsel %vm2710, %v2754, 0.0
      %v2765 = vadd.f32 %v2763, %v2764
      %v2766 = vsel %vm2710, %v2755, 0.0
      %v2767 = vadd.f32 %v2765, %v2766
      %v2768 = vsel %vm2710, %v2756, 0.0
      %v2769 = vadd.f32 %v2767, %v2768
      %v2770 = vsel %vm2710, %v2757, 0.0
      %v2771 = vadd.f32 %v2769, %v2770
      %v2772 = vsel %vm2710, %v2758, 0.0
      %v2773 = vadd.f32 %v2771, %v2772
      %v2774 = vrot.slane %v2773, 4
      %v2775 = vadd.f32 %v2773, %v2774
      %v2776 = vrot.slane %v2775, 2
      %v2777 = vadd.f32 %v2775, %v2776
      %v2778 = vrot.slane %v2777, 1
      %v2779 = vadd.f32 %v2777, %v2778
      %2780 = vst.msk [vmem:[%s242] sm:$0x1] %vm2749, %v2779
      %s2781 = smul.u32 8, %s17
      %p2782 = scmp.lt.s32.totalorder %s2781, 15
      %s2783 = scalar_select %p2782, %s2781, 15
      %s2784 = smul.addr %s2783, 8
      %s2785 = scalar_lea.vmem %s3, %s2784
      %p2786 = scmp.lt.s32.totalorder %s17, 1
      %s2787 = scalar_select %p2786, %s17, 1
      %s2788 = scalar_lea.vmem %s4, %s2787
      %p2789 = scmp.lt.s32.totalorder %s17, 1
      %s2790 = scalar_select %p2789, %s17, 1
      %s2791 = scalar_lea.vmem %s5, %s2790
      // Predicated region
      $region33: #{unet_block_forward.2} parent=31 // pred_check
        %p2792 = pneg %p103
      $region34: #{unet_block_forward.2} parent=31 // pred_check_branch
        %2794 = sbr.rel (%p2792) target = $region36
      $region35: #{unet_block_forward.2} parent=31 // pred_region
        %s2795 = smul.u32 8, %s17
      $region36: #{unet_block_forward.2} parent=31 // pred_fallthru
        _
      // Predicated region
      $region37: #{unet_block_forward.2} parent=31 // pred_check
        %p2796 = pneg %p129
      $region38: #{unet_block_forward.2} parent=31 // pred_check_branch
        %2798 = sbr.rel (%p2796) target = $region40
      $region39: #{unet_block_forward.2} parent=31 // pred_region
        _
      $region40: #{unet_block_forward.2} parent=31 // pred_fallthru
        _
      // Predicated region
      $region41: #{unet_block_forward.2} parent=31 // pred_check
        %p2799 = pneg %p155
      $region42: #{unet_block_forward.2} parent=31 // pred_check_branch
        %2801 = sbr.rel (%p2799) target = $region44
      $region43: #{unet_block_forward.2} parent=31 // pred_region
        _
      $region44: #{unet_block_forward.2} parent=31 // pred_fallthru
        _
    $region32: #{unet_block_forward.2} parent=5 // pred_fallthru
      _
    %p2802 = scmp.le.s32.totalorder 2, %s12
    // Predicated region
    $region45: #{unet_block_forward.2} parent=5 // pred_check
      %p2803 = pneg %p2802
    $region46: #{unet_block_forward.2} parent=5 // pred_check_branch
      %2805 = sbr.rel (%p2803) target = $region48
    $region47: #{unet_block_forward.2} parent=5 // pred_region
      %s2806 = ssub.s32 %s12, 2
      // Predicated region
      $region49: #{unet_block_forward.2} parent=47 // pred_check
        %p2807 = pneg %p109
      $region50: #{unet_block_forward.2} parent=47 // pred_check_branch
        %2809 = sbr.rel (%p2807) target = $region52
      $region51: #{unet_block_forward.2} parent=47 // pred_region
        %s2810 = smul.u32 8, %s18
        %p2811 = scmp.lt.s32.totalorder %s2810, 15
        %s2812 = scalar_select %p2811, %s2810, 15
        %s2813 = smul.addr %s2812, 8
        %s2814 = scalar_lea.vmem %s3, %s2813
      $region52: #{unet_block_forward.2} parent=47 // pred_fallthru
        _
      // Predicated region
      $region53: #{unet_block_forward.2} parent=47 // pred_check
        %p2815 = pneg %p135
      $region54: #{unet_block_forward.2} parent=47 // pred_check_branch
        %2817 = sbr.rel (%p2815) target = $region56
      $region55: #{unet_block_forward.2} parent=47 // pred_region
        %p2818 = scmp.lt.s32.totalorder %s18, 1
        %s2819 = scalar_select %p2818, %s18, 1
        %s2820 = scalar_lea.vmem %s4, %s2819
      $region56: #{unet_block_forward.2} parent=47 // pred_fallthru
        _
      // Predicated region
      $region57: #{unet_block_forward.2} parent=47 // pred_check
        %p2821 = pneg %p161
      $region58: #{unet_block_forward.2} parent=47 // pred_check_branch
        %2823 = sbr.rel (%p2821) target = $region60
      $region59: #{unet_block_forward.2} parent=47 // pred_region
        %p2824 = scmp.lt.s32.totalorder %s18, 1
        %s2825 = scalar_select %p2824, %s18, 1
        %s2826 = scalar_lea.vmem %s5, %s2825
      $region60: #{unet_block_forward.2} parent=47 // pred_fallthru
        _
    $region48: #{unet_block_forward.2} parent=5 // pred_fallthru
      _
  $region6: #{unet_block_forward.2} parent=0 // loop_footer
    %s16 = sadd.s32 1, %s12
  $region7: #{unet_block_forward.2} parent=0 // loop_footer_branch
    %11 = sbr.rel target = $region3
  $region8: #{unet_block_forward.2} parent=0 // loop_exit
    _

</llo_original>
